<compile_context>
chip_gen: v7x
topology: tpu7x:2x2x1
jax: 0.10.0
libtpu: 0.0.40
codegen_flags: <defaults>
</compile_context>

<pallas_src>
import functools

import jax
import jax.numpy as jnp
import numpy as np
from jax.experimental import pallas as pl
from jax.experimental.pallas import tpu as pltpu


# --------------------------- generation heuristics --------------------------

def _device_kind():
    try:
        return jax.devices()[0].device_kind.lower()
    except Exception:
        return ""


def _vmem_limit_bytes():
    try:
        cap = int(pltpu.get_tpu_info().vmem_capacity_bytes)
        return min(cap * 3 // 4, 96 * 1024 * 1024)
    except Exception:
        return 48 * 1024 * 1024


_KIND = _device_kind()
_IS_V7 = ("v7" in _KIND) or ("7x" in _KIND)
NUM_CORES = 2 if _IS_V7 else 1            # v5e / v6e: single TensorCore per chip
TM_MATMUL = 512 if _IS_V7 else 1024       # larger row tile on 128-MiB-VMEM parts
TM_ELT = 1024
VMEM_LIMIT = _vmem_limit_bytes()


# --------------------------------- helpers ----------------------------------

def _round_up(x, m):
    return -(-x // m) * m


def _pick_tile(m, pref):
    """Largest multiple-of-8 divisor of m that is <= pref (None if m % 8 != 0)."""
    t = min(pref, m)
    t -= t % 8
    while t >= 8:
        if m % t == 0:
            return t
        t -= 8
    return None


def _packed_width(c):
    """Conv-output channel width: pad to a multiple of 128 only when the
    lane-dense reshape trick (C < 128 and 128 % C == 0) cannot be used."""
    if c % 128 == 0 or (c < 128 and 128 % c == 0):
        return c
    return _round_up(c, 128)


def _pad_last(a, n):
    if a.shape[-1] == n:
        return a
    return jnp.pad(a, [(0, 0)] * (a.ndim - 1) + [(0, n - a.shape[-1])])


def _cparams(sem):
    return pltpu.CompilerParams(dimension_semantics=sem,
                                vmem_limit_bytes=VMEM_LIMIT)


# ------------------ kernel 1: im2col matmul + fused BN stats ----------------
# Used for conv1 when stride != 1 (wrapper-level im2col, 9/s^2 inflation) and
# for the 1x1 shortcut conv (no inflation).

def _mm_stats_kernel(a_ref, w_ref, y_ref, s_ref, sq_ref):
    @pl.when(pl.program_id(1) == 0)
    def _():
        s_ref[...] = jnp.zeros_like(s_ref)
        sq_ref[...] = jnp.zeros_like(sq_ref)

    y = jnp.dot(a_ref[...], w_ref[...], preferred_element_type=jnp.float32)
    y_ref[...] = y.astype(y_ref.dtype)          # bf16 writeback
    s_ref[...] += jnp.sum(y, axis=0)[None, None, :]
    sq_ref[...] += jnp.sum(y * y, axis=0)[None, None, :]


def pallas_matmul_stats(a, w):
    """a:(M,K) bf16, w:(K,Cp) bf16 -> y:(M_pad,Cp) bf16, sum/sumsq:(1,Cp) f32."""
    m, k = a.shape
    cp = w.shape[1]
    tm = _pick_tile(m, TM_MATMUL)
    if tm is None:                               # rare fallback: pad rows to x8
        m_pad = _round_up(m, 8)
        a = jnp.pad(a, ((0, m_pad - m), (0, 0)))
        m = m_pad
        tm = _pick_tile(m, TM_MATMUL)
    tiles = m // tm
    p = NUM_CORES if (tiles % NUM_CORES == 0 and tiles >= NUM_CORES) else 1
    t = tiles // p

    flops = int(2 * m * k * cp)
    bytes_accessed = int((m * k + k * cp + m * cp) * 2 + 2 * p * cp * 4)

    y, s, sq = pl.pallas_call(
        _mm_stats_kernel,
        out_shape=(jax.ShapeDtypeStruct((m, cp), jnp.bfloat16),
                   jax.ShapeDtypeStruct((p, 1, cp), jnp.float32),
                   jax.ShapeDtypeStruct((p, 1, cp), jnp.float32)),
        grid=(p, t),
        in_specs=[pl.BlockSpec((tm, k), lambda i, j: (i * t + j, 0)),
                  pl.BlockSpec((k, cp), lambda i, j: (0, 0))],
        out_specs=(pl.BlockSpec((tm, cp), lambda i, j: (i * t + j, 0)),
                   pl.BlockSpec((1, 1, cp), lambda i, j: (i, 0, 0)),
                   pl.BlockSpec((1, 1, cp), lambda i, j: (i, 0, 0))),
        compiler_params=_cparams(("parallel", "arbitrary")),
        cost_estimate=pl.CostEstimate(flops=flops, transcendentals=0,
                                      bytes_accessed=bytes_accessed),
    )(a, w)
    return y, jnp.sum(s, axis=0), jnp.sum(sq, axis=0)


# ------- kernel 2: stride-1 3x3 conv, in-kernel im2col + fused BN stats -----

def _conv3x3_s1_stats_kernel(x_ref, w_ref, y_ref, s_ref, sq_ref):
    # x_ref: (1, Ho+2, Wo+2, Cin) bf16 (spatially zero-padded image)
    # w_ref: (9, Cin, Cp) bf16 ; y_ref: (1, Ho, Wo, Cp) bf16
    ho, wo, cp = y_ref.shape[1], y_ref.shape[2], y_ref.shape[3]
    cin = x_ref.shape[3]
    acc = None
    for di in range(3):
        for dj in range(3):
            tap = x_ref[0, di:di + ho, dj:dj + wo, :].reshape(ho * wo, cin)
            part = jnp.dot(tap, w_ref[di * 3 + dj],
                           preferred_element_type=jnp.float32)
            acc = part if acc is None else acc + part
    y_ref[0] = acc.reshape(ho, wo, cp).astype(y_ref.dtype)
    s_ref[...] = jnp.sum(acc, axis=0)[None, None, :]
    sq_ref[...] = jnp.sum(acc * acc, axis=0)[None, None, :]


def pallas_conv3x3_s1_stats(x_pad, w9):
    """x_pad:(N,Ho+2,Wo+2,Cin) bf16, w9:(9,Cin,Cp) bf16
       -> y:(N*Ho*Wo, Cp) bf16, sum/sumsq:(1,Cp) f32."""
    n, hp, wp, cin = x_pad.shape
    ho, wo = hp - 2, wp - 2
    cp = w9.shape[2]

    flops = int(2 * n * ho * wo * 9 * cin * cp)
    bytes_accessed = int((n * hp * wp * cin + 9 * cin * cp + n * ho * wo * cp) * 2)

    y, s, sq = pl.pallas_call(
        _conv3x3_s1_stats_kernel,
        out_shape=(jax.ShapeDtypeStruct((n, ho, wo, cp), jnp.bfloat16),
                   jax.ShapeDtypeStruct((n, 1, cp), jnp.float32),
                   jax.ShapeDtypeStruct((n, 1, cp), jnp.float32)),
        grid=(n,),
        in_specs=[pl.BlockSpec((1, hp, wp, cin), lambda i: (i, 0, 0, 0)),
                  pl.BlockSpec((9, cin, cp), lambda i: (0, 0, 0))],
        out_specs=(pl.BlockSpec((1, ho, wo, cp), lambda i: (i, 0, 0, 0)),
                   pl.BlockSpec((1, 1, cp), lambda i: (i, 0, 0)),
                   pl.BlockSpec((1, 1, cp), lambda i: (i, 0, 0))),
        compiler_params=_cparams(("parallel",)),
        cost_estimate=pl.CostEstimate(flops=flops, transcendentals=0,
                                      bytes_accessed=bytes_accessed),
    )(x_pad, w9)
    return y.reshape(n * ho * wo, cp), jnp.sum(s, axis=0), jnp.sum(sq, axis=0)


# ----------------- kernels 3: lane-dense elementwise BN / residual ----------

def _bn_relu_kernel(y_ref, sc_ref, b_ref, o_ref):
    o_ref[...] = jnp.maximum(y_ref[...] * sc_ref[...] + b_ref[...],
                             0.0).astype(o_ref.dtype)


def _residual_bn_kernel(y_ref, sc_ref, b_ref, r_ref, rsc_ref, rb_ref, o_ref):
    short = r_ref[...] * rsc_ref[...] + rb_ref[...]
    o_ref[...] = jnp.maximum(y_ref[...] * sc_ref[...] + b_ref[...] + short,
                             0.0).astype(o_ref.dtype)


def _residual_id_kernel(y_ref, sc_ref, b_ref, r_ref, o_ref):
    o_ref[...] = jnp.maximum(y_ref[...] * sc_ref[...] + b_ref[...] + r_ref[...],
                             0.0).astype(o_ref.dtype)


def _lane_pack_rows(arrs, vecs, m, c):
    """Reshape (m, c) data to (m/rep, c*rep) so the minor dim is 128 when
    C < 128, and lane-tile the (1, c) per-channel vectors to match."""
    rep = 1
    if c < 128 and 128 % c == 0 and m % (128 // c) == 0:
        rep = 128 // c
    mm, cc = m // rep, c * rep
    data = [a.reshape(mm, cc) for a in arrs]
    vecs = [jnp.tile(v, (1, rep)) if rep > 1 else v for v in vecs]
    return data, vecs, mm, cc


def _elementwise_call(kernel, data, vecs, order, mm, cc, out_dtype):
    tile = _pick_tile(mm, TM_ELT)
    pad = 0
    if tile is None:                             # rare fallback: pad rows to x8
        pad = _round_up(mm, 8) - mm
        data = [jnp.pad(a, ((0, pad), (0, 0))) for a in data]
        mm += pad
        tile = _pick_tile(mm, TM_ELT)
    blk = pl.BlockSpec((tile, cc), lambda i: (i, 0))
    vec = pl.BlockSpec((1, cc), lambda i: (0, 0))
    args, in_specs, di, vi = [], [], 0, 0
    for k in order:
        if k == "d":
            args.append(data[di]); in_specs.append(blk); di += 1
        else:
            args.append(vecs[vi]); in_specs.append(vec); vi += 1
    out = pl.pallas_call(
        kernel,
        out_shape=jax.ShapeDtypeStruct((mm, cc), out_dtype),
        grid=(mm // tile,),
        in_specs=in_specs,
        out_specs=blk,
        compiler_params=_cparams(("parallel",)),
    )(*args)
    if pad:
        out = out[:mm - pad]
    return out


def pallas_bn_relu(y2d, scale, bias):
    """bf16 relu(y * scale + bias); y2d:(M, C) bf16, scale/bias:(1, C) f32."""
    m, c = y2d.shape
    data, vecs, mm, cc = _lane_pack_rows([y2d], [scale, bias], m, c)
    out = _elementwise_call(_bn_relu_kernel, data, vecs, "dvv", mm, cc,
                            jnp.bfloat16)
    return out.reshape(m, c)


def pallas_residual_relu(y2d, scale, bias, short2d, rscale=None, rbias=None):
    """f32 relu(y*scale+bias + shortcut) (shortcut BN affine fused if given)."""
    m, c = y2d.shape
    if rscale is not None:
        data, vecs, mm, cc = _lane_pack_rows(
            [y2d, short2d], [scale, bias, rscale, rbias], m, c)
        out = _elementwise_call(_residual_bn_kernel, data, vecs, "dvvdvv",
                                mm, cc, jnp.float32)
    else:
        data, vecs, mm, cc = _lane_pack_rows([y2d, short2d], [scale, bias], m, c)
        out = _elementwise_call(_residual_id_kernel, data, vecs, "dvvd",
                                mm, cc, jnp.float32)
    return out.reshape(m, c)


# ------------------------------- glue (JAX) ---------------------------------

def _im2col_3x3(x_nhwc, stride):
    n, h, w, c = x_nhwc.shape
    xp = jnp.pad(x_nhwc, ((0, 0), (1, 1), (1, 1), (0, 0)))
    ho = (h + 2 - 3) // stride + 1
    wo = (w + 2 - 3) // stride + 1
    patches = []
    for di in range(3):
        for dj in range(3):
            patches.append(
                xp[:, di:di + stride * (ho - 1) + 1:stride,
                   dj:dj + stride * (wo - 1) + 1:stride, :])
    cols = jnp.stack(patches, axis=3)            # (N, Ho, Wo, 9, Cin)
    return cols.reshape(n * ho * wo, 9 * c), ho, wo


def _prep_w3x3(w_oihw, cin_data, cp_out):
    o, i, kh, kw = w_oihw.shape
    w = jnp.transpose(w_oihw, (2, 3, 1, 0)).reshape(kh * kw, i, o)
    w = jnp.pad(w, ((0, 0), (0, cin_data - i), (0, cp_out - o)))
    return w.astype(jnp.bfloat16)


def _bn_scale_bias(s, sq, count, gamma, beta, cp, eps=1e-5):
    gamma = _pad_last(gamma.reshape(1, -1).astype(jnp.float32), cp)
    beta = _pad_last(beta.reshape(1, -1).astype(jnp.float32), cp)
    mean = s / count
    var = jnp.maximum(sq / count - mean * mean, 0.0)   # biased var (training BN)
    scale = gamma * jax.lax.rsqrt(var + eps)
    bias = beta - mean * scale
    return scale, bias


def basic_block_forward(x_nchw, params, stride):
    x = jnp.transpose(x_nchw, (0, 2, 3, 1)).astype(jnp.float32)   # NHWC
    n, h, w, cin = x.shape
    planes = params["w1"].shape[0]
    cp = _packed_width(planes)
    x_bf = x.astype(jnp.bfloat16)                # bf16 MXU operands, f32 acc

    # conv1 (3x3, stride, pad=1) + bn1 stats fused
    if stride == 1:
        ho, wo = h, w
        x_pad = jnp.pad(x_bf, ((0, 0), (1, 1), (1, 1), (0, 0)))
        y1, s1, sq1 = pallas_conv3x3_s1_stats(x_pad, _prep_w3x3(params["w1"], cin, cp))
    else:
        cols1, ho, wo = _im2col_3x3(x_bf, stride)
        w1m = _prep_w3x3(params["w1"], cin, cp).reshape(9 * cin, cp)
        y1, s1, sq1 = pallas_matmul_stats(cols1, w1m)
    m1 = n * ho * wo
    if y1.shape[0] != m1:
        y1 = y1[:m1]
    sc1, b1 = _bn_scale_bias(s1, sq1, m1, params["g1"], params["b1"], cp)

    # bn1 + relu, emitted directly in bf16 (feeds conv2's bf16 operands)
    a1 = pallas_bn_relu(y1, sc1, b1)                                # (m1, cp)

    # conv2 (3x3, stride 1, pad=1) + bn2 stats fused (in-kernel im2col)
    a1_pad = jnp.pad(a1.reshape(n, ho, wo, cp), ((0, 0), (1, 1), (1, 1), (0, 0)))
    y2, s2, sq2 = pallas_conv3x3_s1_stats(a1_pad, _prep_w3x3(params["w2"], cp, cp))
    sc2, b2 = _bn_scale_bias(s2, sq2, m1, params["g2"], params["b2"], cp)

    # shortcut (identity or 1x1 conv + BN, affine fused into the output kernel)
    if stride != 1 or cin != planes:
        wsm = jnp.pad(jnp.transpose(params["ws"], (2, 3, 1, 0)).reshape(cin, planes),
                      ((0, 0), (0, cp - planes))).astype(jnp.bfloat16)
        xs = x_bf[:, ::stride, ::stride, :].reshape(m1, cin)
        ys, ss, sqs = pallas_matmul_stats(xs, wsm)
        if ys.shape[0] != m1:
            ys = ys[:m1]
        scs, bs = _bn_scale_bias(ss, sqs, m1, params["gs"], params["bs"], cp)
        out = pallas_residual_relu(y2, sc2, b2, ys, scs, bs)
    else:
        short = x.reshape(m1, cin)
        if cp != planes:
            short = jnp.pad(short, ((0, 0), (0, cp - planes)))
        out = pallas_residual_relu(y2, sc2, b2, short)

    out = out[:, :planes].reshape(n, ho, wo, planes)
    return jnp.transpose(out, (0, 3, 1, 2))      # back to NCHW


# ------------------------- pure-JAX reference check -------------------------
# Same precision policy as the kernels: bf16 matmul operands / f32 accumulation
# with conv outputs stored in bf16; BatchNorm (batch stats, eps=1e-5) in f32.

def reference_forward(x, params, stride):
    def conv(z, w, s, pad):
        y = jax.lax.conv_general_dilated(
            z.astype(jnp.bfloat16), w.astype(jnp.bfloat16), (s, s),
            ((pad, pad), (pad, pad)),
            dimension_numbers=("NCHW", "OIHW", "NCHW"),
            preferred_element_type=jnp.float32)
        return y.astype(jnp.bfloat16).astype(jnp.float32)

    def bn(y, g, b, eps=1e-5):
        mean = y.mean(axis=(0, 2, 3), keepdims=True)
        var = y.var(axis=(0, 2, 3), keepdims=True)
        return (y - mean) * jax.lax.rsqrt(var + eps) * g.reshape(1, -1, 1, 1) \
            + b.reshape(1, -1, 1, 1)

    cin, planes = x.shape[1], params["w1"].shape[0]
    out = jax.nn.relu(bn(conv(x, params["w1"], stride, 1), params["g1"], params["b1"]))
    out = bn(conv(out, params["w2"], 1, 1), params["g2"], params["b2"])
    if stride != 1 or cin != planes:
        short = bn(conv(x, params["ws"], stride, 0), params["gs"], params["bs"])
    else:
        short = x
    return jax.nn.relu(out + short)


if __name__ == "__main__":
    def make_params(key, in_planes, planes, with_shortcut):
        ks = jax.random.split(key, 10)
        p = {
            "w1": 0.1 * jax.random.normal(ks[0], (planes, in_planes, 3, 3), jnp.float32),
            "g1": 1.0 + 0.1 * jax.random.normal(ks[1], (planes,), jnp.float32),
            "b1": 0.1 * jax.random.normal(ks[2], (planes,), jnp.float32),
            "w2": 0.1 * jax.random.normal(ks[3], (planes, planes, 3, 3), jnp.float32),
            "g2": 1.0 + 0.1 * jax.random.normal(ks[4], (planes,), jnp.float32),
            "b2": 0.1 * jax.random.normal(ks[5], (planes,), jnp.float32),
        }
        if with_shortcut:
            p["ws"] = 0.1 * jax.random.normal(ks[6], (planes, in_planes, 1, 1), jnp.float32)
            p["gs"] = 1.0 + 0.1 * jax.random.normal(ks[7], (planes,), jnp.float32)
            p["bs"] = 0.1 * jax.random.normal(ks[8], (planes,), jnp.float32)
        return p, ks[9]

    k_a, k_b = jax.random.split(jax.random.PRNGKey(0))

    # Case 1: stride=2, channel change -> 1x1-conv+BN shortcut (matmul path).
    params, kx = make_params(k_a, 4, 8, True)
    x = jax.random.normal(kx, (2, 4, 16, 16), jnp.float32)
    out = jax.block_until_ready(
        jax.jit(functools.partial(basic_block_forward, stride=2))(x, params))
    ref = reference_forward(x, params, 2)
    np.testing.assert_allclose(np.asarray(out), np.asarray(ref),
                               rtol=1e-2, atol=1e-2)

    # Case 2: stride=1, identity shortcut (in-kernel im2col path for both convs).
    params1, kx1 = make_params(k_b, 8, 8, False)
    x1 = jax.random.normal(kx1, (2, 8, 16, 16), jnp.float32)
    out1 = jax.block_until_ready(
        jax.jit(functools.partial(basic_block_forward, stride=1))(x1, params1))
    ref1 = reference_forward(x1, params1, 1)
    np.testing.assert_allclose(np.asarray(out1), np.asarray(ref1),
                               rtol=1e-2, atol=1e-2)

    print("KERNEL_OK")
</pallas_src>

<mosaic_0001>
module attributes {stable_mosaic.version = 11 : i64} {
  func.func @_mm_stats_kernel(%arg0: i32, %arg1: i32, %arg2: memref<128x36xbf16, #tpu.memory_space<vmem>>, %arg3: memref<36x8xbf16, #tpu.memory_space<vmem>>, %arg4: memref<128x8xbf16, #tpu.memory_space<vmem>>, %arg5: memref<1x1x8xf32, #tpu.memory_space<vmem>>, %arg6: memref<1x1x8xf32, #tpu.memory_space<vmem>>) attributes {dimension_semantics = [#tpu.dimension_semantics<parallel>, #tpu.dimension_semantics<arbitrary>], iteration_bounds = array<i64: 1, 1>, scalar_prefetch = 0 : i64, scratch_operands = 0 : i64, tpu.core_type = #tpu.core_type<tc>, window_params = [{transform_indices = @transform_0, window_bounds = array<i64: 128, 36>}, {pipeline_mode = #tpu.pipeline_mode<synchronous>, transform_indices = @transform_1, window_bounds = array<i64: 36, 8>}, {transform_indices = @transform_2, window_bounds = array<i64: 128, 8>}, {transform_indices = @transform_3, window_bounds = array<i64: 1, 1, 8>}, {transform_indices = @transform_4, window_bounds = array<i64: 1, 1, 8>}]} {
    %c0_i32 = arith.constant 0 : i32
    %0 = arith.cmpi eq, %arg1, %c0_i32 : i32
    %1 = arith.extui %0 : i1 to i32
    %c0_i32_0 = arith.constant 0 : i32
    %2 = arith.cmpi ne, %1, %c0_i32_0 : i32
    scf.if %2 {
      %cst_20 = arith.constant 0.000000e+00 : f32
      %19 = vector.broadcast %cst_20 : f32 to vector<1x1x8xf32>
      %c0_21 = arith.constant 0 : index
      %c0_22 = arith.constant 0 : index
      %c0_23 = arith.constant 0 : index
      %20 = vector.load %arg5[%c0_21, %c0_22, %c0_23] : memref<1x1x8xf32, #tpu.memory_space<vmem>>, vector<1x1x8xf32>
      tpu.vector_store %arg5[%c0_21, %c0_22, %c0_23], %19 {strides = array<i32>} : memref<1x1x8xf32, #tpu.memory_space<vmem>>, vector<1x1x8xf32>,
      %cst_24 = arith.constant 0.000000e+00 : f32
      %21 = vector.broadcast %cst_24 : f32 to vector<1x1x8xf32>
      %c0_25 = arith.constant 0 : index
      %c0_26 = arith.constant 0 : index
      %c0_27 = arith.constant 0 : index
      %22 = vector.load %arg6[%c0_25, %c0_26, %c0_27] : memref<1x1x8xf32, #tpu.memory_space<vmem>>, vector<1x1x8xf32>
      tpu.vector_store %arg6[%c0_25, %c0_26, %c0_27], %21 {strides = array<i32>} : memref<1x1x8xf32, #tpu.memory_space<vmem>>, vector<1x1x8xf32>,
    } else {
    }
    %c0 = arith.constant 0 : index
    %c0_1 = arith.constant 0 : index
    %3 = vector.load %arg2[%c0, %c0_1] : memref<128x36xbf16, #tpu.memory_space<vmem>>, vector<128x36xbf16>
    %c0_2 = arith.constant 0 : index
    %c0_3 = arith.constant 0 : index
    %4 = vector.load %arg3[%c0_2, %c0_3] : memref<36x8xbf16, #tpu.memory_space<vmem>>, vector<36x8xbf16>
    %cst = arith.constant dense<0.000000e+00> : vector<128x8xf32>
    %5 = tpu.matmul %3, %4, %cst {dimension_numbers = #tpu.dot_dimension_numbers<[1], [0], [0], [1], [0, 0, 1, 1], [], []>} : vector<128x36xbf16>, vector<36x8xbf16>, vector<128x8xf32> -> vector<128x8xf32>
    %6 = arith.truncf %5 : vector<128x8xf32> to vector<128x8xbf16>
    %c0_4 = arith.constant 0 : index
    %c0_5 = arith.constant 0 : index
    %7 = vector.load %arg4[%c0_4, %c0_5] : memref<128x8xbf16, #tpu.memory_space<vmem>>, vector<128x8xbf16>
    tpu.vector_store %arg4[%c0_4, %c0_5], %6 {strides = array<i32>} : memref<128x8xbf16, #tpu.memory_space<vmem>>, vector<128x8xbf16>,
    %c0_6 = arith.constant 0 : index
    %c0_7 = arith.constant 0 : index
    %c0_8 = arith.constant 0 : index
    %8 = vector.load %arg5[%c0_6, %c0_7, %c0_8] : memref<1x1x8xf32, #tpu.memory_space<vmem>>, vector<1x1x8xf32>
    %cst_9 = arith.constant dense<0.000000e+00> : vector<8xf32>
    %9 = vector.multi_reduction <add>, %5, %cst_9 [0] : vector<128x8xf32> to vector<8xf32>
    %10 = vector.shape_cast %9 : vector<8xf32> to vector<1x1x8xf32>
    %11 = arith.addf %8, %10 : vector<1x1x8xf32>
    %c0_10 = arith.constant 0 : index
    %c0_11 = arith.constant 0 : index
    %c0_12 = arith.constant 0 : index
    %12 = vector.load %arg5[%c0_10, %c0_11, %c0_12] : memref<1x1x8xf32, #tpu.memory_space<vmem>>, vector<1x1x8xf32>
    tpu.vector_store %arg5[%c0_10, %c0_11, %c0_12], %11 {strides = array<i32>} : memref<1x1x8xf32, #tpu.memory_space<vmem>>, vector<1x1x8xf32>,
    %c0_13 = arith.constant 0 : index
    %c0_14 = arith.constant 0 : index
    %c0_15 = arith.constant 0 : index
    %13 = vector.load %arg6[%c0_13, %c0_14, %c0_15] : memref<1x1x8xf32, #tpu.memory_space<vmem>>, vector<1x1x8xf32>
    %14 = arith.mulf %5, %5 : vector<128x8xf32>
    %cst_16 = arith.constant dense<0.000000e+00> : vector<8xf32>
    %15 = vector.multi_reduction <add>, %14, %cst_16 [0] : vector<128x8xf32> to vector<8xf32>
    %16 = vector.shape_cast %15 : vector<8xf32> to vector<1x1x8xf32>
    %17 = arith.addf %13, %16 : vector<1x1x8xf32>
    %c0_17 = arith.constant 0 : index
    %c0_18 = arith.constant 0 : index
    %c0_19 = arith.constant 0 : index
    %18 = vector.load %arg6[%c0_17, %c0_18, %c0_19] : memref<1x1x8xf32, #tpu.memory_space<vmem>>, vector<1x1x8xf32>
    tpu.vector_store %arg6[%c0_17, %c0_18, %c0_19], %17 {strides = array<i32>} : memref<1x1x8xf32, #tpu.memory_space<vmem>>, vector<1x1x8xf32>,
    return
  }
  func.func @transform_0(%arg0: i32, %arg1: i32) -> (i32, i32) {
    %c1_i32 = arith.constant 1 : i32
    %0 = arith.muli %arg0, %c1_i32 : i32
    %1 = arith.addi %0, %arg1 : i32
    %c0_i32 = arith.constant 0 : i32
    %c0_i32_0 = arith.constant 0 : i32
    return %1, %c0_i32 : i32, i32
  }
  func.func @transform_1(%arg0: i32, %arg1: i32) -> (i32, i32) {
    %c0_i32 = arith.constant 0 : i32
    %c0_i32_0 = arith.constant 0 : i32
    %c0_i32_1 = arith.constant 0 : i32
    return %c0_i32, %c0_i32_0 : i32, i32
  }
  func.func @transform_2(%arg0: i32, %arg1: i32) -> (i32, i32) {
    %c1_i32 = arith.constant 1 : i32
    %0 = arith.muli %arg0, %c1_i32 : i32
    %1 = arith.addi %0, %arg1 : i32
    %c0_i32 = arith.constant 0 : i32
    %c0_i32_0 = arith.constant 0 : i32
    return %1, %c0_i32 : i32, i32
  }
  func.func @transform_3(%arg0: i32, %arg1: i32) -> (i32, i32, i32) {
    %c0_i32 = arith.constant 0 : i32
    %c0_i32_0 = arith.constant 0 : i32
    %c0_i32_1 = arith.constant 0 : i32
    return %arg0, %c0_i32, %c0_i32_0 : i32, i32, i32
  }
  func.func @transform_4(%arg0: i32, %arg1: i32) -> (i32, i32, i32) {
    %c0_i32 = arith.constant 0 : i32
    %c0_i32_0 = arith.constant 0 : i32
    %c0_i32_1 = arith.constant 0 : i32
    return %arg0, %c0_i32, %c0_i32_0 : i32, i32, i32
  }
}

module attributes {stable_mosaic.version = 11 : i64} {
  func.func @_bn_relu_kernel(%arg0: i32, %arg1: memref<8x128xbf16, #tpu.memory_space<vmem>>, %arg2: memref<1x128xf32, #tpu.memory_space<vmem>>, %arg3: memref<1x128xf32, #tpu.memory_space<vmem>>, %arg4: memref<8x128xbf16, #tpu.memory_space<vmem>>) attributes {dimension_semantics = [#tpu.dimension_semantics<parallel>], iteration_bounds = array<i64: 1>, scalar_prefetch = 0 : i64, scratch_operands = 0 : i64, tpu.core_type = #tpu.core_type<tc>, window_params = [{transform_indices = @transform_0, window_bounds = array<i64: 8, 128>}, {pipeline_mode = #tpu.pipeline_mode<synchronous>, transform_indices = @transform_1, window_bounds = array<i64: 1, 128>}, {pipeline_mode = #tpu.pipeline_mode<synchronous>, transform_indices = @transform_2, window_bounds = array<i64: 1, 128>}, {transform_indices = @transform_3, window_bounds = array<i64: 8, 128>}]} {
    %c0 = arith.constant 0 : index
    %c0_0 = arith.constant 0 : index
    %0 = vector.load %arg1[%c0, %c0_0] : memref<8x128xbf16, #tpu.memory_space<vmem>>, vector<8x128xbf16>
    %c0_1 = arith.constant 0 : index
    %c0_2 = arith.constant 0 : index
    %1 = vector.load %arg2[%c0_1, %c0_2] : memref<1x128xf32, #tpu.memory_space<vmem>>, vector<1x128xf32>
    %2 = arith.extf %0 : vector<8x128xbf16> to vector<8x128xf32>
    %3 = vector.broadcast %1 : vector<1x128xf32> to vector<8x128xf32>
    %4 = arith.mulf %2, %3 : vector<8x128xf32>
    %c0_3 = arith.constant 0 : index
    %c0_4 = arith.constant 0 : index
    %5 = vector.load %arg3[%c0_3, %c0_4] : memref<1x128xf32, #tpu.memory_space<vmem>>, vector<1x128xf32>
    %6 = vector.broadcast %5 : vector<1x128xf32> to vector<8x128xf32>
    %7 = arith.addf %4, %6 : vector<8x128xf32>
    %cst = arith.constant 0.000000e+00 : f32
    %8 = vector.broadcast %cst : f32 to vector<8x128xf32>
    %9 = arith.maximumf %7, %8 : vector<8x128xf32>
    %10 = arith.truncf %9 : vector<8x128xf32> to vector<8x128xbf16>
    %c0_5 = arith.constant 0 : index
    %c0_6 = arith.constant 0 : index
    %11 = vector.load %arg4[%c0_5, %c0_6] : memref<8x128xbf16, #tpu.memory_space<vmem>>, vector<8x128xbf16>
    tpu.vector_store %arg4[%c0_5, %c0_6], %10 {strides = array<i32>} : memref<8x128xbf16, #tpu.memory_space<vmem>>, vector<8x128xbf16>,
    return
  }
  func.func @transform_0(%arg0: i32) -> (i32, i32) {
    %c0_i32 = arith.constant 0 : i32
    %c0_i32_0 = arith.constant 0 : i32
    return %arg0, %c0_i32 : i32, i32
  }
  func.func @transform_1(%arg0: i32) -> (i32, i32) {
    %c0_i32 = arith.constant 0 : i32
    %c0_i32_0 = arith.constant 0 : i32
    %c0_i32_1 = arith.constant 0 : i32
    return %c0_i32, %c0_i32_0 : i32, i32
  }
  func.func @transform_2(%arg0: i32) -> (i32, i32) {
    %c0_i32 = arith.constant 0 : i32
    %c0_i32_0 = arith.constant 0 : i32
    %c0_i32_1 = arith.constant 0 : i32
    return %c0_i32, %c0_i32_0 : i32, i32
  }
  func.func @transform_3(%arg0: i32) -> (i32, i32) {
    %c0_i32 = arith.constant 0 : i32
    %c0_i32_0 = arith.constant 0 : i32
    return %arg0, %c0_i32 : i32, i32
  }
}

module attributes {stable_mosaic.version = 11 : i64} {
  func.func @_conv3x3_s1_stats_kernel(%arg0: i32, %arg1: memref<1x10x10x8xbf16, #tpu.memory_space<vmem>>, %arg2: memref<9x8x8xbf16, #tpu.memory_space<vmem>>, %arg3: memref<1x8x8x8xbf16, #tpu.memory_space<vmem>>, %arg4: memref<1x1x8xf32, #tpu.memory_space<vmem>>, %arg5: memref<1x1x8xf32, #tpu.memory_space<vmem>>) attributes {dimension_semantics = [#tpu.dimension_semantics<parallel>], iteration_bounds = array<i64: 2>, scalar_prefetch = 0 : i64, scratch_operands = 0 : i64, tpu.core_type = #tpu.core_type<tc>, window_params = [{transform_indices = @transform_0, window_bounds = array<i64: 1, 10, 10, 8>}, {pipeline_mode = #tpu.pipeline_mode<synchronous>, transform_indices = @transform_1, window_bounds = array<i64: 9, 8, 8>}, {transform_indices = @transform_2, window_bounds = array<i64: 1, 8, 8, 8>}, {transform_indices = @transform_3, window_bounds = array<i64: 1, 1, 8>}, {transform_indices = @transform_4, window_bounds = array<i64: 1, 1, 8>}]} {
    %c0 = arith.constant 0 : index
    %c0_0 = arith.constant 0 : index
    %c0_1 = arith.constant 0 : index
    %c0_2 = arith.constant 0 : index
    %0 = vector.load %arg1[%c0, %c0_0, %c0_1, %c0_2] : memref<1x10x10x8xbf16, #tpu.memory_space<vmem>>, vector<1x8x8x8xbf16>
    %1 = vector.shape_cast %0 : vector<1x8x8x8xbf16> to vector<8x8x8xbf16>
    %2 = vector.shape_cast %1 : vector<8x8x8xbf16> to vector<64x8xbf16>
    %c0_3 = arith.constant 0 : index
    %c0_4 = arith.constant 0 : index
    %c0_5 = arith.constant 0 : index
    %3 = vector.load %arg2[%c0_3, %c0_4, %c0_5] : memref<9x8x8xbf16, #tpu.memory_space<vmem>>, vector<1x8x8xbf16>
    %4 = vector.shape_cast %3 : vector<1x8x8xbf16> to vector<8x8xbf16>
    %cst = arith.constant dense<0.000000e+00> : vector<64x8xf32>
    %5 = tpu.matmul %2, %4, %cst {dimension_numbers = #tpu.dot_dimension_numbers<[1], [0], [0], [1], [0, 0, 1, 1], [], []>} : vector<64x8xbf16>, vector<8x8xbf16>, vector<64x8xf32> -> vector<64x8xf32>
    %c0_6 = arith.constant 0 : index
    %c0_7 = arith.constant 0 : index
    %c1 = arith.constant 1 : index
    %c0_8 = arith.constant 0 : index
    %6 = vector.load %arg1[%c0_6, %c0_7, %c1, %c0_8] : memref<1x10x10x8xbf16, #tpu.memory_space<vmem>>, vector<1x8x8x8xbf16>
    %7 = vector.shape_cast %6 : vector<1x8x8x8xbf16> to vector<8x8x8xbf16>
    %8 = vector.shape_cast %7 : vector<8x8x8xbf16> to vector<64x8xbf16>
    %c1_9 = arith.constant 1 : index
    %c0_10 = arith.constant 0 : index
    %c0_11 = arith.constant 0 : index
    %9 = vector.load %arg2[%c1_9, %c0_10, %c0_11] : memref<9x8x8xbf16, #tpu.memory_space<vmem>>, vector<1x8x8xbf16>
    %10 = vector.shape_cast %9 : vector<1x8x8xbf16> to vector<8x8xbf16>
    %cst_12 = arith.constant dense<0.000000e+00> : vector<64x8xf32>
    %11 = tpu.matmul %8, %10, %cst_12 {dimension_numbers = #tpu.dot_dimension_numbers<[1], [0], [0], [1], [0, 0, 1, 1], [], []>} : vector<64x8xbf16>, vector<8x8xbf16>, vector<64x8xf32> -> vector<64x8xf32>
    %12 = arith.addf %5, %11 : vector<64x8xf32>
    %c0_13 = arith.constant 0 : index
    %c0_14 = arith.constant 0 : index
    %c2 = arith.constant 2 : index
    %c0_15 = arith.constant 0 : index
    %13 = vector.load %arg1[%c0_13, %c0_14, %c2, %c0_15] : memref<1x10x10x8xbf16, #tpu.memory_space<vmem>>, vector<1x8x8x8xbf16>
    %14 = vector.shape_cast %13 : vector<1x8x8x8xbf16> to vector<8x8x8xbf16>
    %15 = vector.shape_cast %14 : vector<8x8x8xbf16> to vector<64x8xbf16>
    %c2_16 = arith.constant 2 : index
    %c0_17 = arith.constant 0 : index
    %c0_18 = arith.constant 0 : index
    %16 = vector.load %arg2[%c2_16, %c0_17, %c0_18] : memref<9x8x8xbf16, #tpu.memory_space<vmem>>, vector<1x8x8xbf16>
    %17 = vector.shape_cast %16 : vector<1x8x8xbf16> to vector<8x8xbf16>
    %cst_19 = arith.constant dense<0.000000e+00> : vector<64x8xf32>
    %18 = tpu.matmul %15, %17, %cst_19 {dimension_numbers = #tpu.dot_dimension_numbers<[1], [0], [0], [1], [0, 0, 1, 1], [], []>} : vector<64x8xbf16>, vector<8x8xbf16>, vector<64x8xf32> -> vector<64x8xf32>
    %19 = arith.addf %12, %18 : vector<64x8xf32>
    %c0_20 = arith.constant 0 : index
    %c1_21 = arith.constant 1 : index
    %c0_22 = arith.constant 0 : index
    %c0_23 = arith.constant 0 : index
    %20 = vector.load %arg1[%c0_20, %c1_21, %c0_22, %c0_23] : memref<1x10x10x8xbf16, #tpu.memory_space<vmem>>, vector<1x8x8x8xbf16>
    %21 = vector.shape_cast %20 : vector<1x8x8x8xbf16> to vector<8x8x8xbf16>
    %22 = vector.shape_cast %21 : vector<8x8x8xbf16> to vector<64x8xbf16>
    %c3 = arith.constant 3 : index
    %c0_24 = arith.constant 0 : index
    %c0_25 = arith.constant 0 : index
    %23 = vector.load %arg2[%c3, %c0_24, %c0_25] : memref<9x8x8xbf16, #tpu.memory_space<vmem>>, vector<1x8x8xbf16>
    %24 = vector.shape_cast %23 : vector<1x8x8xbf16> to vector<8x8xbf16>
    %cst_26 = arith.constant dense<0.000000e+00> : vector<64x8xf32>
    %25 = tpu.matmul %22, %24, %cst_26 {dimension_numbers = #tpu.dot_dimension_numbers<[1], [0], [0], [1], [0, 0, 1, 1], [], []>} : vector<64x8xbf16>, vector<8x8xbf16>, vector<64x8xf32> -> vector<64x8xf32>
    %26 = arith.addf %19, %25 : vector<64x8xf32>
    %c0_27 = arith.constant 0 : index
    %c1_28 = arith.constant 1 : index
    %c1_29 = arith.constant 1 : index
    %c0_30 = arith.constant 0 : index
    %27 = vector.load %arg1[%c0_27, %c1_28, %c1_29, %c0_30] : memref<1x10x10x8xbf16, #tpu.memory_space<vmem>>, vector<1x8x8x8xbf16>
    %28 = vector.shape_cast %27 : vector<1x8x8x8xbf16> to vector<8x8x8xbf16>
    %29 = vector.shape_cast %28 : vector<8x8x8xbf16> to vector<64x8xbf16>
    %c4 = arith.constant 4 : index
    %c0_31 = arith.constant 0 : index
    %c0_32 = arith.constant 0 : index
    %30 = vector.load %arg2[%c4, %c0_31, %c0_32] : memref<9x8x8xbf16, #tpu.memory_space<vmem>>, vector<1x8x8xbf16>
    %31 = vector.shape_cast %30 : vector<1x8x8xbf16> to vector<8x8xbf16>
    %cst_33 = arith.constant dense<0.000000e+00> : vector<64x8xf32>
    %32 = tpu.matmul %29, %31, %cst_33 {dimension_numbers = #tpu.dot_dimension_numbers<[1], [0], [0], [1], [0, 0, 1, 1], [], []>} : vector<64x8xbf16>, vector<8x8xbf16>, vector<64x8xf32> -> vector<64x8xf32>
    %33 = arith.addf %26, %32 : vector<64x8xf32>
    %c0_34 = arith.constant 0 : index
    %c1_35 = arith.constant 1 : index
    %c2_36 = arith.constant 2 : index
    %c0_37 = arith.constant 0 : index
    %34 = vector.load %arg1[%c0_34, %c1_35, %c2_36, %c0_37] : memref<1x10x10x8xbf16, #tpu.memory_space<vmem>>, vector<1x8x8x8xbf16>
    %35 = vector.shape_cast %34 : vector<1x8x8x8xbf16> to vector<8x8x8xbf16>
    %36 = vector.shape_cast %35 : vector<8x8x8xbf16> to vector<64x8xbf16>
    %c5 = arith.constant 5 : index
    %c0_38 = arith.constant 0 : index
    %c0_39 = arith.constant 0 : index
    %37 = vector.load %arg2[%c5, %c0_38, %c0_39] : memref<9x8x8xbf16, #tpu.memory_space<vmem>>, vector<1x8x8xbf16>
    %38 = vector.shape_cast %37 : vector<1x8x8xbf16> to vector<8x8xbf16>
    %cst_40 = arith.constant dense<0.000000e+00> : vector<64x8xf32>
    %39 = tpu.matmul %36, %38, %cst_40 {dimension_numbers = #tpu.dot_dimension_numbers<[1], [0], [0], [1], [0, 0, 1, 1], [], []>} : vector<64x8xbf16>, vector<8x8xbf16>, vector<64x8xf32> -> vector<64x8xf32>
    %40 = arith.addf %33, %39 : vector<64x8xf32>
    %c0_41 = arith.constant 0 : index
    %c2_42 = arith.constant 2 : index
    %c0_43 = arith.constant 0 : index
    %c0_44 = arith.constant 0 : index
    %41 = vector.load %arg1[%c0_41, %c2_42, %c0_43, %c0_44] : memref<1x10x10x8xbf16, #tpu.memory_space<vmem>>, vector<1x8x8x8xbf16>
    %42 = vector.shape_cast %41 : vector<1x8x8x8xbf16> to vector<8x8x8xbf16>
    %43 = vector.shape_cast %42 : vector<8x8x8xbf16> to vector<64x8xbf16>
    %c6 = arith.constant 6 : index
    %c0_45 = arith.constant 0 : index
    %c0_46 = arith.constant 0 : index
    %44 = vector.load %arg2[%c6, %c0_45, %c0_46] : memref<9x8x8xbf16, #tpu.memory_space<vmem>>, vector<1x8x8xbf16>
    %45 = vector.shape_cast %44 : vector<1x8x8xbf16> to vector<8x8xbf16>
    %cst_47 = arith.constant dense<0.000000e+00> : vector<64x8xf32>
    %46 = tpu.matmul %43, %45, %cst_47 {dimension_numbers = #tpu.dot_dimension_numbers<[1], [0], [0], [1], [0, 0, 1, 1], [], []>} : vector<64x8xbf16>, vector<8x8xbf16>, vector<64x8xf32> -> vector<64x8xf32>
    %47 = arith.addf %40, %46 : vector<64x8xf32>
    %c0_48 = arith.constant 0 : index
    %c2_49 = arith.constant 2 : index
    %c1_50 = arith.constant 1 : index
    %c0_51 = arith.constant 0 : index
    %48 = vector.load %arg1[%c0_48, %c2_49, %c1_50, %c0_51] : memref<1x10x10x8xbf16, #tpu.memory_space<vmem>>, vector<1x8x8x8xbf16>
    %49 = vector.shape_cast %48 : vector<1x8x8x8xbf16> to vector<8x8x8xbf16>
    %50 = vector.shape_cast %49 : vector<8x8x8xbf16> to vector<64x8xbf16>
    %c7 = arith.constant 7 : index
    %c0_52 = arith.constant 0 : index
    %c0_53 = arith.constant 0 : index
    %51 = vector.load %arg2[%c7, %c0_52, %c0_53] : memref<9x8x8xbf16, #tpu.memory_space<vmem>>, vector<1x8x8xbf16>
    %52 = vector.shape_cast %51 : vector<1x8x8xbf16> to vector<8x8xbf16>
    %cst_54 = arith.constant dense<0.000000e+00> : vector<64x8xf32>
    %53 = tpu.matmul %50, %52, %cst_54 {dimension_numbers = #tpu.dot_dimension_numbers<[1], [0], [0], [1], [0, 0, 1, 1], [], []>} : vector<64x8xbf16>, vector<8x8xbf16>, vector<64x8xf32> -> vector<64x8xf32>
    %54 = arith.addf %47, %53 : vector<64x8xf32>
    %c0_55 = arith.constant 0 : index
    %c2_56 = arith.constant 2 : index
    %c2_57 = arith.constant 2 : index
    %c0_58 = arith.constant 0 : index
    %55 = vector.load %arg1[%c0_55, %c2_56, %c2_57, %c0_58] : memref<1x10x10x8xbf16, #tpu.memory_space<vmem>>, vector<1x8x8x8xbf16>
    %56 = vector.shape_cast %55 : vector<1x8x8x8xbf16> to vector<8x8x8xbf16>
    %57 = vector.shape_cast %56 : vector<8x8x8xbf16> to vector<64x8xbf16>
    %c8 = arith.constant 8 : index
    %c0_59 = arith.constant 0 : index
    %c0_60 = arith.constant 0 : index
    %58 = vector.load %arg2[%c8, %c0_59, %c0_60] : memref<9x8x8xbf16, #tpu.memory_space<vmem>>, vector<1x8x8xbf16>
    %59 = vector.shape_cast %58 : vector<1x8x8xbf16> to vector<8x8xbf16>
    %cst_61 = arith.constant dense<0.000000e+00> : vector<64x8xf32>
    %60 = tpu.matmul %57, %59, %cst_61 {dimension_numbers = #tpu.dot_dimension_numbers<[1], [0], [0], [1], [0, 0, 1, 1], [], []>} : vector<64x8xbf16>, vector<8x8xbf16>, vector<64x8xf32> -> vector<64x8xf32>
    %61 = arith.addf %54, %60 : vector<64x8xf32>
    %62 = vector.shape_cast %61 : vector<64x8xf32> to vector<8x8x8xf32>
    %63 = arith.truncf %62 : vector<8x8x8xf32> to vector<8x8x8xbf16>
    %c0_62 = arith.constant 0 : index
    %c0_63 = arith.constant 0 : index
    %c0_64 = arith.constant 0 : index
    %c0_65 = arith.constant 0 : index
    %64 = vector.load %arg3[%c0_62, %c0_63, %c0_64, %c0_65] : memref<1x8x8x8xbf16, #tpu.memory_space<vmem>>, vector<1x8x8x8xbf16>
    %65 = vector.shape_cast %64 : vector<1x8x8x8xbf16> to vector<8x8x8xbf16>
    %66 = vector.shape_cast %63 : vector<8x8x8xbf16> to vector<1x8x8x8xbf16>
    tpu.vector_store %arg3[%c0_62, %c0_63, %c0_64, %c0_65], %66 {strides = array<i32>} : memref<1x8x8x8xbf16, #tpu.memory_space<vmem>>, vector<1x8x8x8xbf16>,
    %cst_66 = arith.constant dense<0.000000e+00> : vector<8xf32>
    %67 = vector.multi_reduction <add>, %61, %cst_66 [0] : vector<64x8xf32> to vector<8xf32>
    %68 = vector.shape_cast %67 : vector<8xf32> to vector<1x1x8xf32>
    %c0_67 = arith.constant 0 : index
    %c0_68 = arith.constant 0 : index
    %c0_69 = arith.constant 0 : index
    %69 = vector.load %arg4[%c0_67, %c0_68, %c0_69] : memref<1x1x8xf32, #tpu.memory_space<vmem>>, vector<1x1x8xf32>
    tpu.vector_store %arg4[%c0_67, %c0_68, %c0_69], %68 {strides = array<i32>} : memref<1x1x8xf32, #tpu.memory_space<vmem>>, vector<1x1x8xf32>,
    %70 = arith.mulf %61, %61 : vector<64x8xf32>
    %cst_70 = arith.constant dense<0.000000e+00> : vector<8xf32>
    %71 = vector.multi_reduction <add>, %70, %cst_70 [0] : vector<64x8xf32> to vector<8xf32>
    %72 = vector.shape_cast %71 : vector<8xf32> to vector<1x1x8xf32>
    %c0_71 = arith.constant 0 : index
    %c0_72 = arith.constant 0 : index
    %c0_73 = arith.constant 0 : index
    %73 = vector.load %arg5[%c0_71, %c0_72, %c0_73] : memref<1x1x8xf32, #tpu.memory_space<vmem>>, vector<1x1x8xf32>
    tpu.vector_store %arg5[%c0_71, %c0_72, %c0_73], %72 {strides = array<i32>} : memref<1x1x8xf32, #tpu.memory_space<vmem>>, vector<1x1x8xf32>,
    return
  }
  func.func @transform_0(%arg0: i32) -> (i32, i32, i32, i32) {
    %c0_i32 = arith.constant 0 : i32
    %c0_i32_0 = arith.constant 0 : i32
    %c0_i32_1 = arith.constant 0 : i32
    %c0_i32_2 = arith.constant 0 : i32
    return %arg0, %c0_i32, %c0_i32_0, %c0_i32_1 : i32, i32, i32, i32
  }
  func.func @transform_1(%arg0: i32) -> (i32, i32, i32) {
    %c0_i32 = arith.constant 0 : i32
    %c0_i32_0 = arith.constant 0 : i32
    %c0_i32_1 = arith.constant 0 : i32
    %c0_i32_2 = arith.constant 0 : i32
    return %c0_i32, %c0_i32_0, %c0_i32_1 : i32, i32, i32
  }
  func.func @transform_2(%arg0: i32) -> (i32, i32, i32, i32) {
    %c0_i32 = arith.constant 0 : i32
    %c0_i32_0 = arith.constant 0 : i32
    %c0_i32_1 = arith.constant 0 : i32
    %c0_i32_2 = arith.constant 0 : i32
    return %arg0, %c0_i32, %c0_i32_0, %c0_i32_1 : i32, i32, i32, i32
  }
  func.func @transform_3(%arg0: i32) -> (i32, i32, i32) {
    %c0_i32 = arith.constant 0 : i32
    %c0_i32_0 = arith.constant 0 : i32
    %c0_i32_1 = arith.constant 0 : i32
    return %arg0, %c0_i32, %c0_i32_0 : i32, i32, i32
  }
  func.func @transform_4(%arg0: i32) -> (i32, i32, i32) {
    %c0_i32 = arith.constant 0 : i32
    %c0_i32_0 = arith.constant 0 : i32
    %c0_i32_1 = arith.constant 0 : i32
    return %arg0, %c0_i32, %c0_i32_0 : i32, i32, i32
  }
}

module attributes {stable_mosaic.version = 11 : i64} {
  func.func @_mm_stats_kernel(%arg0: i32, %arg1: i32, %arg2: memref<128x4xbf16, #tpu.memory_space<vmem>>, %arg3: memref<4x8xbf16, #tpu.memory_space<vmem>>, %arg4: memref<128x8xbf16, #tpu.memory_space<vmem>>, %arg5: memref<1x1x8xf32, #tpu.memory_space<vmem>>, %arg6: memref<1x1x8xf32, #tpu.memory_space<vmem>>) attributes {dimension_semantics = [#tpu.dimension_semantics<parallel>, #tpu.dimension_semantics<arbitrary>], iteration_bounds = array<i64: 1, 1>, scalar_prefetch = 0 : i64, scratch_operands = 0 : i64, tpu.core_type = #tpu.core_type<tc>, window_params = [{transform_indices = @transform_0, window_bounds = array<i64: 128, 4>}, {pipeline_mode = #tpu.pipeline_mode<synchronous>, transform_indices = @transform_1, window_bounds = array<i64: 4, 8>}, {transform_indices = @transform_2, window_bounds = array<i64: 128, 8>}, {transform_indices = @transform_3, window_bounds = array<i64: 1, 1, 8>}, {transform_indices = @transform_4, window_bounds = array<i64: 1, 1, 8>}]} {
    %c0_i32 = arith.constant 0 : i32
    %0 = arith.cmpi eq, %arg1, %c0_i32 : i32
    %1 = arith.extui %0 : i1 to i32
    %c0_i32_0 = arith.constant 0 : i32
    %2 = arith.cmpi ne, %1, %c0_i32_0 : i32
    scf.if %2 {
      %cst_20 = arith.constant 0.000000e+00 : f32
      %19 = vector.broadcast %cst_20 : f32 to vector<1x1x8xf32>
      %c0_21 = arith.constant 0 : index
      %c0_22 = arith.constant 0 : index
      %c0_23 = arith.constant 0 : index
      %20 = vector.load %arg5[%c0_21, %c0_22, %c0_23] : memref<1x1x8xf32, #tpu.memory_space<vmem>>, vector<1x1x8xf32>
      tpu.vector_store %arg5[%c0_21, %c0_22, %c0_23], %19 {strides = array<i32>} : memref<1x1x8xf32, #tpu.memory_space<vmem>>, vector<1x1x8xf32>,
      %cst_24 = arith.constant 0.000000e+00 : f32
      %21 = vector.broadcast %cst_24 : f32 to vector<1x1x8xf32>
      %c0_25 = arith.constant 0 : index
      %c0_26 = arith.constant 0 : index
      %c0_27 = arith.constant 0 : index
      %22 = vector.load %arg6[%c0_25, %c0_26, %c0_27] : memref<1x1x8xf32, #tpu.memory_space<vmem>>, vector<1x1x8xf32>
      tpu.vector_store %arg6[%c0_25, %c0_26, %c0_27], %21 {strides = array<i32>} : memref<1x1x8xf32, #tpu.memory_space<vmem>>, vector<1x1x8xf32>,
    } else {
    }
    %c0 = arith.constant 0 : index
    %c0_1 = arith.constant 0 : index
    %3 = vector.load %arg2[%c0, %c0_1] : memref<128x4xbf16, #tpu.memory_space<vmem>>, vector<128x4xbf16>
    %c0_2 = arith.constant 0 : index
    %c0_3 = arith.constant 0 : index
    %4 = vector.load %arg3[%c0_2, %c0_3] : memref<4x8xbf16, #tpu.memory_space<vmem>>, vector<4x8xbf16>
    %cst = arith.constant dense<0.000000e+00> : vector<128x8xf32>
    %5 = tpu.matmul %3, %4, %cst {dimension_numbers = #tpu.dot_dimension_numbers<[1], [0], [0], [1], [0, 0, 1, 1], [], []>} : vector<128x4xbf16>, vector<4x8xbf16>, vector<128x8xf32> -> vector<128x8xf32>
    %6 = arith.truncf %5 : vector<128x8xf32> to vector<128x8xbf16>
    %c0_4 = arith.constant 0 : index
    %c0_5 = arith.constant 0 : index
    %7 = vector.load %arg4[%c0_4, %c0_5] : memref<128x8xbf16, #tpu.memory_space<vmem>>, vector<128x8xbf16>
    tpu.vector_store %arg4[%c0_4, %c0_5], %6 {strides = array<i32>} : memref<128x8xbf16, #tpu.memory_space<vmem>>, vector<128x8xbf16>,
    %c0_6 = arith.constant 0 : index
    %c0_7 = arith.constant 0 : index
    %c0_8 = arith.constant 0 : index
    %8 = vector.load %arg5[%c0_6, %c0_7, %c0_8] : memref<1x1x8xf32, #tpu.memory_space<vmem>>, vector<1x1x8xf32>
    %cst_9 = arith.constant dense<0.000000e+00> : vector<8xf32>
    %9 = vector.multi_reduction <add>, %5, %cst_9 [0] : vector<128x8xf32> to vector<8xf32>
    %10 = vector.shape_cast %9 : vector<8xf32> to vector<1x1x8xf32>
    %11 = arith.addf %8, %10 : vector<1x1x8xf32>
    %c0_10 = arith.constant 0 : index
    %c0_11 = arith.constant 0 : index
    %c0_12 = arith.constant 0 : index
    %12 = vector.load %arg5[%c0_10, %c0_11, %c0_12] : memref<1x1x8xf32, #tpu.memory_space<vmem>>, vector<1x1x8xf32>
    tpu.vector_store %arg5[%c0_10, %c0_11, %c0_12], %11 {strides = array<i32>} : memref<1x1x8xf32, #tpu.memory_space<vmem>>, vector<1x1x8xf32>,
    %c0_13 = arith.constant 0 : index
    %c0_14 = arith.constant 0 : index
    %c0_15 = arith.constant 0 : index
    %13 = vector.load %arg6[%c0_13, %c0_14, %c0_15] : memref<1x1x8xf32, #tpu.memory_space<vmem>>, vector<1x1x8xf32>
    %14 = arith.mulf %5, %5 : vector<128x8xf32>
    %cst_16 = arith.constant dense<0.000000e+00> : vector<8xf32>
    %15 = vector.multi_reduction <add>, %14, %cst_16 [0] : vector<128x8xf32> to vector<8xf32>
    %16 = vector.shape_cast %15 : vector<8xf32> to vector<1x1x8xf32>
    %17 = arith.addf %13, %16 : vector<1x1x8xf32>
    %c0_17 = arith.constant 0 : index
    %c0_18 = arith.constant 0 : index
    %c0_19 = arith.constant 0 : index
    %18 = vector.load %arg6[%c0_17, %c0_18, %c0_19] : memref<1x1x8xf32, #tpu.memory_space<vmem>>, vector<1x1x8xf32>
    tpu.vector_store %arg6[%c0_17, %c0_18, %c0_19], %17 {strides = array<i32>} : memref<1x1x8xf32, #tpu.memory_space<vmem>>, vector<1x1x8xf32>,
    return
  }
  func.func @transform_0(%arg0: i32, %arg1: i32) -> (i32, i32) {
    %c1_i32 = arith.constant 1 : i32
    %0 = arith.muli %arg0, %c1_i32 : i32
    %1 = arith.addi %0, %arg1 : i32
    %c0_i32 = arith.constant 0 : i32
    %c0_i32_0 = arith.constant 0 : i32
    return %1, %c0_i32 : i32, i32
  }
  func.func @transform_1(%arg0: i32, %arg1: i32) -> (i32, i32) {
    %c0_i32 = arith.constant 0 : i32
    %c0_i32_0 = arith.constant 0 : i32
    %c0_i32_1 = arith.constant 0 : i32
    return %c0_i32, %c0_i32_0 : i32, i32
  }
  func.func @transform_2(%arg0: i32, %arg1: i32) -> (i32, i32) {
    %c1_i32 = arith.constant 1 : i32
    %0 = arith.muli %arg0, %c1_i32 : i32
    %1 = arith.addi %0, %arg1 : i32
    %c0_i32 = arith.constant 0 : i32
    %c0_i32_0 = arith.constant 0 : i32
    return %1, %c0_i32 : i32, i32
  }
  func.func @transform_3(%arg0: i32, %arg1: i32) -> (i32, i32, i32) {
    %c0_i32 = arith.constant 0 : i32
    %c0_i32_0 = arith.constant 0 : i32
    %c0_i32_1 = arith.constant 0 : i32
    return %arg0, %c0_i32, %c0_i32_0 : i32, i32, i32
  }
  func.func @transform_4(%arg0: i32, %arg1: i32) -> (i32, i32, i32) {
    %c0_i32 = arith.constant 0 : i32
    %c0_i32_0 = arith.constant 0 : i32
    %c0_i32_1 = arith.constant 0 : i32
    return %arg0, %c0_i32, %c0_i32_0 : i32, i32, i32
  }
}

module attributes {stable_mosaic.version = 11 : i64} {
  func.func @_residual_bn_kernel(%arg0: i32, %arg1: memref<8x128xbf16, #tpu.memory_space<vmem>>, %arg2: memref<1x128xf32, #tpu.memory_space<vmem>>, %arg3: memref<1x128xf32, #tpu.memory_space<vmem>>, %arg4: memref<8x128xbf16, #tpu.memory_space<vmem>>, %arg5: memref<1x128xf32, #tpu.memory_space<vmem>>, %arg6: memref<1x128xf32, #tpu.memory_space<vmem>>, %arg7: memref<8x128xf32, #tpu.memory_space<vmem>>) attributes {dimension_semantics = [#tpu.dimension_semantics<parallel>], iteration_bounds = array<i64: 1>, scalar_prefetch = 0 : i64, scratch_operands = 0 : i64, tpu.core_type = #tpu.core_type<tc>, window_params = [{transform_indices = @transform_0, window_bounds = array<i64: 8, 128>}, {pipeline_mode = #tpu.pipeline_mode<synchronous>, transform_indices = @transform_1, window_bounds = array<i64: 1, 128>}, {pipeline_mode = #tpu.pipeline_mode<synchronous>, transform_indices = @transform_2, window_bounds = array<i64: 1, 128>}, {transform_indices = @transform_3, window_bounds = array<i64: 8, 128>}, {pipeline_mode = #tpu.pipeline_mode<synchronous>, transform_indices = @transform_4, window_bounds = array<i64: 1, 128>}, {pipeline_mode = #tpu.pipeline_mode<synchronous>, transform_indices = @transform_5, window_bounds = array<i64: 1, 128>}, {transform_indices = @transform_6, window_bounds = array<i64: 8, 128>}]} {
    %c0 = arith.constant 0 : index
    %c0_0 = arith.constant 0 : index
    %0 = vector.load %arg4[%c0, %c0_0] : memref<8x128xbf16, #tpu.memory_space<vmem>>, vector<8x128xbf16>
    %c0_1 = arith.constant 0 : index
    %c0_2 = arith.constant 0 : index
    %1 = vector.load %arg5[%c0_1, %c0_2] : memref<1x128xf32, #tpu.memory_space<vmem>>, vector<1x128xf32>
    %2 = arith.extf %0 : vector<8x128xbf16> to vector<8x128xf32>
    %3 = vector.broadcast %1 : vector<1x128xf32> to vector<8x128xf32>
    %4 = arith.mulf %2, %3 : vector<8x128xf32>
    %c0_3 = arith.constant 0 : index
    %c0_4 = arith.constant 0 : index
    %5 = vector.load %arg6[%c0_3, %c0_4] : memref<1x128xf32, #tpu.memory_space<vmem>>, vector<1x128xf32>
    %6 = vector.broadcast %5 : vector<1x128xf32> to vector<8x128xf32>
    %7 = arith.addf %4, %6 : vector<8x128xf32>
    %c0_5 = arith.constant 0 : index
    %c0_6 = arith.constant 0 : index
    %8 = vector.load %arg1[%c0_5, %c0_6] : memref<8x128xbf16, #tpu.memory_space<vmem>>, vector<8x128xbf16>
    %c0_7 = arith.constant 0 : index
    %c0_8 = arith.constant 0 : index
    %9 = vector.load %arg2[%c0_7, %c0_8] : memref<1x128xf32, #tpu.memory_space<vmem>>, vector<1x128xf32>
    %10 = arith.extf %8 : vector<8x128xbf16> to vector<8x128xf32>
    %11 = vector.broadcast %9 : vector<1x128xf32> to vector<8x128xf32>
    %12 = arith.mulf %10, %11 : vector<8x128xf32>
    %c0_9 = arith.constant 0 : index
    %c0_10 = arith.constant 0 : index
    %13 = vector.load %arg3[%c0_9, %c0_10] : memref<1x128xf32, #tpu.memory_space<vmem>>, vector<1x128xf32>
    %14 = vector.broadcast %13 : vector<1x128xf32> to vector<8x128xf32>
    %15 = arith.addf %12, %14 : vector<8x128xf32>
    %16 = arith.addf %15, %7 : vector<8x128xf32>
    %cst = arith.constant 0.000000e+00 : f32
    %17 = vector.broadcast %cst : f32 to vector<8x128xf32>
    %18 = arith.maximumf %16, %17 : vector<8x128xf32>
    %c0_11 = arith.constant 0 : index
    %c0_12 = arith.constant 0 : index
    %19 = vector.load %arg7[%c0_11, %c0_12] : memref<8x128xf32, #tpu.memory_space<vmem>>, vector<8x128xf32>
    tpu.vector_store %arg7[%c0_11, %c0_12], %18 {strides = array<i32>} : memref<8x128xf32, #tpu.memory_space<vmem>>, vector<8x128xf32>,
    return
  }
  func.func @transform_0(%arg0: i32) -> (i32, i32) {
    %c0_i32 = arith.constant 0 : i32
    %c0_i32_0 = arith.constant 0 : i32
    return %arg0, %c0_i32 : i32, i32
  }
  func.func @transform_1(%arg0: i32) -> (i32, i32) {
    %c0_i32 = arith.constant 0 : i32
    %c0_i32_0 = arith.constant 0 : i32
    %c0_i32_1 = arith.constant 0 : i32
    return %c0_i32, %c0_i32_0 : i32, i32
  }
  func.func @transform_2(%arg0: i32) -> (i32, i32) {
    %c0_i32 = arith.constant 0 : i32
    %c0_i32_0 = arith.constant 0 : i32
    %c0_i32_1 = arith.constant 0 : i32
    return %c0_i32, %c0_i32_0 : i32, i32
  }
  func.func @transform_3(%arg0: i32) -> (i32, i32) {
    %c0_i32 = arith.constant 0 : i32
    %c0_i32_0 = arith.constant 0 : i32
    return %arg0, %c0_i32 : i32, i32
  }
  func.func @transform_4(%arg0: i32) -> (i32, i32) {
    %c0_i32 = arith.constant 0 : i32
    %c0_i32_0 = arith.constant 0 : i32
    %c0_i32_1 = arith.constant 0 : i32
    return %c0_i32, %c0_i32_0 : i32, i32
  }
  func.func @transform_5(%arg0: i32) -> (i32, i32) {
    %c0_i32 = arith.constant 0 : i32
    %c0_i32_0 = arith.constant 0 : i32
    %c0_i32_1 = arith.constant 0 : i32
    return %c0_i32, %c0_i32_0 : i32, i32
  }
  func.func @transform_6(%arg0: i32) -> (i32, i32) {
    %c0_i32 = arith.constant 0 : i32
    %c0_i32_0 = arith.constant 0 : i32
    return %arg0, %c0_i32 : i32, i32
  }
}

</mosaic_0001>

<llo_original>
// kernel: basic_block_forward.6
$region0: #{basic_block_forward.6}
  #allocation0 [shape = 'u32[]', space=smem, size = 0x4, offset = 0x4, fixed_abs, tag = 'smem constant byte address 0x4 - core index']
  #allocation1 [shape = 'u32[144,128]{1,0:T(1,128)}', space=vmem, size = 0x12000, scoped, tag = 'internal scratch']
  %s0 = inlined_call_operand.vmem [shape: bf16[8,128], index: 0, kind: input, shape index: {}]
  %s1 = inlined_call_operand.vmem [shape: f32[1,128], index: 1, kind: input, shape index: {}]
  %s2 = inlined_call_operand.vmem [shape: f32[1,128], index: 2, kind: input, shape index: {}]
  %s3 = inlined_call_operand.vmem [shape: bf16[8,128], index: 3, kind: output, shape index: {}]
  %s4 = sld [smem:[#allocation0]]
  $region22: #{basic_block_forward.6} parent=0
    _
  %s6 = ssub.s32 1, %s4
  %s7 = scalar_select 0, %s6, %s4
  // Predicated region
  $region2: #{basic_block_forward.6} parent=0 // pred_check
    _
  $region3: #{basic_block_forward.6} parent=0 // pred_check_branch
    %9 = sbr.rel (0) target = $region5
  $region4: #{basic_block_forward.6} parent=0 // pred_region
    _
  $region5: #{basic_block_forward.6} parent=0 // pred_fallthru
    _
  // Predicated region
  $region6: #{basic_block_forward.6} parent=0 // pred_check
    _
  $region7: #{basic_block_forward.6} parent=0 // pred_check_branch
    %11 = sbr.rel (0) target = $region9
  $region8: #{basic_block_forward.6} parent=0 // pred_region
    _
  $region9: #{basic_block_forward.6} parent=0 // pred_fallthru
    _
  // Predicated region
  $region10: #{basic_block_forward.6} parent=0 // pred_check
    _
  $region11: #{basic_block_forward.6} parent=0 // pred_check_branch
    %13 = sbr.rel (0) target = $region13
  $region12: #{basic_block_forward.6} parent=0 // pred_region
    _
  $region13: #{basic_block_forward.6} parent=0 // pred_fallthru
    _
  %v14 = vld [vmem:[%s0] sm:$0xf]
  %v15 = vld [vmem:[%s1] sm:$0x1]
  %v16 = vunpack.c.l.bf16 %v14
  %v18 = vlaneseq
  %v19 = vshrl.u32 %v18, 7
  %v20 = vsub.s32 0, %v19
  %v21 = vrot.slane %v15, %v20
  %v23 = vmul.f32 %v16, %v21
  %v24 = vld [vmem:[%s2] sm:$0x1]
  %v26 = vlaneseq
  %v27 = vshrl.u32 %v26, 7
  %v28 = vsub.s32 0, %v27
  %v29 = vrot.slane %v24, %v28
  %v31 = vadd.f32 %v23, %v29
  %v32 = vmax.f32 %v31, 0.0
  %v33 = vpack.c.bf16 %v32, %v32
  %34 = vst [vmem:[%s3] sm:$0xf] %v33
  // Predicated region
  $region14: #{basic_block_forward.6} parent=0 // pred_check
    _
  $region15: #{basic_block_forward.6} parent=0 // pred_check_branch
    %36 = sbr.rel (0) target = $region17
  $region16: #{basic_block_forward.6} parent=0 // pred_region
    _
  $region17: #{basic_block_forward.6} parent=0 // pred_fallthru
    _
  // Predicated region
  $region18: #{basic_block_forward.6} parent=0 // pred_check
    _
  $region19: #{basic_block_forward.6} parent=0 // pred_check_branch
    %38 = sbr.rel (0) target = $region21
  $region20: #{basic_block_forward.6} parent=0 // pred_region
    _
  $region21: #{basic_block_forward.6} parent=0 // pred_fallthru
    _

// kernel: basic_block_forward.5
$region0: #{basic_block_forward.5}
  #allocation0 [shape = 'u32[]', space=smem, size = 0x4, offset = 0x4, fixed_abs, tag = 'smem constant byte address 0x4 - core index']
  #allocation1 [shape = 'u32[144,128]{1,0:T(1,128)}', space=vmem, size = 0x12000, scoped, tag = 'internal scratch']
  %s0 = inlined_call_operand.vmem [shape: bf16[128,36], index: 0, kind: input, shape index: {}]
  %s1 = inlined_call_operand.vmem [shape: bf16[36,8], index: 1, kind: input, shape index: {}]
  %s2 = inlined_call_operand.vmem [shape: bf16[128,8], index: 2, kind: output, shape index: {0}]
  %s3 = inlined_call_operand.vmem [shape: f32[1,1,8], index: 3, kind: output, shape index: {1}]
  %s4 = inlined_call_operand.vmem [shape: f32[1,1,8], index: 4, kind: output, shape index: {2}]
  %5 = xla_tuple %s2, %s3, %s4
  %s6 = sld [smem:[#allocation0]]
  $region38: #{basic_block_forward.5} parent=0
    _
  %s8 = ssub.s32 1, %s6
  %s9 = scalar_select 0, %s8, %s6
  // Predicated region
  $region2: #{basic_block_forward.5} parent=0 // pred_check
    _
  $region3: #{basic_block_forward.5} parent=0 // pred_check_branch
    %11 = sbr.rel (0) target = $region5
  $region4: #{basic_block_forward.5} parent=0 // pred_region
    %s12 = sadd.s32 0, 0
    %s13 = smul.u32 16, %s12
    %p14 = scmp.lt.s32.totalorder %s13, 15
    %s15 = scalar_select %p14, %s13, 15
    %s16 = smul.addr %s15, 4
    %s17 = scalar_lea.vmem %s0, %s16
    %s18 = sadd.s32 0, 0
    %s19 = smul.u32 16, %s18
  $region5: #{basic_block_forward.5} parent=0 // pred_fallthru
    _
  // Predicated region
  $region6: #{basic_block_forward.5} parent=0 // pred_check
    _
  $region7: #{basic_block_forward.5} parent=0 // pred_check_branch
    %21 = sbr.rel (0) target = $region9
  $region8: #{basic_block_forward.5} parent=0 // pred_region
    _
  $region9: #{basic_block_forward.5} parent=0 // pred_fallthru
    _
  %s22 = sadd.s32 0, 0
  %s23 = smul.u32 16, %s22
  %p24 = scmp.lt.s32.totalorder %s23, 15
  %s25 = scalar_select %p24, %s23, 15
  %s26 = smul.addr %s25, 4
  %s27 = scalar_lea.vmem %s0, %s26
  %s28 = sadd.s32 0, 0
  %s29 = smul.u32 16, %s28
  %p30 = scmp.lt.s32.totalorder %s29, 15
  %s31 = scalar_select %p30, %s29, 15
  %s32 = smul.addr %s31, 4
  %s33 = scalar_lea.vmem %s2, %s32
  %s34 = sadd.s32 0, 0
  %s35 = smul.u32 16, %s34
  %p36 = scmp.lt.s32.totalorder %s35, 15
  %s37 = scalar_select %p36, %s35, 15
  %s38 = smul.addr %s37, 4
  %s39 = scalar_lea.vmem %s0, %s38
  %s40 = sadd.s32 0, 0
  %s41 = smul.u32 16, %s40
  %s42 = sadd.s32 0, 0
  %s43 = smul.u32 16, %s42
  %p44 = scmp.lt.s32.totalorder %s43, 15
  %s45 = scalar_select %p44, %s43, 15
  %s46 = smul.addr %s45, 4
  %s47 = scalar_lea.vmem %s2, %s46
  %s48 = sadd.s32 0, 0
  %s49 = smul.u32 16, %s48
  %p51 = scmp.eq.s32.totalorder 0, 0
  // Predicated region
  $region10: #{basic_block_forward.5} parent=0 // pred_check
    %p52 = pneg %p51
  $region11: #{basic_block_forward.5} parent=0 // pred_check_branch
    %54 = sbr.rel (%p52) target = $region13
  $region12: #{basic_block_forward.5} parent=0 // pred_region
    %vm55 = vcmask 57344
    %56 = vst.msk [vmem:[%s3] sm:$0x1] %vm55, 0.0
    %57 = vst.msk [vmem:[%s4] sm:$0x1] %vm55, 0.0
  $region13: #{basic_block_forward.5} parent=0 // pred_fallthru
    _
  %v58 = vld [vmem:[%s39] sm:$0xf]
  %v59 = vld [vmem:[%s39 + $0x4] sm:$0xf]
  %v60 = vld [vmem:[%s39 + $0x8] sm:$0xf]
  %v61 = vld [vmem:[%s39 + $0xc] sm:$0xf]
  %v62 = vld [vmem:[%s39 + $0x10] sm:$0xf]
  %v63 = vld [vmem:[%s39 + $0x14] sm:$0xf]
  %v64 = vld [vmem:[%s39 + $0x18] sm:$0xf]
  %v65 = vld [vmem:[%s39 + $0x1c] sm:$0xf]
  %v66 = vld [vmem:[%s39 + $0x20] sm:$0xf]
  %v67 = vld [vmem:[%s39 + $0x24] sm:$0xf]
  %v68 = vld [vmem:[%s39 + $0x28] sm:$0xf]
  %v69 = vld [vmem:[%s39 + $0x2c] sm:$0xf]
  %v70 = vld [vmem:[%s39 + $0x30] sm:$0xf]
  %v71 = vld [vmem:[%s39 + $0x34] sm:$0xf]
  %v72 = vld [vmem:[%s39 + $0x38] sm:$0xf]
  %v73 = vld [vmem:[%s39 + $0x3c] sm:$0xf]
  %v74 = vld [vmem:[%s1] sm:$0xf]
  %v75 = vld [vmem:[%s1 + $0x4] sm:$0xf]
  %v76 = vld [vmem:[%s1 + $0x8] sm:$0xf]
  %v77 = vld [vmem:[%s1 + $0xc] sm:$0xf]
  %v78 = vld [vmem:[%s1 + $0x10] sm:$0x3]
  %v95 = vunpack.c.l.b16 %v58
  %v96 = vunpack.c.l.b16 %v59
  %v97 = vunpack.c.l.b16 %v60
  %v98 = vunpack.c.l.b16 %v61
  %v99 = vunpack.c.l.b16 %v62
  %v100 = vunpack.c.l.b16 %v63
  %v101 = vunpack.c.l.b16 %v64
  %v102 = vunpack.c.l.b16 %v65
  %v103 = vunpack.c.l.b16 %v66
  %v104 = vunpack.c.l.b16 %v67
  %v105 = vunpack.c.l.b16 %v68
  %v106 = vunpack.c.l.b16 %v69
  %v107 = vunpack.c.l.b16 %v70
  %v108 = vunpack.c.l.b16 %v71
  %v109 = vunpack.c.l.b16 %v72
  %v110 = vunpack.c.l.b16 %v73
  %v111 = vpack.c.b16 %v96, %v95
  %v112 = vpack.c.b16 %v98, %v97
  %v113 = vpack.c.b16 %v100, %v99
  %v114 = vpack.c.b16 %v102, %v101
  %v115 = vpack.c.b16 %v104, %v103
  %v116 = vpack.c.b16 %v106, %v105
  %v117 = vpack.c.b16 %v108, %v107
  %v118 = vpack.c.b16 %v110, %v109
  %v124 = vunpack.c.l.b16 %v74
  %v125 = vunpack.c.l.b16 %v75
  %v126 = vunpack.c.l.b16 %v76
  %v127 = vunpack.c.l.b16 %v77
  %v128 = vunpack.c.l.b16 %v78
  %v129 = vpack.c.b16 %v125, %v124
  %v130 = vpack.c.b16 %v127, %v126
  %v131 = vpack.c.b16 %v128, %v128
  %vm134 = vcmask 293888
  %v136 = vsel %vm134, %v111, 0
  %v139 = vsel %vm134, %v112, 0
  %v142 = vsel %vm134, %v113, 0
  %v145 = vsel %vm134, %v114, 0
  %v148 = vsel %vm134, %v115, 0
  %v151 = vsel %vm134, %v116, 0
  %v154 = vsel %vm134, %v117, 0
  %v157 = vsel %vm134, %v118, 0
  %vm159 = vcmask 1041408
  %v161 = vsel %vm159, %v131, 0
  %163 = vmatprep.subr.bf16.mxu0 0
  %164 = vmatpush1.bf16.msra.mxu0 %v129
  %165 = vmatprep.subr.bf16.mxu0 0
  %166 = vmatpush1.bf16.msra.mxu0 %v130
  %167 = vmatprep.subr.bf16.mxu0 0
  %168 = vmatpush1.bf16.msra.mxu0 %v161
  %169 = vmatprep.subr.bf16.mxu0 0
  %170 = vmatpush1.bf16.msra.mxu0 0
  %171 = vmatprep.subr.bf16.mxu0 0
  %172 = vmatpush1.bf16.msra.mxu0 0
  %173 = vmatprep.subr.bf16.mxu0 0
  %174 = vmatpush1.bf16.msra.mxu0 0
  %175 = vmatprep.subr.bf16.mxu0 0
  %176 = vmatpush1.bf16.msra.mxu0 0
  %177 = vmatprep.subr.bf16.mxu0 0
  %178 = vmatpush1.bf16.msra.mxu0 0
  %179 = vmatprep.subr.bf16.mxu0 0
  %180 = vmatpush1.bf16.msra.mxu0 0
  %181 = vmatprep.subr.bf16.mxu0 0
  %182 = vmatpush1.bf16.msra.mxu0 0
  %183 = vmatprep.subr.bf16.mxu0 0
  %184 = vmatpush1.bf16.msra.mxu0 0
  %185 = vmatprep.subr.bf16.mxu0 0
  %186 = vmatpush1.bf16.msra.mxu0 0
  %187 = vmatprep.subr.bf16.mxu0 0
  %188 = vmatpush1.bf16.msra.mxu0 0
  %189 = vmatprep.subr.bf16.mxu0 0
  %190 = vmatpush1.bf16.msra.mxu0 0
  %191 = vmatprep.subr.bf16.mxu0 0
  %192 = vmatpush1.bf16.msra.mxu0 0
  %193 = vmatprep.subr.bf16.mxu0 0
  %194 = vmatpush1.bf16.msra.mxu0 0
  %195 = vmatprep.mubr.bf16.mxu0 0
  %196 = vmatmul.mubr.bf16.gmra.mrb[0].mxu0 %v136
  %v197 = vpop.f32.mrb[0].mxu0
  %v198 = vadd.f32 0.0, %v197
  %v199 = vpop.f32.mrb[0].mxu0
  %v200 = vpop.f32.mrb[0].mxu0
  %v201 = vadd.f32 0.0, %v200
  %v202 = vpop.f32.mrb[0].mxu0
  %203 = vmatprep.mubr.bf16.mxu0 0
  %204 = vmatmul.mubr.bf16.gmra.mrb[0].mxu0 %v139
  %v205 = vpop.f32.mrb[0].mxu0
  %v206 = vadd.f32 0.0, %v205
  %v207 = vpop.f32.mrb[0].mxu0
  %v208 = vpop.f32.mrb[0].mxu0
  %v209 = vadd.f32 0.0, %v208
  %v210 = vpop.f32.mrb[0].mxu0
  %211 = vmatprep.mubr.bf16.mxu0 0
  %212 = vmatmul.mubr.bf16.gmra.mrb[0].mxu0 %v142
  %v213 = vpop.f32.mrb[0].mxu0
  %v214 = vadd.f32 0.0, %v213
  %v215 = vpop.f32.mrb[0].mxu0
  %v216 = vpop.f32.mrb[0].mxu0
  %v217 = vadd.f32 0.0, %v216
  %v218 = vpop.f32.mrb[0].mxu0
  %219 = vmatprep.mubr.bf16.mxu0 0
  %220 = vmatmul.mubr.bf16.gmra.mrb[0].mxu0 %v145
  %v221 = vpop.f32.mrb[0].mxu0
  %v222 = vadd.f32 0.0, %v221
  %v223 = vpop.f32.mrb[0].mxu0
  %v224 = vpop.f32.mrb[0].mxu0
  %v225 = vadd.f32 0.0, %v224
  %v226 = vpop.f32.mrb[0].mxu0
  %227 = vmatprep.mubr.bf16.mxu0 0
  %228 = vmatmul.mubr.bf16.gmra.mrb[0].mxu0 %v148
  %v229 = vpop.f32.mrb[0].mxu0
  %v230 = vadd.f32 0.0, %v229
  %v231 = vpop.f32.mrb[0].mxu0
  %v232 = vpop.f32.mrb[0].mxu0
  %v233 = vadd.f32 0.0, %v232
  %v234 = vpop.f32.mrb[0].mxu0
  %235 = vmatprep.mubr.bf16.mxu0 0
  %236 = vmatmul.mubr.bf16.gmra.mrb[0].mxu0 %v151
  %v237 = vpop.f32.mrb[0].mxu0
  %v238 = vadd.f32 0.0, %v237
  %v239 = vpop.f32.mrb[0].mxu0
  %v240 = vpop.f32.mrb[0].mxu0
  %v241 = vadd.f32 0.0, %v240
  %v242 = vpop.f32.mrb[0].mxu0
  %243 = vmatprep.mubr.bf16.mxu0 0
  %244 = vmatmul.mubr.bf16.gmra.mrb[0].mxu0 %v154
  %v245 = vpop.f32.mrb[0].mxu0
  %v246 = vadd.f32 0.0, %v245
  %v247 = vpop.f32.mrb[0].mxu0
  %v248 = vpop.f32.mrb[0].mxu0
  %v249 = vadd.f32 0.0, %v248
  %v250 = vpop.f32.mrb[0].mxu0
  %251 = vmatprep.mubr.bf16.mxu0 0
  %252 = vmatmul.mubr.bf16.gmra.mrb[0].mxu0 %v157
  %v253 = vpop.f32.mrb[0].mxu0
  %v254 = vadd.f32 0.0, %v253
  %v255 = vpop.f32.mrb[0].mxu0
  %v256 = vpop.f32.mrb[0].mxu0
  %v257 = vadd.f32 0.0, %v256
  %v258 = vpop.f32.mrb[0].mxu0
  %259 = vdwg.mxu0
  %v260 = vpack.c.bf16 %v201, %v198
  %v261 = vpack.c.bf16 %v209, %v206
  %v262 = vpack.c.bf16 %v217, %v214
  %v263 = vpack.c.bf16 %v225, %v222
  %v264 = vpack.c.bf16 %v233, %v230
  %v265 = vpack.c.bf16 %v241, %v238
  %v266 = vpack.c.bf16 %v249, %v246
  %v267 = vpack.c.bf16 %v257, %v254
  %v276 = vunpack.c.l.b16 %v260
  %v277 = vunpack.c.h.b16 %v260
  %v278 = vunpack.c.l.b16 %v261
  %v279 = vunpack.c.h.b16 %v261
  %v280 = vunpack.c.l.b16 %v262
  %v281 = vunpack.c.h.b16 %v262
  %v282 = vunpack.c.l.b16 %v263
  %v283 = vunpack.c.h.b16 %v263
  %v284 = vunpack.c.l.b16 %v264
  %v285 = vunpack.c.h.b16 %v264
  %v286 = vunpack.c.l.b16 %v265
  %v287 = vunpack.c.h.b16 %v265
  %v288 = vunpack.c.l.b16 %v266
  %v289 = vunpack.c.h.b16 %v266
  %v290 = vunpack.c.l.b16 %v267
  %v291 = vunpack.c.h.b16 %v267
  %v292 = vpack.c.b16 %v276, %v276
  %v293 = vpack.c.b16 %v277, %v277
  %v294 = vpack.c.b16 %v278, %v278
  %v295 = vpack.c.b16 %v279, %v279
  %v296 = vpack.c.b16 %v280, %v280
  %v297 = vpack.c.b16 %v281, %v281
  %v298 = vpack.c.b16 %v282, %v282
  %v299 = vpack.c.b16 %v283, %v283
  %v300 = vpack.c.b16 %v284, %v284
  %v301 = vpack.c.b16 %v285, %v285
  %v302 = vpack.c.b16 %v286, %v286
  %v303 = vpack.c.b16 %v287, %v287
  %v304 = vpack.c.b16 %v288, %v288
  %v305 = vpack.c.b16 %v289, %v289
  %v306 = vpack.c.b16 %v290, %v290
  %v307 = vpack.c.b16 %v291, %v291
  %vm324 = vcmask 60416
  %325 = vst.msk [vmem:[%s47] sm:$0xf] %vm324, %v292
  %326 = vst.msk [vmem:[%s47 + $0x4] sm:$0xf] %vm324, %v293
  %327 = vst.msk [vmem:[%s47 + $0x8] sm:$0xf] %vm324, %v294
  %328 = vst.msk [vmem:[%s47 + $0xc] sm:$0xf] %vm324, %v295
  %329 = vst.msk [vmem:[%s47 + $0x10] sm:$0xf] %vm324, %v296
  %330 = vst.msk [vmem:[%s47 + $0x14] sm:$0xf] %vm324, %v297
  %331 = vst.msk [vmem:[%s47 + $0x18] sm:$0xf] %vm324, %v298
  %332 = vst.msk [vmem:[%s47 + $0x1c] sm:$0xf] %vm324, %v299
  %333 = vst.msk [vmem:[%s47 + $0x20] sm:$0xf] %vm324, %v300
  %334 = vst.msk [vmem:[%s47 + $0x24] sm:$0xf] %vm324, %v301
  %335 = vst.msk [vmem:[%s47 + $0x28] sm:$0xf] %vm324, %v302
  %336 = vst.msk [vmem:[%s47 + $0x2c] sm:$0xf] %vm324, %v303
  %337 = vst.msk [vmem:[%s47 + $0x30] sm:$0xf] %vm324, %v304
  %338 = vst.msk [vmem:[%s47 + $0x34] sm:$0xf] %vm324, %v305
  %339 = vst.msk [vmem:[%s47 + $0x38] sm:$0xf] %vm324, %v306
  %340 = vst.msk [vmem:[%s47 + $0x3c] sm:$0xf] %vm324, %v307
  %v341 = vld [vmem:[%s3] sm:$0x1]
  %vm342 = vcmask 64512
  %v343 = vsel %vm342, %v198, 0.0
  %v344 = vsel %vm342, %v201, 0.0
  %v345 = vadd.f32 %v343, %v344
  %v346 = vsel %vm342, %v206, 0.0
  %v347 = vadd.f32 %v345, %v346
  %v348 = vsel %vm342, %v209, 0.0
  %v349 = vadd.f32 %v347, %v348
  %v350 = vsel %vm342, %v214, 0.0
  %v351 = vadd.f32 %v349, %v350
  %v352 = vsel %vm342, %v217, 0.0
  %v353 = vadd.f32 %v351, %v352
  %v354 = vsel %vm342, %v222, 0.0
  %v355 = vadd.f32 %v353, %v354
  %v356 = vsel %vm342, %v225, 0.0
  %v357 = vadd.f32 %v355, %v356
  %v358 = vsel %vm342, %v230, 0.0
  %v359 = vadd.f32 %v357, %v358
  %v360 = vsel %vm342, %v233, 0.0
  %v361 = vadd.f32 %v359, %v360
  %v362 = vsel %vm342, %v238, 0.0
  %v363 = vadd.f32 %v361, %v362
  %v364 = vsel %vm342, %v241, 0.0
  %v365 = vadd.f32 %v363, %v364
  %v366 = vsel %vm342, %v246, 0.0
  %v367 = vadd.f32 %v365, %v366
  %v368 = vsel %vm342, %v249, 0.0
  %v369 = vadd.f32 %v367, %v368
  %v370 = vsel %vm342, %v254, 0.0
  %v371 = vadd.f32 %v369, %v370
  %v372 = vsel %vm342, %v257, 0.0
  %v373 = vadd.f32 %v371, %v372
  %v374 = vrot.slane %v373, 4
  %v375 = vadd.f32 %v373, %v374
  %v376 = vrot.slane %v375, 2
  %v377 = vadd.f32 %v375, %v376
  %v378 = vrot.slane %v377, 1
  %v379 = vadd.f32 %v377, %v378
  %v380 = vadd.f32 %v341, %v379
  %vm381 = vcmask 57344
  %382 = vst.msk [vmem:[%s3] sm:$0x1] %vm381, %v380
  %v383 = vld [vmem:[%s4] sm:$0x1]
  %v384 = vmul.f32 %v198, %v198
  %v385 = vmul.f32 %v201, %v201
  %v386 = vmul.f32 %v206, %v206
  %v387 = vmul.f32 %v209, %v209
  %v388 = vmul.f32 %v214, %v214
  %v389 = vmul.f32 %v217, %v217
  %v390 = vmul.f32 %v222, %v222
  %v391 = vmul.f32 %v225, %v225
  %v392 = vmul.f32 %v230, %v230
  %v393 = vmul.f32 %v233, %v233
  %v394 = vmul.f32 %v238, %v238
  %v395 = vmul.f32 %v241, %v241
  %v396 = vmul.f32 %v246, %v246
  %v397 = vmul.f32 %v249, %v249
  %v398 = vmul.f32 %v254, %v254
  %v399 = vmul.f32 %v257, %v257
  %v400 = vsel %vm342, %v384, 0.0
  %v401 = vsel %vm342, %v385, 0.0
  %v402 = vadd.f32 %v400, %v401
  %v403 = vsel %vm342, %v386, 0.0
  %v404 = vadd.f32 %v402, %v403
  %v405 = vsel %vm342, %v387, 0.0
  %v406 = vadd.f32 %v404, %v405
  %v407 = vsel %vm342, %v388, 0.0
  %v408 = vadd.f32 %v406, %v407
  %v409 = vsel %vm342, %v389, 0.0
  %v410 = vadd.f32 %v408, %v409
  %v411 = vsel %vm342, %v390, 0.0
  %v412 = vadd.f32 %v410, %v411
  %v413 = vsel %vm342, %v391, 0.0
  %v414 = vadd.f32 %v412, %v413
  %v415 = vsel %vm342, %v392, 0.0
  %v416 = vadd.f32 %v414, %v415
  %v417 = vsel %vm342, %v393, 0.0
  %v418 = vadd.f32 %v416, %v417
  %v419 = vsel %vm342, %v394, 0.0
  %v420 = vadd.f32 %v418, %v419
  %v421 = vsel %vm342, %v395, 0.0
  %v422 = vadd.f32 %v420, %v421
  %v423 = vsel %vm342, %v396, 0.0
  %v424 = vadd.f32 %v422, %v423
  %v425 = vsel %vm342, %v397, 0.0
  %v426 = vadd.f32 %v424, %v425
  %v427 = vsel %vm342, %v398, 0.0
  %v428 = vadd.f32 %v426, %v427
  %v429 = vsel %vm342, %v399, 0.0
  %v430 = vadd.f32 %v428, %v429
  %v431 = vrot.slane %v430, 4
  %v432 = vadd.f32 %v430, %v431
  %v433 = vrot.slane %v432, 2
  %v434 = vadd.f32 %v432, %v433
  %v435 = vrot.slane %v434, 1
  %v436 = vadd.f32 %v434, %v435
  %v437 = vadd.f32 %v383, %v436
  %438 = vst.msk [vmem:[%s4] sm:$0x1] %vm381, %v437
  %s439 = sadd.s32 0, 0
  %s440 = smul.u32 16, %s439
  %p441 = scmp.lt.s32.totalorder %s440, 15
  %s442 = scalar_select %p441, %s440, 15
  %s443 = smul.addr %s442, 4
  %s444 = scalar_lea.vmem %s2, %s443
  // Predicated region
  $region14: #{basic_block_forward.5} parent=0 // pred_check
    _
  $region15: #{basic_block_forward.5} parent=0 // pred_check_branch
    %446 = sbr.rel (0) target = $region17
  $region16: #{basic_block_forward.5} parent=0 // pred_region
    %s447 = sadd.s32 0, 0
    %s448 = smul.u32 16, %s447
  $region17: #{basic_block_forward.5} parent=0 // pred_fallthru
    _
  // Predicated region
  $region18: #{basic_block_forward.5} parent=0 // pred_check
    _
  $region19: #{basic_block_forward.5} parent=0 // pred_check_branch
    %450 = sbr.rel (0) target = $region21
  $region20: #{basic_block_forward.5} parent=0 // pred_region
    _
  $region21: #{basic_block_forward.5} parent=0 // pred_fallthru
    _
  // Predicated region
  $region22: #{basic_block_forward.5} parent=0 // pred_check
    _
  $region23: #{basic_block_forward.5} parent=0 // pred_check_branch
    %452 = sbr.rel (0) target = $region25
  $region24: #{basic_block_forward.5} parent=0 // pred_region
    _
  $region25: #{basic_block_forward.5} parent=0 // pred_fallthru
    _
  // Predicated region
  $region26: #{basic_block_forward.5} parent=0 // pred_check
    _
  $region27: #{basic_block_forward.5} parent=0 // pred_check_branch
    %454 = sbr.rel (0) target = $region29
  $region28: #{basic_block_forward.5} parent=0 // pred_region
    %s455 = sadd.s32 0, 0
    %s456 = smul.u32 16, %s455
    %p457 = scmp.lt.s32.totalorder %s456, 15
    %s458 = scalar_select %p457, %s456, 15
    %s459 = smul.addr %s458, 4
    %s460 = scalar_lea.vmem %s2, %s459
  $region29: #{basic_block_forward.5} parent=0 // pred_fallthru
    _
  // Predicated region
  $region30: #{basic_block_forward.5} parent=0 // pred_check
    _
  $region31: #{basic_block_forward.5} parent=0 // pred_check_branch
    %462 = sbr.rel (0) target = $region33
  $region32: #{basic_block_forward.5} parent=0 // pred_region
    _
  $region33: #{basic_block_forward.5} parent=0 // pred_fallthru
    _
  // Predicated region
  $region34: #{basic_block_forward.5} parent=0 // pred_check
    _
  $region35: #{basic_block_forward.5} parent=0 // pred_check_branch
    %464 = sbr.rel (0) target = $region37
  $region36: #{basic_block_forward.5} parent=0 // pred_region
    _
  $region37: #{basic_block_forward.5} parent=0 // pred_fallthru
    _

// kernel: basic_block_forward.9
$region0: #{basic_block_forward.9}
  #allocation0 [shape = 'u32[]', space=smem, size = 0x4, offset = 0x4, fixed_abs, tag = 'smem constant byte address 0x4 - core index']
  #allocation1 [shape = 'u32[144,128]{1,0:T(1,128)}', space=vmem, size = 0x12000, scoped, tag = 'internal scratch']
  %s0 = inlined_call_operand.vmem [shape: bf16[8,128], index: 0, kind: input, shape index: {}]
  %s1 = inlined_call_operand.vmem [shape: f32[1,128], index: 1, kind: input, shape index: {}]
  %s2 = inlined_call_operand.vmem [shape: f32[1,128], index: 2, kind: input, shape index: {}]
  %s3 = inlined_call_operand.vmem [shape: bf16[8,128], index: 3, kind: input, shape index: {}]
  %s4 = inlined_call_operand.vmem [shape: f32[1,128], index: 4, kind: input, shape index: {}]
  %s5 = inlined_call_operand.vmem [shape: f32[1,128], index: 5, kind: input, shape index: {}]
  %s6 = inlined_call_operand.vmem [shape: f32[8,128], index: 6, kind: output, shape index: {}]
  %s7 = sld [smem:[#allocation0]]
  $region34: #{basic_block_forward.9} parent=0
    _
  %s9 = ssub.s32 1, %s7
  %s10 = scalar_select 0, %s9, %s7
  // Predicated region
  $region2: #{basic_block_forward.9} parent=0 // pred_check
    _
  $region3: #{basic_block_forward.9} parent=0 // pred_check_branch
    %12 = sbr.rel (0) target = $region5
  $region4: #{basic_block_forward.9} parent=0 // pred_region
    _
  $region5: #{basic_block_forward.9} parent=0 // pred_fallthru
    _
  // Predicated region
  $region6: #{basic_block_forward.9} parent=0 // pred_check
    _
  $region7: #{basic_block_forward.9} parent=0 // pred_check_branch
    %14 = sbr.rel (0) target = $region9
  $region8: #{basic_block_forward.9} parent=0 // pred_region
    _
  $region9: #{basic_block_forward.9} parent=0 // pred_fallthru
    _
  // Predicated region
  $region10: #{basic_block_forward.9} parent=0 // pred_check
    _
  $region11: #{basic_block_forward.9} parent=0 // pred_check_branch
    %16 = sbr.rel (0) target = $region13
  $region12: #{basic_block_forward.9} parent=0 // pred_region
    _
  $region13: #{basic_block_forward.9} parent=0 // pred_fallthru
    _
  // Predicated region
  $region14: #{basic_block_forward.9} parent=0 // pred_check
    _
  $region15: #{basic_block_forward.9} parent=0 // pred_check_branch
    %18 = sbr.rel (0) target = $region17
  $region16: #{basic_block_forward.9} parent=0 // pred_region
    _
  $region17: #{basic_block_forward.9} parent=0 // pred_fallthru
    _
  // Predicated region
  $region18: #{basic_block_forward.9} parent=0 // pred_check
    _
  $region19: #{basic_block_forward.9} parent=0 // pred_check_branch
    %20 = sbr.rel (0) target = $region21
  $region20: #{basic_block_forward.9} parent=0 // pred_region
    _
  $region21: #{basic_block_forward.9} parent=0 // pred_fallthru
    _
  // Predicated region
  $region22: #{basic_block_forward.9} parent=0 // pred_check
    _
  $region23: #{basic_block_forward.9} parent=0 // pred_check_branch
    %22 = sbr.rel (0) target = $region25
  $region24: #{basic_block_forward.9} parent=0 // pred_region
    _
  $region25: #{basic_block_forward.9} parent=0 // pred_fallthru
    _
  %v23 = vld [vmem:[%s3] sm:$0xf]
  %v24 = vld [vmem:[%s4] sm:$0x1]
  %v25 = vunpack.c.l.bf16 %v23
  %v27 = vlaneseq
  %v28 = vshrl.u32 %v27, 7
  %v29 = vsub.s32 0, %v28
  %v30 = vrot.slane %v24, %v29
  %v32 = vmul.f32 %v25, %v30
  %v33 = vld [vmem:[%s5] sm:$0x1]
  %v35 = vlaneseq
  %v36 = vshrl.u32 %v35, 7
  %v37 = vsub.s32 0, %v36
  %v38 = vrot.slane %v33, %v37
  %v40 = vadd.f32 %v32, %v38
  %v41 = vld [vmem:[%s0] sm:$0xf]
  %v42 = vld [vmem:[%s1] sm:$0x1]
  %v43 = vunpack.c.l.bf16 %v41
  %v45 = vlaneseq
  %v46 = vshrl.u32 %v45, 7
  %v47 = vsub.s32 0, %v46
  %v48 = vrot.slane %v42, %v47
  %v50 = vmul.f32 %v43, %v48
  %v51 = vld [vmem:[%s2] sm:$0x1]
  %v53 = vlaneseq
  %v54 = vshrl.u32 %v53, 7
  %v55 = vsub.s32 0, %v54
  %v56 = vrot.slane %v51, %v55
  %v58 = vadd.f32 %v50, %v56
  %v59 = vadd.f32 %v58, %v40
  %v60 = vmax.f32 %v59, 0.0
  %61 = vst [vmem:[%s6] sm:$0xff] %v60
  // Predicated region
  $region26: #{basic_block_forward.9} parent=0 // pred_check
    _
  $region27: #{basic_block_forward.9} parent=0 // pred_check_branch
    %63 = sbr.rel (0) target = $region29
  $region28: #{basic_block_forward.9} parent=0 // pred_region
    _
  $region29: #{basic_block_forward.9} parent=0 // pred_fallthru
    _
  // Predicated region
  $region30: #{basic_block_forward.9} parent=0 // pred_check
    _
  $region31: #{basic_block_forward.9} parent=0 // pred_check_branch
    %65 = sbr.rel (0) target = $region33
  $region32: #{basic_block_forward.9} parent=0 // pred_region
    _
  $region33: #{basic_block_forward.9} parent=0 // pred_fallthru
    _

// kernel: basic_block_forward.8
$region0: #{basic_block_forward.8}
  #allocation0 [shape = 'u32[]', space=smem, size = 0x4, offset = 0x4, fixed_abs, tag = 'smem constant byte address 0x4 - core index']
  #allocation1 [shape = 'u32[144,128]{1,0:T(1,128)}', space=vmem, size = 0x12000, scoped, tag = 'internal scratch']
  %s0 = inlined_call_operand.vmem [shape: bf16[128,4], index: 0, kind: input, shape index: {}]
  %s1 = inlined_call_operand.vmem [shape: bf16[4,8], index: 1, kind: input, shape index: {}]
  %s2 = inlined_call_operand.vmem [shape: bf16[128,8], index: 2, kind: output, shape index: {0}]
  %s3 = inlined_call_operand.vmem [shape: f32[1,1,8], index: 3, kind: output, shape index: {1}]
  %s4 = inlined_call_operand.vmem [shape: f32[1,1,8], index: 4, kind: output, shape index: {2}]
  %5 = xla_tuple %s2, %s3, %s4
  %s6 = sld [smem:[#allocation0]]
  $region38: #{basic_block_forward.8} parent=0
    _
  %s8 = ssub.s32 1, %s6
  %s9 = scalar_select 0, %s8, %s6
  // Predicated region
  $region2: #{basic_block_forward.8} parent=0 // pred_check
    _
  $region3: #{basic_block_forward.8} parent=0 // pred_check_branch
    %11 = sbr.rel (0) target = $region5
  $region4: #{basic_block_forward.8} parent=0 // pred_region
    %s12 = sadd.s32 0, 0
    %s13 = smul.u32 16, %s12
    %p14 = scmp.lt.s32.totalorder %s13, 15
    %s15 = scalar_select %p14, %s13, 15
    %s16 = smul.addr %s15, 4
    %s17 = scalar_lea.vmem %s0, %s16
    %s18 = sadd.s32 0, 0
    %s19 = smul.u32 16, %s18
  $region5: #{basic_block_forward.8} parent=0 // pred_fallthru
    _
  // Predicated region
  $region6: #{basic_block_forward.8} parent=0 // pred_check
    _
  $region7: #{basic_block_forward.8} parent=0 // pred_check_branch
    %21 = sbr.rel (0) target = $region9
  $region8: #{basic_block_forward.8} parent=0 // pred_region
    _
  $region9: #{basic_block_forward.8} parent=0 // pred_fallthru
    _
  %s22 = sadd.s32 0, 0
  %s23 = smul.u32 16, %s22
  %p24 = scmp.lt.s32.totalorder %s23, 15
  %s25 = scalar_select %p24, %s23, 15
  %s26 = smul.addr %s25, 4
  %s27 = scalar_lea.vmem %s0, %s26
  %s28 = sadd.s32 0, 0
  %s29 = smul.u32 16, %s28
  %p30 = scmp.lt.s32.totalorder %s29, 15
  %s31 = scalar_select %p30, %s29, 15
  %s32 = smul.addr %s31, 4
  %s33 = scalar_lea.vmem %s2, %s32
  %s34 = sadd.s32 0, 0
  %s35 = smul.u32 16, %s34
  %p36 = scmp.lt.s32.totalorder %s35, 15
  %s37 = scalar_select %p36, %s35, 15
  %s38 = smul.addr %s37, 4
  %s39 = scalar_lea.vmem %s0, %s38
  %s40 = sadd.s32 0, 0
  %s41 = smul.u32 16, %s40
  %s42 = sadd.s32 0, 0
  %s43 = smul.u32 16, %s42
  %p44 = scmp.lt.s32.totalorder %s43, 15
  %s45 = scalar_select %p44, %s43, 15
  %s46 = smul.addr %s45, 4
  %s47 = scalar_lea.vmem %s2, %s46
  %s48 = sadd.s32 0, 0
  %s49 = smul.u32 16, %s48
  %p51 = scmp.eq.s32.totalorder 0, 0
  // Predicated region
  $region10: #{basic_block_forward.8} parent=0 // pred_check
    %p52 = pneg %p51
  $region11: #{basic_block_forward.8} parent=0 // pred_check_branch
    %54 = sbr.rel (%p52) target = $region13
  $region12: #{basic_block_forward.8} parent=0 // pred_region
    %vm55 = vcmask 57344
    %56 = vst.msk [vmem:[%s3] sm:$0x1] %vm55, 0.0
    %57 = vst.msk [vmem:[%s4] sm:$0x1] %vm55, 0.0
  $region13: #{basic_block_forward.8} parent=0 // pred_fallthru
    _
  %v58 = vld [vmem:[%s39] sm:$0xf]
  %v59 = vld [vmem:[%s39 + $0x4] sm:$0xf]
  %v60 = vld [vmem:[%s39 + $0x8] sm:$0xf]
  %v61 = vld [vmem:[%s39 + $0xc] sm:$0xf]
  %v62 = vld [vmem:[%s39 + $0x10] sm:$0xf]
  %v63 = vld [vmem:[%s39 + $0x14] sm:$0xf]
  %v64 = vld [vmem:[%s39 + $0x18] sm:$0xf]
  %v65 = vld [vmem:[%s39 + $0x1c] sm:$0xf]
  %v66 = vld [vmem:[%s39 + $0x20] sm:$0xf]
  %v67 = vld [vmem:[%s39 + $0x24] sm:$0xf]
  %v68 = vld [vmem:[%s39 + $0x28] sm:$0xf]
  %v69 = vld [vmem:[%s39 + $0x2c] sm:$0xf]
  %v70 = vld [vmem:[%s39 + $0x30] sm:$0xf]
  %v71 = vld [vmem:[%s39 + $0x34] sm:$0xf]
  %v72 = vld [vmem:[%s39 + $0x38] sm:$0xf]
  %v73 = vld [vmem:[%s39 + $0x3c] sm:$0xf]
  %v74 = vld [vmem:[%s1] sm:$0x3]
  %v91 = vunpack.c.l.b16 %v58
  %v92 = vunpack.c.l.b16 %v59
  %v93 = vunpack.c.l.b16 %v60
  %v94 = vunpack.c.l.b16 %v61
  %v95 = vunpack.c.l.b16 %v62
  %v96 = vunpack.c.l.b16 %v63
  %v97 = vunpack.c.l.b16 %v64
  %v98 = vunpack.c.l.b16 %v65
  %v99 = vunpack.c.l.b16 %v66
  %v100 = vunpack.c.l.b16 %v67
  %v101 = vunpack.c.l.b16 %v68
  %v102 = vunpack.c.l.b16 %v69
  %v103 = vunpack.c.l.b16 %v70
  %v104 = vunpack.c.l.b16 %v71
  %v105 = vunpack.c.l.b16 %v72
  %v106 = vunpack.c.l.b16 %v73
  %v107 = vpack.c.b16 %v92, %v91
  %v108 = vpack.c.b16 %v94, %v93
  %v109 = vpack.c.b16 %v96, %v95
  %v110 = vpack.c.b16 %v98, %v97
  %v111 = vpack.c.b16 %v100, %v99
  %v112 = vpack.c.b16 %v102, %v101
  %v113 = vpack.c.b16 %v104, %v103
  %v114 = vpack.c.b16 %v106, %v105
  %vm115 = vcmask 31744
  %v117 = vsel %vm115, %v107, 0
  %v120 = vsel %vm115, %v108, 0
  %v123 = vsel %vm115, %v109, 0
  %v126 = vsel %vm115, %v110, 0
  %v129 = vsel %vm115, %v111, 0
  %v132 = vsel %vm115, %v112, 0
  %v135 = vsel %vm115, %v113, 0
  %v138 = vsel %vm115, %v114, 0
  %vm140 = vcmask 1041408
  %v142 = vsel %vm140, %v74, 0
  %144 = vmatprep.subr.bf16.mxu0 0
  %145 = vmatpush1.bf16.msra.mxu0 %v142
  %146 = vmatprep.subr.bf16.mxu0 0
  %147 = vmatpush1.bf16.msra.mxu0 0
  %148 = vmatprep.subr.bf16.mxu0 0
  %149 = vmatpush1.bf16.msra.mxu0 0
  %150 = vmatprep.subr.bf16.mxu0 0
  %151 = vmatpush1.bf16.msra.mxu0 0
  %152 = vmatprep.subr.bf16.mxu0 0
  %153 = vmatpush1.bf16.msra.mxu0 0
  %154 = vmatprep.subr.bf16.mxu0 0
  %155 = vmatpush1.bf16.msra.mxu0 0
  %156 = vmatprep.subr.bf16.mxu0 0
  %157 = vmatpush1.bf16.msra.mxu0 0
  %158 = vmatprep.subr.bf16.mxu0 0
  %159 = vmatpush1.bf16.msra.mxu0 0
  %160 = vmatprep.subr.bf16.mxu0 0
  %161 = vmatpush1.bf16.msra.mxu0 0
  %162 = vmatprep.subr.bf16.mxu0 0
  %163 = vmatpush1.bf16.msra.mxu0 0
  %164 = vmatprep.subr.bf16.mxu0 0
  %165 = vmatpush1.bf16.msra.mxu0 0
  %166 = vmatprep.subr.bf16.mxu0 0
  %167 = vmatpush1.bf16.msra.mxu0 0
  %168 = vmatprep.subr.bf16.mxu0 0
  %169 = vmatpush1.bf16.msra.mxu0 0
  %170 = vmatprep.subr.bf16.mxu0 0
  %171 = vmatpush1.bf16.msra.mxu0 0
  %172 = vmatprep.subr.bf16.mxu0 0
  %173 = vmatpush1.bf16.msra.mxu0 0
  %174 = vmatprep.subr.bf16.mxu0 0
  %175 = vmatpush1.bf16.msra.mxu0 0
  %176 = vmatprep.mubr.bf16.mxu0 0
  %177 = vmatmul.mubr.bf16.gmra.mrb[0].mxu0 %v117
  %v178 = vpop.f32.mrb[0].mxu0
  %v179 = vadd.f32 0.0, %v178
  %v180 = vpop.f32.mrb[0].mxu0
  %v181 = vpop.f32.mrb[0].mxu0
  %v182 = vadd.f32 0.0, %v181
  %v183 = vpop.f32.mrb[0].mxu0
  %184 = vmatprep.mubr.bf16.mxu0 0
  %185 = vmatmul.mubr.bf16.gmra.mrb[0].mxu0 %v120
  %v186 = vpop.f32.mrb[0].mxu0
  %v187 = vadd.f32 0.0, %v186
  %v188 = vpop.f32.mrb[0].mxu0
  %v189 = vpop.f32.mrb[0].mxu0
  %v190 = vadd.f32 0.0, %v189
  %v191 = vpop.f32.mrb[0].mxu0
  %192 = vmatprep.mubr.bf16.mxu0 0
  %193 = vmatmul.mubr.bf16.gmra.mrb[0].mxu0 %v123
  %v194 = vpop.f32.mrb[0].mxu0
  %v195 = vadd.f32 0.0, %v194
  %v196 = vpop.f32.mrb[0].mxu0
  %v197 = vpop.f32.mrb[0].mxu0
  %v198 = vadd.f32 0.0, %v197
  %v199 = vpop.f32.mrb[0].mxu0
  %200 = vmatprep.mubr.bf16.mxu0 0
  %201 = vmatmul.mubr.bf16.gmra.mrb[0].mxu0 %v126
  %v202 = vpop.f32.mrb[0].mxu0
  %v203 = vadd.f32 0.0, %v202
  %v204 = vpop.f32.mrb[0].mxu0
  %v205 = vpop.f32.mrb[0].mxu0
  %v206 = vadd.f32 0.0, %v205
  %v207 = vpop.f32.mrb[0].mxu0
  %208 = vmatprep.mubr.bf16.mxu0 0
  %209 = vmatmul.mubr.bf16.gmra.mrb[0].mxu0 %v129
  %v210 = vpop.f32.mrb[0].mxu0
  %v211 = vadd.f32 0.0, %v210
  %v212 = vpop.f32.mrb[0].mxu0
  %v213 = vpop.f32.mrb[0].mxu0
  %v214 = vadd.f32 0.0, %v213
  %v215 = vpop.f32.mrb[0].mxu0
  %216 = vmatprep.mubr.bf16.mxu0 0
  %217 = vmatmul.mubr.bf16.gmra.mrb[0].mxu0 %v132
  %v218 = vpop.f32.mrb[0].mxu0
  %v219 = vadd.f32 0.0, %v218
  %v220 = vpop.f32.mrb[0].mxu0
  %v221 = vpop.f32.mrb[0].mxu0
  %v222 = vadd.f32 0.0, %v221
  %v223 = vpop.f32.mrb[0].mxu0
  %224 = vmatprep.mubr.bf16.mxu0 0
  %225 = vmatmul.mubr.bf16.gmra.mrb[0].mxu0 %v135
  %v226 = vpop.f32.mrb[0].mxu0
  %v227 = vadd.f32 0.0, %v226
  %v228 = vpop.f32.mrb[0].mxu0
  %v229 = vpop.f32.mrb[0].mxu0
  %v230 = vadd.f32 0.0, %v229
  %v231 = vpop.f32.mrb[0].mxu0
  %232 = vmatprep.mubr.bf16.mxu0 0
  %233 = vmatmul.mubr.bf16.gmra.mrb[0].mxu0 %v138
  %v234 = vpop.f32.mrb[0].mxu0
  %v235 = vadd.f32 0.0, %v234
  %v236 = vpop.f32.mrb[0].mxu0
  %v237 = vpop.f32.mrb[0].mxu0
  %v238 = vadd.f32 0.0, %v237
  %v239 = vpop.f32.mrb[0].mxu0
  %240 = vdwg.mxu0
  %v241 = vpack.c.bf16 %v182, %v179
  %v242 = vpack.c.bf16 %v190, %v187
  %v243 = vpack.c.bf16 %v198, %v195
  %v244 = vpack.c.bf16 %v206, %v203
  %v245 = vpack.c.bf16 %v214, %v211
  %v246 = vpack.c.bf16 %v222, %v219
  %v247 = vpack.c.bf16 %v230, %v227
  %v248 = vpack.c.bf16 %v238, %v235
  %v257 = vunpack.c.l.b16 %v241
  %v258 = vunpack.c.h.b16 %v241
  %v259 = vunpack.c.l.b16 %v242
  %v260 = vunpack.c.h.b16 %v242
  %v261 = vunpack.c.l.b16 %v243
  %v262 = vunpack.c.h.b16 %v243
  %v263 = vunpack.c.l.b16 %v244
  %v264 = vunpack.c.h.b16 %v244
  %v265 = vunpack.c.l.b16 %v245
  %v266 = vunpack.c.h.b16 %v245
  %v267 = vunpack.c.l.b16 %v246
  %v268 = vunpack.c.h.b16 %v246
  %v269 = vunpack.c.l.b16 %v247
  %v270 = vunpack.c.h.b16 %v247
  %v271 = vunpack.c.l.b16 %v248
  %v272 = vunpack.c.h.b16 %v248
  %v273 = vpack.c.b16 %v257, %v257
  %v274 = vpack.c.b16 %v258, %v258
  %v275 = vpack.c.b16 %v259, %v259
  %v276 = vpack.c.b16 %v260, %v260
  %v277 = vpack.c.b16 %v261, %v261
  %v278 = vpack.c.b16 %v262, %v262
  %v279 = vpack.c.b16 %v263, %v263
  %v280 = vpack.c.b16 %v264, %v264
  %v281 = vpack.c.b16 %v265, %v265
  %v282 = vpack.c.b16 %v266, %v266
  %v283 = vpack.c.b16 %v267, %v267
  %v284 = vpack.c.b16 %v268, %v268
  %v285 = vpack.c.b16 %v269, %v269
  %v286 = vpack.c.b16 %v270, %v270
  %v287 = vpack.c.b16 %v271, %v271
  %v288 = vpack.c.b16 %v272, %v272
  %vm305 = vcmask 60416
  %306 = vst.msk [vmem:[%s47] sm:$0xf] %vm305, %v273
  %307 = vst.msk [vmem:[%s47 + $0x4] sm:$0xf] %vm305, %v274
  %308 = vst.msk [vmem:[%s47 + $0x8] sm:$0xf] %vm305, %v275
  %309 = vst.msk [vmem:[%s47 + $0xc] sm:$0xf] %vm305, %v276
  %310 = vst.msk [vmem:[%s47 + $0x10] sm:$0xf] %vm305, %v277
  %311 = vst.msk [vmem:[%s47 + $0x14] sm:$0xf] %vm305, %v278
  %312 = vst.msk [vmem:[%s47 + $0x18] sm:$0xf] %vm305, %v279
  %313 = vst.msk [vmem:[%s47 + $0x1c] sm:$0xf] %vm305, %v280
  %314 = vst.msk [vmem:[%s47 + $0x20] sm:$0xf] %vm305, %v281
  %315 = vst.msk [vmem:[%s47 + $0x24] sm:$0xf] %vm305, %v282
  %316 = vst.msk [vmem:[%s47 + $0x28] sm:$0xf] %vm305, %v283
  %317 = vst.msk [vmem:[%s47 + $0x2c] sm:$0xf] %vm305, %v284
  %318 = vst.msk [vmem:[%s47 + $0x30] sm:$0xf] %vm305, %v285
  %319 = vst.msk [vmem:[%s47 + $0x34] sm:$0xf] %vm305, %v286
  %320 = vst.msk [vmem:[%s47 + $0x38] sm:$0xf] %vm305, %v287
  %321 = vst.msk [vmem:[%s47 + $0x3c] sm:$0xf] %vm305, %v288
  %v322 = vld [vmem:[%s3] sm:$0x1]
  %vm323 = vcmask 64512
  %v324 = vsel %vm323, %v179, 0.0
  %v325 = vsel %vm323, %v182, 0.0
  %v326 = vadd.f32 %v324, %v325
  %v327 = vsel %vm323, %v187, 0.0
  %v328 = vadd.f32 %v326, %v327
  %v329 = vsel %vm323, %v190, 0.0
  %v330 = vadd.f32 %v328, %v329
  %v331 = vsel %vm323, %v195, 0.0
  %v332 = vadd.f32 %v330, %v331
  %v333 = vsel %vm323, %v198, 0.0
  %v334 = vadd.f32 %v332, %v333
  %v335 = vsel %vm323, %v203, 0.0
  %v336 = vadd.f32 %v334, %v335
  %v337 = vsel %vm323, %v206, 0.0
  %v338 = vadd.f32 %v336, %v337
  %v339 = vsel %vm323, %v211, 0.0
  %v340 = vadd.f32 %v338, %v339
  %v341 = vsel %vm323, %v214, 0.0
  %v342 = vadd.f32 %v340, %v341
  %v343 = vsel %vm323, %v219, 0.0
  %v344 = vadd.f32 %v342, %v343
  %v345 = vsel %vm323, %v222, 0.0
  %v346 = vadd.f32 %v344, %v345
  %v347 = vsel %vm323, %v227, 0.0
  %v348 = vadd.f32 %v346, %v347
  %v349 = vsel %vm323, %v230, 0.0
  %v350 = vadd.f32 %v348, %v349
  %v351 = vsel %vm323, %v235, 0.0
  %v352 = vadd.f32 %v350, %v351
  %v353 = vsel %vm323, %v238, 0.0
  %v354 = vadd.f32 %v352, %v353
  %v355 = vrot.slane %v354, 4
  %v356 = vadd.f32 %v354, %v355
  %v357 = vrot.slane %v356, 2
  %v358 = vadd.f32 %v356, %v357
  %v359 = vrot.slane %v358, 1
  %v360 = vadd.f32 %v358, %v359
  %v361 = vadd.f32 %v322, %v360
  %vm362 = vcmask 57344
  %363 = vst.msk [vmem:[%s3] sm:$0x1] %vm362, %v361
  %v364 = vld [vmem:[%s4] sm:$0x1]
  %v365 = vmul.f32 %v179, %v179
  %v366 = vmul.f32 %v182, %v182
  %v367 = vmul.f32 %v187, %v187
  %v368 = vmul.f32 %v190, %v190
  %v369 = vmul.f32 %v195, %v195
  %v370 = vmul.f32 %v198, %v198
  %v371 = vmul.f32 %v203, %v203
  %v372 = vmul.f32 %v206, %v206
  %v373 = vmul.f32 %v211, %v211
  %v374 = vmul.f32 %v214, %v214
  %v375 = vmul.f32 %v219, %v219
  %v376 = vmul.f32 %v222, %v222
  %v377 = vmul.f32 %v227, %v227
  %v378 = vmul.f32 %v230, %v230
  %v379 = vmul.f32 %v235, %v235
  %v380 = vmul.f32 %v238, %v238
  %v381 = vsel %vm323, %v365, 0.0
  %v382 = vsel %vm323, %v366, 0.0
  %v383 = vadd.f32 %v381, %v382
  %v384 = vsel %vm323, %v367, 0.0
  %v385 = vadd.f32 %v383, %v384
  %v386 = vsel %vm323, %v368, 0.0
  %v387 = vadd.f32 %v385, %v386
  %v388 = vsel %vm323, %v369, 0.0
  %v389 = vadd.f32 %v387, %v388
  %v390 = vsel %vm323, %v370, 0.0
  %v391 = vadd.f32 %v389, %v390
  %v392 = vsel %vm323, %v371, 0.0
  %v393 = vadd.f32 %v391, %v392
  %v394 = vsel %vm323, %v372, 0.0
  %v395 = vadd.f32 %v393, %v394
  %v396 = vsel %vm323, %v373, 0.0
  %v397 = vadd.f32 %v395, %v396
  %v398 = vsel %vm323, %v374, 0.0
  %v399 = vadd.f32 %v397, %v398
  %v400 = vsel %vm323, %v375, 0.0
  %v401 = vadd.f32 %v399, %v400
  %v402 = vsel %vm323, %v376, 0.0
  %v403 = vadd.f32 %v401, %v402
  %v404 = vsel %vm323, %v377, 0.0
  %v405 = vadd.f32 %v403, %v404
  %v406 = vsel %vm323, %v378, 0.0
  %v407 = vadd.f32 %v405, %v406
  %v408 = vsel %vm323, %v379, 0.0
  %v409 = vadd.f32 %v407, %v408
  %v410 = vsel %vm323, %v380, 0.0
  %v411 = vadd.f32 %v409, %v410
  %v412 = vrot.slane %v411, 4
  %v413 = vadd.f32 %v411, %v412
  %v414 = vrot.slane %v413, 2
  %v415 = vadd.f32 %v413, %v414
  %v416 = vrot.slane %v415, 1
  %v417 = vadd.f32 %v415, %v416
  %v418 = vadd.f32 %v364, %v417
  %419 = vst.msk [vmem:[%s4] sm:$0x1] %vm362, %v418
  %s420 = sadd.s32 0, 0
  %s421 = smul.u32 16, %s420
  %p422 = scmp.lt.s32.totalorder %s421, 15
  %s423 = scalar_select %p422, %s421, 15
  %s424 = smul.addr %s423, 4
  %s425 = scalar_lea.vmem %s2, %s424
  // Predicated region
  $region14: #{basic_block_forward.8} parent=0 // pred_check
    _
  $region15: #{basic_block_forward.8} parent=0 // pred_check_branch
    %427 = sbr.rel (0) target = $region17
  $region16: #{basic_block_forward.8} parent=0 // pred_region
    %s428 = sadd.s32 0, 0
    %s429 = smul.u32 16, %s428
  $region17: #{basic_block_forward.8} parent=0 // pred_fallthru
    _
  // Predicated region
  $region18: #{basic_block_forward.8} parent=0 // pred_check
    _
  $region19: #{basic_block_forward.8} parent=0 // pred_check_branch
    %431 = sbr.rel (0) target = $region21
  $region20: #{basic_block_forward.8} parent=0 // pred_region
    _
  $region21: #{basic_block_forward.8} parent=0 // pred_fallthru
    _
  // Predicated region
  $region22: #{basic_block_forward.8} parent=0 // pred_check
    _
  $region23: #{basic_block_forward.8} parent=0 // pred_check_branch
    %433 = sbr.rel (0) target = $region25
  $region24: #{basic_block_forward.8} parent=0 // pred_region
    _
  $region25: #{basic_block_forward.8} parent=0 // pred_fallthru
    _
  // Predicated region
  $region26: #{basic_block_forward.8} parent=0 // pred_check
    _
  $region27: #{basic_block_forward.8} parent=0 // pred_check_branch
    %435 = sbr.rel (0) target = $region29
  $region28: #{basic_block_forward.8} parent=0 // pred_region
    %s436 = sadd.s32 0, 0
    %s437 = smul.u32 16, %s436
    %p438 = scmp.lt.s32.totalorder %s437, 15
    %s439 = scalar_select %p438, %s437, 15
    %s440 = smul.addr %s439, 4
    %s441 = scalar_lea.vmem %s2, %s440
  $region29: #{basic_block_forward.8} parent=0 // pred_fallthru
    _
  // Predicated region
  $region30: #{basic_block_forward.8} parent=0 // pred_check
    _
  $region31: #{basic_block_forward.8} parent=0 // pred_check_branch
    %443 = sbr.rel (0) target = $region33
  $region32: #{basic_block_forward.8} parent=0 // pred_region
    _
  $region33: #{basic_block_forward.8} parent=0 // pred_fallthru
    _
  // Predicated region
  $region34: #{basic_block_forward.8} parent=0 // pred_check
    _
  $region35: #{basic_block_forward.8} parent=0 // pred_check_branch
    %445 = sbr.rel (0) target = $region37
  $region36: #{basic_block_forward.8} parent=0 // pred_region
    _
  $region37: #{basic_block_forward.8} parent=0 // pred_fallthru
    _

// kernel: basic_block_forward.7
$region0: #{basic_block_forward.7}
  #allocation0 [shape = 'u32[]', space=smem, size = 0x4, offset = 0x4, fixed_abs, tag = 'smem constant byte address 0x4 - core index']
  #allocation1 [shape = 'u32[144,128]{1,0:T(1,128)}', space=vmem, size = 0x12000, scoped, tag = 'internal scratch']
  %s0 = inlined_call_operand.vmem [shape: bf16[2,10,10,8], index: 0, kind: input, shape index: {}]
  %s1 = inlined_call_operand.vmem [shape: bf16[9,8,8], index: 1, kind: input, shape index: {}]
  %s2 = inlined_call_operand.vmem [shape: bf16[2,8,8,8], index: 2, kind: output, shape index: {0}]
  %s3 = inlined_call_operand.vmem [shape: f32[2,1,8], index: 3, kind: output, shape index: {1}]
  %s4 = inlined_call_operand.vmem [shape: f32[2,1,8], index: 4, kind: output, shape index: {2}]
  %5 = xla_tuple %s2, %s3, %s4
  %s6 = sld [smem:[#allocation0]]
  $region57: #{basic_block_forward.7} parent=0
    _
  %s8 = ssub.s32 1, %s6
  %s9 = scalar_select 0, %s8, %s6
  loop: start=0, step=1, limit=4
  $region2: #{basic_block_forward.7} parent=0 // loop_pre_header
    _
  $region3: #{basic_block_forward.7} parent=0 // loop_header
    %s11 = sphi 0, %s15
    %p12 = scmp.ge.s32.totalorder %s11, 4
    %s21 = sphi 0, %s23
    %s24 = sphi 0, %s21
    %s25 = sphi 0, %s24
    %s41 = sphi 0, %s25
    %s45 = sphi 0, %s45
    %s47 = sphi 0, %s45
    %s48 = sphi 0, %s47
    %s62 = sphi 0, %s48
    %s68 = sphi 0, %s70
    %s71 = sphi 0, %s68
    %s72 = sphi 0, %s71
    %s88 = sphi 0, %s72
    %s94 = sphi 0, %s96
    %s97 = sphi 0, %s94
    %s98 = sphi 0, %s97
    %s114 = sphi 0, %s98
    %s120 = sphi 0, %s122
    %s123 = sphi 0, %s120
    %s124 = sphi 0, %s123
    %s140 = sphi 0, %s124
  $region4: #{basic_block_forward.7} parent=0 // loop_header_branch
    %14 = sbr.rel (%p12) target = $region8
  $region5: #{basic_block_forward.7} parent=0 // loop_body
    %s16 = ssub.s32 %s11, 1
    %s17 = ssub.s32 %s11, 2
    %s18 = sadd.s32 %s11, 1
    %s19 = ssub.s32 %s11, %s18
    %p20 = scmp.eq.s32.totalorder %s19, 0
    %s22 = sadd.s32 %s21, 1
    %s23 = scalar_select %p20, %s21, %s22
    %p26 = pneg %p20
    %p27 = scmp.eq.s32.totalorder %s11, 1
    %p28 = por %p26, %p27
    %p29 = scmp.ne.s32.totalorder %s21, %s24
    %p30 = scmp.eq.s32.totalorder %s11, 0
    %p31 = por %p29, %p30
    %p32 = scmp.ne.s32.totalorder %s21, %s24
    %p33 = scmp.eq.s32.totalorder %s16, 1
    %p34 = por %p32, %p33
    %p35 = scmp.ne.s32.totalorder %s24, %s25
    %p36 = scmp.eq.s32.totalorder %s16, 0
    %p37 = por %p35, %p36
    %p38 = scmp.ne.s32.totalorder %s24, %s25
    %p39 = scmp.eq.s32.totalorder %s17, 1
    %p40 = por %p38, %p39
    %p42 = scmp.ne.s32.totalorder %s25, %s41
    %p43 = scmp.eq.s32.totalorder %s17, 0
    %p44 = por %p42, %p43
    %s46 = sadd.s32 %s45, 1
    %p49 = scmp.eq.s32.totalorder %s11, 1
    %p50 = scmp.ne.s32.totalorder %s45, %s47
    %p51 = scmp.eq.s32.totalorder %s11, 0
    %p52 = por %p50, %p51
    %p53 = scmp.ne.s32.totalorder %s45, %s47
    %p54 = scmp.eq.s32.totalorder %s16, 1
    %p55 = por %p53, %p54
    %p56 = scmp.ne.s32.totalorder %s47, %s48
    %p57 = scmp.eq.s32.totalorder %s16, 0
    %p58 = por %p56, %p57
    %p59 = scmp.ne.s32.totalorder %s47, %s48
    %p60 = scmp.eq.s32.totalorder %s17, 1
    %p61 = por %p59, %p60
    %p63 = scmp.ne.s32.totalorder %s48, %s62
    %p64 = scmp.eq.s32.totalorder %s17, 0
    %p65 = por %p63, %p64
    %s66 = ssub.s32 %s11, %s18
    %p67 = scmp.eq.s32.totalorder %s66, 0
    %s69 = sadd.s32 %s68, 1
    %s70 = scalar_select %p67, %s68, %s69
    %p73 = pneg %p67
    %p74 = scmp.eq.s32.totalorder %s11, 1
    %p75 = por %p73, %p74
    %p76 = scmp.ne.s32.totalorder %s68, %s71
    %p77 = scmp.eq.s32.totalorder %s11, 0
    %p78 = por %p76, %p77
    %p79 = scmp.ne.s32.totalorder %s68, %s71
    %p80 = scmp.eq.s32.totalorder %s16, 1
    %p81 = por %p79, %p80
    %p82 = scmp.ne.s32.totalorder %s71, %s72
    %p83 = scmp.eq.s32.totalorder %s16, 0
    %p84 = por %p82, %p83
    %p85 = scmp.ne.s32.totalorder %s71, %s72
    %p86 = scmp.eq.s32.totalorder %s17, 1
    %p87 = por %p85, %p86
    %p89 = scmp.ne.s32.totalorder %s72, %s88
    %p90 = scmp.eq.s32.totalorder %s17, 0
    %p91 = por %p89, %p90
    %s92 = ssub.s32 %s11, %s18
    %p93 = scmp.eq.s32.totalorder %s92, 0
    %s95 = sadd.s32 %s94, 1
    %s96 = scalar_select %p93, %s94, %s95
    %p99 = pneg %p93
    %p100 = scmp.eq.s32.totalorder %s11, 1
    %p101 = por %p99, %p100
    %p102 = scmp.ne.s32.totalorder %s94, %s97
    %p103 = scmp.eq.s32.totalorder %s11, 0
    %p104 = por %p102, %p103
    %p105 = scmp.ne.s32.totalorder %s94, %s97
    %p106 = scmp.eq.s32.totalorder %s16, 1
    %p107 = por %p105, %p106
    %p108 = scmp.ne.s32.totalorder %s97, %s98
    %p109 = scmp.eq.s32.totalorder %s16, 0
    %p110 = por %p108, %p109
    %p111 = scmp.ne.s32.totalorder %s97, %s98
    %p112 = scmp.eq.s32.totalorder %s17, 1
    %p113 = por %p111, %p112
    %p115 = scmp.ne.s32.totalorder %s98, %s114
    %p116 = scmp.eq.s32.totalorder %s17, 0
    %p117 = por %p115, %p116
    %s118 = ssub.s32 %s11, %s18
    %p119 = scmp.eq.s32.totalorder %s118, 0
    %s121 = sadd.s32 %s120, 1
    %s122 = scalar_select %p119, %s120, %s121
    %p125 = pneg %p119
    %p126 = scmp.eq.s32.totalorder %s11, 1
    %p127 = por %p125, %p126
    %p128 = scmp.ne.s32.totalorder %s120, %s123
    %p129 = scmp.eq.s32.totalorder %s11, 0
    %p130 = por %p128, %p129
    %p131 = scmp.ne.s32.totalorder %s120, %s123
    %p132 = scmp.eq.s32.totalorder %s16, 1
    %p133 = por %p131, %p132
    %p134 = scmp.ne.s32.totalorder %s123, %s124
    %p135 = scmp.eq.s32.totalorder %s16, 0
    %p136 = por %p134, %p135
    %p137 = scmp.ne.s32.totalorder %s123, %s124
    %p138 = scmp.eq.s32.totalorder %s17, 1
    %p139 = por %p137, %p138
    %p141 = scmp.ne.s32.totalorder %s124, %s140
    %p142 = scmp.eq.s32.totalorder %s17, 0
    %p143 = por %p141, %p142
    %p144 = scmp.le.s32.totalorder 1, %s11
    %p145 = scmp.lt.s32.totalorder %s11, 3
    %p146 = pnand %p144, %p145
    %p147 = pneg %p146
    // Predicated region
    $region9: #{basic_block_forward.7} parent=5 // pred_check
      _
    $region10: #{basic_block_forward.7} parent=5 // pred_check_branch
      %149 = sbr.rel (%p146) target = $region12
    $region11: #{basic_block_forward.7} parent=5 // pred_region
      %s150 = ssub.s32 %s11, 1
      // Predicated region
      $region13: #{basic_block_forward.7} parent=11 // pred_check
        %p151 = pneg %p58
      $region14: #{basic_block_forward.7} parent=11 // pred_check_branch
        %153 = sbr.rel (%p151) target = $region16
      $region15: #{basic_block_forward.7} parent=11 // pred_region
        _
      $region16: #{basic_block_forward.7} parent=11 // pred_fallthru
        _
    $region12: #{basic_block_forward.7} parent=5 // pred_fallthru
      _
    %p154 = scmp.lt.s32.totalorder %s11, 2
    // Predicated region
    $region17: #{basic_block_forward.7} parent=5 // pred_check
      %p155 = pneg %p154
    $region18: #{basic_block_forward.7} parent=5 // pred_check_branch
      %157 = sbr.rel (%p155) target = $region20
    $region19: #{basic_block_forward.7} parent=5 // pred_region
      // Predicated region
      $region21: #{basic_block_forward.7} parent=19 // pred_check
        %p158 = pneg %p31
      $region22: #{basic_block_forward.7} parent=19 // pred_check_branch
        %160 = sbr.rel (%p158) target = $region24
      $region23: #{basic_block_forward.7} parent=19 // pred_region
        %p161 = scmp.lt.s32.totalorder %s11, 1
        %s162 = scalar_select %p161, %s11, 1
        %s163 = smul.addr %s162, 20
        %s164 = smul.addr %s163, 4
        %s165 = scalar_lea.vmem %s0, %s164
      $region24: #{basic_block_forward.7} parent=19 // pred_fallthru
        _
    $region20: #{basic_block_forward.7} parent=5 // pred_fallthru
      _
    %p166 = scmp.le.s32.totalorder 1, %s11
    %p167 = scmp.lt.s32.totalorder %s11, 3
    %p168 = pnand %p166, %p167
    %p169 = pneg %p168
    // Predicated region
    $region25: #{basic_block_forward.7} parent=5 // pred_check
      _
    $region26: #{basic_block_forward.7} parent=5 // pred_check_branch
      %171 = sbr.rel (%p168) target = $region28
    $region27: #{basic_block_forward.7} parent=5 // pred_region
      %s172 = ssub.s32 %s11, 1
      %p173 = scmp.lt.s32.totalorder %s16, 1
      %s174 = scalar_select %p173, %s16, 1
      %s175 = smul.addr %s174, 20
      %s176 = smul.addr %s175, 4
      %s177 = scalar_lea.vmem %s0, %s176
      %p178 = pneg %p37
      %p179 = pneg %p34
      %p180 = pneg %p58
      %p181 = pneg %p55
      %p182 = pneg %p84
      %p183 = pneg %p81
      %p184 = scmp.lt.s32.totalorder %s16, 1
      %s185 = scalar_select %p184, %s16, 1
      %s186 = smul.addr %s185, 8
      %s187 = smul.addr %s186, 4
      %s188 = scalar_lea.vmem %s2, %s187
      %p189 = pneg %p110
      %p190 = pneg %p107
      %p191 = scmp.lt.s32.totalorder %s16, 1
      %s192 = scalar_select %p191, %s16, 1
      %s193 = scalar_lea.vmem %s3, %s192
      %p194 = pneg %p136
      %p195 = pneg %p133
      %p196 = scmp.lt.s32.totalorder %s16, 1
      %s197 = scalar_select %p196, %s16, 1
      %s198 = scalar_lea.vmem %s4, %s197
      %p199 = scmp.lt.s32.totalorder %s16, 1
      %s200 = scalar_select %p199, %s16, 1
      %s201 = smul.addr %s200, 20
      %s202 = smul.addr %s201, 4
      %s203 = scalar_lea.vmem %s0, %s202
      %p204 = scmp.lt.s32.totalorder %s16, 1
      %s205 = scalar_select %p204, %s16, 1
      %s206 = smul.addr %s205, 8
      %s207 = smul.addr %s206, 4
      %s208 = scalar_lea.vmem %s2, %s207
      %p209 = scmp.lt.s32.totalorder %s16, 1
      %s210 = scalar_select %p209, %s16, 1
      %s211 = scalar_lea.vmem %s3, %s210
      %p212 = scmp.lt.s32.totalorder %s16, 1
      %s213 = scalar_select %p212, %s16, 1
      %s214 = scalar_lea.vmem %s4, %s213
      %v216 = vld [vmem:[%s203] sm:$0xf]
      %v217 = vld [vmem:[%s203 + $0x8] sm:$0xf]
      %v218 = vld [vmem:[%s203 + $0x10] sm:$0xf]
      %v219 = vld [vmem:[%s203 + $0x18] sm:$0xf]
      %v220 = vld [vmem:[%s203 + $0x20] sm:$0xf]
      %v221 = vld [vmem:[%s203 + $0x28] sm:$0xf]
      %v222 = vld [vmem:[%s203 + $0x30] sm:$0xf]
      %v223 = vld [vmem:[%s203 + $0x38] sm:$0xf]
      %v224 = vld [vmem:[%s1] sm:$0xf]
      %v225 = vld [vmem:[%s203 + $0x4] sm:$0x1]
      %v226 = vld [vmem:[%s203 + $0xc] sm:$0x1]
      %v227 = vld [vmem:[%s203 + $0x14] sm:$0x1]
      %v228 = vld [vmem:[%s203 + $0x1c] sm:$0x1]
      %v229 = vld [vmem:[%s203 + $0x24] sm:$0x1]
      %v230 = vld [vmem:[%s203 + $0x2c] sm:$0x1]
      %v231 = vld [vmem:[%s203 + $0x34] sm:$0x1]
      %v232 = vld [vmem:[%s203 + $0x3c] sm:$0x1]
      %vm233 = vsmask.f32 3328
      %vm234 = vsmask.f32 7440
      %vm235 = vmor %vm233, %vm234
      %v237 = vshrl.u32 %v216, 16
      %v239 = vrot.slane %v237, 4
      %v240 = vshll.u32 %v216, 16
      %v242 = vrot.slane %v240, 5
      %v243 = vor.u32 %v239, %v242
      %v244 = vrot.slane %v243, 4
      %v246 = vshll.u32 %v225, 16
      %v248 = vrot.slane %v246, 5
      %v249 = vsel %vm235, %v244, %v248
      %v251 = vshrl.u32 %v217, 16
      %v253 = vrot.slane %v251, 4
      %v254 = vshll.u32 %v217, 16
      %v256 = vrot.slane %v254, 5
      %v257 = vor.u32 %v253, %v256
      %v258 = vrot.slane %v257, 4
      %v260 = vshll.u32 %v226, 16
      %v262 = vrot.slane %v260, 5
      %v263 = vsel %vm235, %v258, %v262
      %v265 = vshrl.u32 %v218, 16
      %v267 = vrot.slane %v265, 4
      %v268 = vshll.u32 %v218, 16
      %v270 = vrot.slane %v268, 5
      %v271 = vor.u32 %v267, %v270
      %v272 = vrot.slane %v271, 4
      %v274 = vshll.u32 %v227, 16
      %v276 = vrot.slane %v274, 5
      %v277 = vsel %vm235, %v272, %v276
      %v279 = vshrl.u32 %v219, 16
      %v281 = vrot.slane %v279, 4
      %v282 = vshll.u32 %v219, 16
      %v284 = vrot.slane %v282, 5
      %v285 = vor.u32 %v281, %v284
      %v286 = vrot.slane %v285, 4
      %v288 = vshll.u32 %v228, 16
      %v290 = vrot.slane %v288, 5
      %v291 = vsel %vm235, %v286, %v290
      %v293 = vshrl.u32 %v220, 16
      %v295 = vrot.slane %v293, 4
      %v296 = vshll.u32 %v220, 16
      %v298 = vrot.slane %v296, 5
      %v299 = vor.u32 %v295, %v298
      %v300 = vrot.slane %v299, 4
      %v302 = vshll.u32 %v229, 16
      %v304 = vrot.slane %v302, 5
      %v305 = vsel %vm235, %v300, %v304
      %v307 = vshrl.u32 %v221, 16
      %v309 = vrot.slane %v307, 4
      %v310 = vshll.u32 %v221, 16
      %v312 = vrot.slane %v310, 5
      %v313 = vor.u32 %v309, %v312
      %v314 = vrot.slane %v313, 4
      %v316 = vshll.u32 %v230, 16
      %v318 = vrot.slane %v316, 5
      %v319 = vsel %vm235, %v314, %v318
      %v321 = vshrl.u32 %v222, 16
      %v323 = vrot.slane %v321, 4
      %v324 = vshll.u32 %v222, 16
      %v326 = vrot.slane %v324, 5
      %v327 = vor.u32 %v323, %v326
      %v328 = vrot.slane %v327, 4
      %v330 = vshll.u32 %v231, 16
      %v332 = vrot.slane %v330, 5
      %v333 = vsel %vm235, %v328, %v332
      %v335 = vshrl.u32 %v223, 16
      %v337 = vrot.slane %v335, 4
      %v338 = vshll.u32 %v223, 16
      %v340 = vrot.slane %v338, 5
      %v341 = vor.u32 %v337, %v340
      %v342 = vrot.slane %v341, 4
      %v344 = vshll.u32 %v232, 16
      %v346 = vrot.slane %v344, 5
      %v347 = vsel %vm235, %v342, %v346
      %s348 = scalar_lea.vmem %s1, 4
      %v349 = vld [vmem:[%s348] sm:$0xf]
      %v350 = vunpack.c.l.b16 %v249
      %v351 = vunpack.c.l.b16 %v263
      %v352 = vunpack.c.l.b16 %v277
      %v353 = vunpack.c.l.b16 %v291
      %v354 = vunpack.c.l.b16 %v305
      %v355 = vunpack.c.l.b16 %v319
      %v356 = vunpack.c.l.b16 %v333
      %v357 = vunpack.c.l.b16 %v347
      %v358 = vpack.c.b16 %v351, %v350
      %v359 = vpack.c.b16 %v353, %v352
      %v360 = vpack.c.b16 %v355, %v354
      %v361 = vpack.c.b16 %v357, %v356
      %vm362 = vcmask 64512
      %v364 = vsel %vm362, %v358, 0
      %v367 = vsel %vm362, %v359, 0
      %v370 = vsel %vm362, %v360, 0
      %v373 = vsel %vm362, %v361, 0
      %vm375 = vcmask 1043456
      %v377 = vsel %vm375, %v349, 0
      %379 = vmatprep.subr.bf16.mxu0 0
      %380 = vmatpush1.bf16.msra.mxu0 %v377
      %381 = vmatprep.subr.bf16.mxu0 0
      %382 = vmatpush1.bf16.msra.mxu0 0
      %383 = vmatprep.subr.bf16.mxu0 0
      %384 = vmatpush1.bf16.msra.mxu0 0
      %385 = vmatprep.subr.bf16.mxu0 0
      %386 = vmatpush1.bf16.msra.mxu0 0
      %387 = vmatprep.subr.bf16.mxu0 0
      %388 = vmatpush1.bf16.msra.mxu0 0
      %389 = vmatprep.subr.bf16.mxu0 0
      %390 = vmatpush1.bf16.msra.mxu0 0
      %391 = vmatprep.subr.bf16.mxu0 0
      %392 = vmatpush1.bf16.msra.mxu0 0
      %393 = vmatprep.subr.bf16.mxu0 0
      %394 = vmatpush1.bf16.msra.mxu0 0
      %395 = vmatprep.subr.bf16.mxu0 0
      %396 = vmatpush1.bf16.msra.mxu0 0
      %397 = vmatprep.subr.bf16.mxu0 0
      %398 = vmatpush1.bf16.msra.mxu0 0
      %399 = vmatprep.subr.bf16.mxu0 0
      %400 = vmatpush1.bf16.msra.mxu0 0
      %401 = vmatprep.subr.bf16.mxu0 0
      %402 = vmatpush1.bf16.msra.mxu0 0
      %403 = vmatprep.subr.bf16.mxu0 0
      %404 = vmatpush1.bf16.msra.mxu0 0
      %405 = vmatprep.subr.bf16.mxu0 0
      %406 = vmatpush1.bf16.msra.mxu0 0
      %407 = vmatprep.subr.bf16.mxu0 0
      %408 = vmatpush1.bf16.msra.mxu0 0
      %409 = vmatprep.subr.bf16.mxu0 0
      %410 = vmatpush1.bf16.msra.mxu0 0
      %411 = vmatprep.mubr.bf16.mxu0 0
      %412 = vmatmul.mubr.bf16.gmra.mrb[0].mxu0 %v364
      %v413 = vpop.f32.mrb[0].mxu0
      %v414 = vadd.f32 0.0, %v413
      %v415 = vpop.f32.mrb[0].mxu0
      %v416 = vpop.f32.mrb[0].mxu0
      %v417 = vadd.f32 0.0, %v416
      %v418 = vpop.f32.mrb[0].mxu0
      %419 = vmatprep.mubr.bf16.mxu0 0
      %420 = vmatmul.mubr.bf16.gmra.mrb[0].mxu0 %v367
      %v421 = vpop.f32.mrb[0].mxu0
      %v422 = vadd.f32 0.0, %v421
      %v423 = vpop.f32.mrb[0].mxu0
      %v424 = vpop.f32.mrb[0].mxu0
      %v425 = vadd.f32 0.0, %v424
      %v426 = vpop.f32.mrb[0].mxu0
      %427 = vmatprep.mubr.bf16.mxu0 0
      %428 = vmatmul.mubr.bf16.gmra.mrb[0].mxu0 %v370
      %v429 = vpop.f32.mrb[0].mxu0
      %v430 = vadd.f32 0.0, %v429
      %v431 = vpop.f32.mrb[0].mxu0
      %v432 = vpop.f32.mrb[0].mxu0
      %v433 = vadd.f32 0.0, %v432
      %v434 = vpop.f32.mrb[0].mxu0
      %435 = vmatprep.mubr.bf16.mxu0 0
      %436 = vmatmul.mubr.bf16.gmra.mrb[0].mxu0 %v373
      %v437 = vpop.f32.mrb[0].mxu0
      %v438 = vadd.f32 0.0, %v437
      %v439 = vpop.f32.mrb[0].mxu0
      %v440 = vpop.f32.mrb[0].mxu0
      %v441 = vadd.f32 0.0, %v440
      %v442 = vpop.f32.mrb[0].mxu0
      %443 = vdwg.mxu0
      %v452 = vunpack.c.l.b16 %v216
      %v453 = vunpack.c.l.b16 %v217
      %v454 = vunpack.c.l.b16 %v218
      %v455 = vunpack.c.l.b16 %v219
      %v456 = vunpack.c.l.b16 %v220
      %v457 = vunpack.c.l.b16 %v221
      %v458 = vunpack.c.l.b16 %v222
      %v459 = vunpack.c.l.b16 %v223
      %v460 = vpack.c.b16 %v453, %v452
      %v461 = vpack.c.b16 %v455, %v454
      %v462 = vpack.c.b16 %v457, %v456
      %v463 = vpack.c.b16 %v459, %v458
      %v465 = vsel %vm362, %v460, 0
      %v468 = vsel %vm362, %v461, 0
      %v471 = vsel %vm362, %v462, 0
      %v474 = vsel %vm362, %v463, 0
      %v477 = vsel %vm375, %v224, 0
      %479 = vmatprep.subr.bf16.mxu0 0
      %480 = vmatpush1.bf16.msra.mxu0 %v477
      %481 = vmatprep.subr.bf16.mxu0 0
      %482 = vmatpush1.bf16.msra.mxu0 0
      %483 = vmatprep.subr.bf16.mxu0 0
      %484 = vmatpush1.bf16.msra.mxu0 0
      %485 = vmatprep.subr.bf16.mxu0 0
      %486 = vmatpush1.bf16.msra.mxu0 0
      %487 = vmatprep.subr.bf16.mxu0 0
      %488 = vmatpush1.bf16.msra.mxu0 0
      %489 = vmatprep.subr.bf16.mxu0 0
      %490 = vmatpush1.bf16.msra.mxu0 0
      %491 = vmatprep.subr.bf16.mxu0 0
      %492 = vmatpush1.bf16.msra.mxu0 0
      %493 = vmatprep.subr.bf16.mxu0 0
      %494 = vmatpush1.bf16.msra.mxu0 0
      %495 = vmatprep.subr.bf16.mxu0 0
      %496 = vmatpush1.bf16.msra.mxu0 0
      %497 = vmatprep.subr.bf16.mxu0 0
      %498 = vmatpush1.bf16.msra.mxu0 0
      %499 = vmatprep.subr.bf16.mxu0 0
      %500 = vmatpush1.bf16.msra.mxu0 0
      %501 = vmatprep.subr.bf16.mxu0 0
      %502 = vmatpush1.bf16.msra.mxu0 0
      %503 = vmatprep.subr.bf16.mxu0 0
      %504 = vmatpush1.bf16.msra.mxu0 0
      %505 = vmatprep.subr.bf16.mxu0 0
      %506 = vmatpush1.bf16.msra.mxu0 0
      %507 = vmatprep.subr.bf16.mxu0 0
      %508 = vmatpush1.bf16.msra.mxu0 0
      %509 = vmatprep.subr.bf16.mxu0 0
      %510 = vmatpush1.bf16.msra.mxu0 0
      %511 = vmatprep.mubr.bf16.mxu0 0
      %512 = vmatmul.mubr.bf16.gmra.mrb[0].mxu0 %v465
      %v513 = vpop.f32.mrb[0].mxu0
      %v514 = vadd.f32 %v414, %v513
      %v515 = vpop.f32.mrb[0].mxu0
      %v516 = vpop.f32.mrb[0].mxu0
      %v517 = vadd.f32 %v417, %v516
      %v518 = vpop.f32.mrb[0].mxu0
      %519 = vmatprep.mubr.bf16.mxu0 0
      %520 = vmatmul.mubr.bf16.gmra.mrb[0].mxu0 %v468
      %v521 = vpop.f32.mrb[0].mxu0
      %v522 = vadd.f32 %v422, %v521
      %v523 = vpop.f32.mrb[0].mxu0
      %v524 = vpop.f32.mrb[0].mxu0
      %v525 = vadd.f32 %v425, %v524
      %v526 = vpop.f32.mrb[0].mxu0
      %527 = vmatprep.mubr.bf16.mxu0 0
      %528 = vmatmul.mubr.bf16.gmra.mrb[0].mxu0 %v471
      %v529 = vpop.f32.mrb[0].mxu0
      %v530 = vadd.f32 %v430, %v529
      %v531 = vpop.f32.mrb[0].mxu0
      %v532 = vpop.f32.mrb[0].mxu0
      %v533 = vadd.f32 %v433, %v532
      %v534 = vpop.f32.mrb[0].mxu0
      %535 = vmatprep.mubr.bf16.mxu0 0
      %536 = vmatmul.mubr.bf16.gmra.mrb[0].mxu0 %v474
      %v537 = vpop.f32.mrb[0].mxu0
      %v538 = vadd.f32 %v438, %v537
      %v539 = vpop.f32.mrb[0].mxu0
      %v540 = vpop.f32.mrb[0].mxu0
      %v541 = vadd.f32 %v441, %v540
      %v542 = vpop.f32.mrb[0].mxu0
      %543 = vdwg.mxu0
      %v544 = vld [vmem:[%s203] sm:$0xe]
      %v545 = vld [vmem:[%s203 + $0x8] sm:$0xe]
      %v546 = vld [vmem:[%s203 + $0x10] sm:$0xe]
      %v547 = vld [vmem:[%s203 + $0x18] sm:$0xe]
      %v548 = vld [vmem:[%s203 + $0x20] sm:$0xe]
      %v549 = vld [vmem:[%s203 + $0x28] sm:$0xe]
      %v550 = vld [vmem:[%s203 + $0x30] sm:$0xe]
      %v551 = vld [vmem:[%s203 + $0x38] sm:$0xe]
      %vm568 = vcmask 1042432
      %vm569 = vcmask 1046532
      %vm570 = vmor %vm568, %vm569
      %v571 = vrot.slane %v544, 5
      %v572 = vrot.slane %v571, 4
      %v573 = vrot.slane %v225, 5
      %v574 = vsel %vm570, %v572, %v573
      %v575 = vrot.slane %v545, 5
      %v576 = vrot.slane %v575, 4
      %v577 = vrot.slane %v226, 5
      %v578 = vsel %vm570, %v576, %v577
      %v579 = vrot.slane %v546, 5
      %v580 = vrot.slane %v579, 4
      %v581 = vrot.slane %v227, 5
      %v582 = vsel %vm570, %v580, %v581
      %v583 = vrot.slane %v547, 5
      %v584 = vrot.slane %v583, 4
      %v585 = vrot.slane %v228, 5
      %v586 = vsel %vm570, %v584, %v585
      %v587 = vrot.slane %v548, 5
      %v588 = vrot.slane %v587, 4
      %v589 = vrot.slane %v229, 5
      %v590 = vsel %vm570, %v588, %v589
      %v591 = vrot.slane %v549, 5
      %v592 = vrot.slane %v591, 4
      %v593 = vrot.slane %v230, 5
      %v594 = vsel %vm570, %v592, %v593
      %v595 = vrot.slane %v550, 5
      %v596 = vrot.slane %v595, 4
      %v597 = vrot.slane %v231, 5
      %v598 = vsel %vm570, %v596, %v597
      %v599 = vrot.slane %v551, 5
      %v600 = vrot.slane %v599, 4
      %v601 = vrot.slane %v232, 5
      %v602 = vsel %vm570, %v600, %v601
      %s603 = scalar_lea.vmem %s1, 8
      %v604 = vld [vmem:[%s603] sm:$0xf]
      %v605 = vunpack.c.l.b16 %v574
      %v606 = vunpack.c.l.b16 %v578
      %v607 = vunpack.c.l.b16 %v582
      %v608 = vunpack.c.l.b16 %v586
      %v609 = vunpack.c.l.b16 %v590
      %v610 = vunpack.c.l.b16 %v594
      %v611 = vunpack.c.l.b16 %v598
      %v612 = vunpack.c.l.b16 %v602
      %v613 = vpack.c.b16 %v606, %v605
      %v614 = vpack.c.b16 %v608, %v607
      %v615 = vpack.c.b16 %v610, %v609
      %v616 = vpack.c.b16 %v612, %v611
      %v618 = vsel %vm362, %v613, 0
      %v621 = vsel %vm362, %v614, 0
      %v624 = vsel %vm362, %v615, 0
      %v627 = vsel %vm362, %v616, 0
      %v630 = vsel %vm375, %v604, 0
      %632 = vmatprep.subr.bf16.mxu0 0
      %633 = vmatpush1.bf16.msra.mxu0 %v630
      %634 = vmatprep.subr.bf16.mxu0 0
      %635 = vmatpush1.bf16.msra.mxu0 0
      %636 = vmatprep.subr.bf16.mxu0 0
      %637 = vmatpush1.bf16.msra.mxu0 0
      %638 = vmatprep.subr.bf16.mxu0 0
      %639 = vmatpush1.bf16.msra.mxu0 0
      %640 = vmatprep.subr.bf16.mxu0 0
      %641 = vmatpush1.bf16.msra.mxu0 0
      %642 = vmatprep.subr.bf16.mxu0 0
      %643 = vmatpush1.bf16.msra.mxu0 0
      %644 = vmatprep.subr.bf16.mxu0 0
      %645 = vmatpush1.bf16.msra.mxu0 0
      %646 = vmatprep.subr.bf16.mxu0 0
      %647 = vmatpush1.bf16.msra.mxu0 0
      %648 = vmatprep.subr.bf16.mxu0 0
      %649 = vmatpush1.bf16.msra.mxu0 0
      %650 = vmatprep.subr.bf16.mxu0 0
      %651 = vmatpush1.bf16.msra.mxu0 0
      %652 = vmatprep.subr.bf16.mxu0 0
      %653 = vmatpush1.bf16.msra.mxu0 0
      %654 = vmatprep.subr.bf16.mxu0 0
      %655 = vmatpush1.bf16.msra.mxu0 0
      %656 = vmatprep.subr.bf16.mxu0 0
      %657 = vmatpush1.bf16.msra.mxu0 0
      %658 = vmatprep.subr.bf16.mxu0 0
      %659 = vmatpush1.bf16.msra.mxu0 0
      %660 = vmatprep.subr.bf16.mxu0 0
      %661 = vmatpush1.bf16.msra.mxu0 0
      %662 = vmatprep.subr.bf16.mxu0 0
      %663 = vmatpush1.bf16.msra.mxu0 0
      %664 = vmatprep.mubr.bf16.mxu0 0
      %665 = vmatmul.mubr.bf16.gmra.mrb[0].mxu0 %v618
      %v666 = vpop.f32.mrb[0].mxu0
      %v667 = vadd.f32 0.0, %v666
      %v668 = vpop.f32.mrb[0].mxu0
      %v669 = vpop.f32.mrb[0].mxu0
      %v670 = vadd.f32 0.0, %v669
      %v671 = vpop.f32.mrb[0].mxu0
      %672 = vmatprep.mubr.bf16.mxu0 0
      %673 = vmatmul.mubr.bf16.gmra.mrb[0].mxu0 %v621
      %v674 = vpop.f32.mrb[0].mxu0
      %v675 = vadd.f32 0.0, %v674
      %v676 = vpop.f32.mrb[0].mxu0
      %v677 = vpop.f32.mrb[0].mxu0
      %v678 = vadd.f32 0.0, %v677
      %v679 = vpop.f32.mrb[0].mxu0
      %680 = vmatprep.mubr.bf16.mxu0 0
      %681 = vmatmul.mubr.bf16.gmra.mrb[0].mxu0 %v624
      %v682 = vpop.f32.mrb[0].mxu0
      %v683 = vadd.f32 0.0, %v682
      %v684 = vpop.f32.mrb[0].mxu0
      %v685 = vpop.f32.mrb[0].mxu0
      %v686 = vadd.f32 0.0, %v685
      %v687 = vpop.f32.mrb[0].mxu0
      %688 = vmatprep.mubr.bf16.mxu0 0
      %689 = vmatmul.mubr.bf16.gmra.mrb[0].mxu0 %v627
      %v690 = vpop.f32.mrb[0].mxu0
      %v691 = vadd.f32 0.0, %v690
      %v692 = vpop.f32.mrb[0].mxu0
      %v693 = vpop.f32.mrb[0].mxu0
      %v694 = vadd.f32 0.0, %v693
      %v695 = vpop.f32.mrb[0].mxu0
      %696 = vdwg.mxu0
      %v697 = vadd.f32 %v514, %v667
      %v698 = vadd.f32 %v517, %v670
      %v699 = vadd.f32 %v522, %v675
      %v700 = vadd.f32 %v525, %v678
      %v701 = vadd.f32 %v530, %v683
      %v702 = vadd.f32 %v533, %v686
      %v703 = vadd.f32 %v538, %v691
      %v704 = vadd.f32 %v541, %v694
      %s705 = scalar_lea.vmem %s203, 8
      %v706 = vld [vmem:[%s705] sm:$0xf]
      %v707 = vld [vmem:[%s705 + $0x8] sm:$0xf]
      %v708 = vld [vmem:[%s705 + $0x10] sm:$0xf]
      %v709 = vld [vmem:[%s705 + $0x18] sm:$0xf]
      %v710 = vld [vmem:[%s705 + $0x20] sm:$0xf]
      %v711 = vld [vmem:[%s705 + $0x28] sm:$0xf]
      %v712 = vld [vmem:[%s705 + $0x30] sm:$0xf]
      %v713 = vld [vmem:[%s705 + $0x38] sm:$0xf]
      %s714 = scalar_lea.vmem %s1, 12
      %v715 = vld [vmem:[%s714] sm:$0xf]
      %v724 = vunpack.c.l.b16 %v706
      %v725 = vunpack.c.l.b16 %v707
      %v726 = vunpack.c.l.b16 %v708
      %v727 = vunpack.c.l.b16 %v709
      %v728 = vunpack.c.l.b16 %v710
      %v729 = vunpack.c.l.b16 %v711
      %v730 = vunpack.c.l.b16 %v712
      %v731 = vunpack.c.l.b16 %v713
      %v732 = vpack.c.b16 %v725, %v724
      %v733 = vpack.c.b16 %v727, %v726
      %v734 = vpack.c.b16 %v729, %v728
      %v735 = vpack.c.b16 %v731, %v730
      %v737 = vsel %vm362, %v732, 0
      %v740 = vsel %vm362, %v733, 0
      %v743 = vsel %vm362, %v734, 0
      %v746 = vsel %vm362, %v735, 0
      %v749 = vsel %vm375, %v715, 0
      %751 = vmatprep.subr.bf16.mxu0 0
      %752 = vmatpush1.bf16.msra.mxu0 %v749
      %753 = vmatprep.subr.bf16.mxu0 0
      %754 = vmatpush1.bf16.msra.mxu0 0
      %755 = vmatprep.subr.bf16.mxu0 0
      %756 = vmatpush1.bf16.msra.mxu0 0
      %757 = vmatprep.subr.bf16.mxu0 0
      %758 = vmatpush1.bf16.msra.mxu0 0
      %759 = vmatprep.subr.bf16.mxu0 0
      %760 = vmatpush1.bf16.msra.mxu0 0
      %761 = vmatprep.subr.bf16.mxu0 0
      %762 = vmatpush1.bf16.msra.mxu0 0
      %763 = vmatprep.subr.bf16.mxu0 0
      %764 = vmatpush1.bf16.msra.mxu0 0
      %765 = vmatprep.subr.bf16.mxu0 0
      %766 = vmatpush1.bf16.msra.mxu0 0
      %767 = vmatprep.subr.bf16.mxu0 0
      %768 = vmatpush1.bf16.msra.mxu0 0
      %769 = vmatprep.subr.bf16.mxu0 0
      %770 = vmatpush1.bf16.msra.mxu0 0
      %771 = vmatprep.subr.bf16.mxu0 0
      %772 = vmatpush1.bf16.msra.mxu0 0
      %773 = vmatprep.subr.bf16.mxu0 0
      %774 = vmatpush1.bf16.msra.mxu0 0
      %775 = vmatprep.subr.bf16.mxu0 0
      %776 = vmatpush1.bf16.msra.mxu0 0
      %777 = vmatprep.subr.bf16.mxu0 0
      %778 = vmatpush1.bf16.msra.mxu0 0
      %779 = vmatprep.subr.bf16.mxu0 0
      %780 = vmatpush1.bf16.msra.mxu0 0
      %781 = vmatprep.subr.bf16.mxu0 0
      %782 = vmatpush1.bf16.msra.mxu0 0
      %783 = vmatprep.mubr.bf16.mxu0 0
      %784 = vmatmul.mubr.bf16.gmra.mrb[0].mxu0 %v737
      %v785 = vpop.f32.mrb[0].mxu0
      %v786 = vadd.f32 0.0, %v785
      %v787 = vpop.f32.mrb[0].mxu0
      %v788 = vpop.f32.mrb[0].mxu0
      %v789 = vadd.f32 0.0, %v788
      %v790 = vpop.f32.mrb[0].mxu0
      %791 = vmatprep.mubr.bf16.mxu0 0
      %792 = vmatmul.mubr.bf16.gmra.mrb[0].mxu0 %v740
      %v793 = vpop.f32.mrb[0].mxu0
      %v794 = vadd.f32 0.0, %v793
      %v795 = vpop.f32.mrb[0].mxu0
      %v796 = vpop.f32.mrb[0].mxu0
      %v797 = vadd.f32 0.0, %v796
      %v798 = vpop.f32.mrb[0].mxu0
      %799 = vmatprep.mubr.bf16.mxu0 0
      %800 = vmatmul.mubr.bf16.gmra.mrb[0].mxu0 %v743
      %v801 = vpop.f32.mrb[0].mxu0
      %v802 = vadd.f32 0.0, %v801
      %v803 = vpop.f32.mrb[0].mxu0
      %v804 = vpop.f32.mrb[0].mxu0
      %v805 = vadd.f32 0.0, %v804
      %v806 = vpop.f32.mrb[0].mxu0
      %807 = vmatprep.mubr.bf16.mxu0 0
      %808 = vmatmul.mubr.bf16.gmra.mrb[0].mxu0 %v746
      %v809 = vpop.f32.mrb[0].mxu0
      %v810 = vadd.f32 0.0, %v809
      %v811 = vpop.f32.mrb[0].mxu0
      %v812 = vpop.f32.mrb[0].mxu0
      %v813 = vadd.f32 0.0, %v812
      %v814 = vpop.f32.mrb[0].mxu0
      %815 = vdwg.mxu0
      %v816 = vadd.f32 %v697, %v786
      %v817 = vadd.f32 %v698, %v789
      %v818 = vadd.f32 %v699, %v794
      %v819 = vadd.f32 %v700, %v797
      %v820 = vadd.f32 %v701, %v802
      %v821 = vadd.f32 %v702, %v805
      %v822 = vadd.f32 %v703, %v810
      %v823 = vadd.f32 %v704, %v813
      %v824 = vld [vmem:[%s705] sm:$0xf]
      %v825 = vld [vmem:[%s705 + $0x4] sm:$0x1]
      %v826 = vld [vmem:[%s705 + $0x8] sm:$0xf]
      %v827 = vld [vmem:[%s705 + $0xc] sm:$0x1]
      %v828 = vld [vmem:[%s705 + $0x10] sm:$0xf]
      %v829 = vld [vmem:[%s705 + $0x14] sm:$0x1]
      %v830 = vld [vmem:[%s705 + $0x18] sm:$0xf]
      %v831 = vld [vmem:[%s705 + $0x1c] sm:$0x1]
      %v832 = vld [vmem:[%s705 + $0x20] sm:$0xf]
      %v833 = vld [vmem:[%s705 + $0x24] sm:$0x1]
      %v834 = vld [vmem:[%s705 + $0x28] sm:$0xf]
      %v835 = vld [vmem:[%s705 + $0x2c] sm:$0x1]
      %v836 = vld [vmem:[%s705 + $0x30] sm:$0xf]
      %v837 = vld [vmem:[%s705 + $0x34] sm:$0x1]
      %v838 = vld [vmem:[%s705 + $0x38] sm:$0xf]
      %v839 = vld [vmem:[%s705 + $0x3c] sm:$0x1]
      %v841 = vshrl.u32 %v824, 16
      %v843 = vrot.slane %v841, 4
      %v844 = vshll.u32 %v824, 16
      %v846 = vrot.slane %v844, 5
      %v847 = vor.u32 %v843, %v846
      %v848 = vrot.slane %v847, 4
      %v850 = vshll.u32 %v825, 16
      %v852 = vrot.slane %v850, 5
      %v853 = vsel %vm235, %v848, %v852
      %v855 = vshrl.u32 %v826, 16
      %v857 = vrot.slane %v855, 4
      %v858 = vshll.u32 %v826, 16
      %v860 = vrot.slane %v858, 5
      %v861 = vor.u32 %v857, %v860
      %v862 = vrot.slane %v861, 4
      %v864 = vshll.u32 %v827, 16
      %v866 = vrot.slane %v864, 5
      %v867 = vsel %vm235, %v862, %v866
      %v869 = vshrl.u32 %v828, 16
      %v871 = vrot.slane %v869, 4
      %v872 = vshll.u32 %v828, 16
      %v874 = vrot.slane %v872, 5
      %v875 = vor.u32 %v871, %v874
      %v876 = vrot.slane %v875, 4
      %v878 = vshll.u32 %v829, 16
      %v880 = vrot.slane %v878, 5
      %v881 = vsel %vm235, %v876, %v880
      %v883 = vshrl.u32 %v830, 16
      %v885 = vrot.slane %v883, 4
      %v886 = vshll.u32 %v830, 16
      %v888 = vrot.slane %v886, 5
      %v889 = vor.u32 %v885, %v888
      %v890 = vrot.slane %v889, 4
      %v892 = vshll.u32 %v831, 16
      %v894 = vrot.slane %v892, 5
      %v895 = vsel %vm235, %v890, %v894
      %v897 = vshrl.u32 %v832, 16
      %v899 = vrot.slane %v897, 4
      %v900 = vshll.u32 %v832, 16
      %v902 = vrot.slane %v900, 5
      %v903 = vor.u32 %v899, %v902
      %v904 = vrot.slane %v903, 4
      %v906 = vshll.u32 %v833, 16
      %v908 = vrot.slane %v906, 5
      %v909 = vsel %vm235, %v904, %v908
      %v911 = vshrl.u32 %v834, 16
      %v913 = vrot.slane %v911, 4
      %v914 = vshll.u32 %v834, 16
      %v916 = vrot.slane %v914, 5
      %v917 = vor.u32 %v913, %v916
      %v918 = vrot.slane %v917, 4
      %v920 = vshll.u32 %v835, 16
      %v922 = vrot.slane %v920, 5
      %v923 = vsel %vm235, %v918, %v922
      %v925 = vshrl.u32 %v836, 16
      %v927 = vrot.slane %v925, 4
      %v928 = vshll.u32 %v836, 16
      %v930 = vrot.slane %v928, 5
      %v931 = vor.u32 %v927, %v930
      %v932 = vrot.slane %v931, 4
      %v934 = vshll.u32 %v837, 16
      %v936 = vrot.slane %v934, 5
      %v937 = vsel %vm235, %v932, %v936
      %v939 = vshrl.u32 %v838, 16
      %v941 = vrot.slane %v939, 4
      %v942 = vshll.u32 %v838, 16
      %v944 = vrot.slane %v942, 5
      %v945 = vor.u32 %v941, %v944
      %v946 = vrot.slane %v945, 4
      %v948 = vshll.u32 %v839, 16
      %v950 = vrot.slane %v948, 5
      %v951 = vsel %vm235, %v946, %v950
      %s952 = scalar_lea.vmem %s1, 16
      %v953 = vld [vmem:[%s952] sm:$0xf]
      %v954 = vunpack.c.l.b16 %v853
      %v955 = vunpack.c.l.b16 %v867
      %v956 = vunpack.c.l.b16 %v881
      %v957 = vunpack.c.l.b16 %v895
      %v958 = vunpack.c.l.b16 %v909
      %v959 = vunpack.c.l.b16 %v923
      %v960 = vunpack.c.l.b16 %v937
      %v961 = vunpack.c.l.b16 %v951
      %v962 = vpack.c.b16 %v955, %v954
      %v963 = vpack.c.b16 %v957, %v956
      %v964 = vpack.c.b16 %v959, %v958
      %v965 = vpack.c.b16 %v961, %v960
      %v967 = vsel %vm362, %v962, 0
      %v970 = vsel %vm362, %v963, 0
      %v973 = vsel %vm362, %v964, 0
      %v976 = vsel %vm362, %v965, 0
      %v979 = vsel %vm375, %v953, 0
      %981 = vmatprep.subr.bf16.mxu0 0
      %982 = vmatpush1.bf16.msra.mxu0 %v979
      %983 = vmatprep.subr.bf16.mxu0 0
      %984 = vmatpush1.bf16.msra.mxu0 0
      %985 = vmatprep.subr.bf16.mxu0 0
      %986 = vmatpush1.bf16.msra.mxu0 0
      %987 = vmatprep.subr.bf16.mxu0 0
      %988 = vmatpush1.bf16.msra.mxu0 0
      %989 = vmatprep.subr.bf16.mxu0 0
      %990 = vmatpush1.bf16.msra.mxu0 0
      %991 = vmatprep.subr.bf16.mxu0 0
      %992 = vmatpush1.bf16.msra.mxu0 0
      %993 = vmatprep.subr.bf16.mxu0 0
      %994 = vmatpush1.bf16.msra.mxu0 0
      %995 = vmatprep.subr.bf16.mxu0 0
      %996 = vmatpush1.bf16.msra.mxu0 0
      %997 = vmatprep.subr.bf16.mxu0 0
      %998 = vmatpush1.bf16.msra.mxu0 0
      %999 = vmatprep.subr.bf16.mxu0 0
      %1000 = vmatpush1.bf16.msra.mxu0 0
      %1001 = vmatprep.subr.bf16.mxu0 0
      %1002 = vmatpush1.bf16.msra.mxu0 0
      %1003 = vmatprep.subr.bf16.mxu0 0
      %1004 = vmatpush1.bf16.msra.mxu0 0
      %1005 = vmatprep.subr.bf16.mxu0 0
      %1006 = vmatpush1.bf16.msra.mxu0 0
      %1007 = vmatprep.subr.bf16.mxu0 0
      %1008 = vmatpush1.bf16.msra.mxu0 0
      %1009 = vmatprep.subr.bf16.mxu0 0
      %1010 = vmatpush1.bf16.msra.mxu0 0
      %1011 = vmatprep.subr.bf16.mxu0 0
      %1012 = vmatpush1.bf16.msra.mxu0 0
      %1013 = vmatprep.mubr.bf16.mxu0 0
      %1014 = vmatmul.mubr.bf16.gmra.mrb[0].mxu0 %v967
      %v1015 = vpop.f32.mrb[0].mxu0
      %v1016 = vadd.f32 0.0, %v1015
      %v1017 = vpop.f32.mrb[0].mxu0
      %v1018 = vpop.f32.mrb[0].mxu0
      %v1019 = vadd.f32 0.0, %v1018
      %v1020 = vpop.f32.mrb[0].mxu0
      %1021 = vmatprep.mubr.bf16.mxu0 0
      %1022 = vmatmul.mubr.bf16.gmra.mrb[0].mxu0 %v970
      %v1023 = vpop.f32.mrb[0].mxu0
      %v1024 = vadd.f32 0.0, %v1023
      %v1025 = vpop.f32.mrb[0].mxu0
      %v1026 = vpop.f32.mrb[0].mxu0
      %v1027 = vadd.f32 0.0, %v1026
      %v1028 = vpop.f32.mrb[0].mxu0
      %1029 = vmatprep.mubr.bf16.mxu0 0
      %1030 = vmatmul.mubr.bf16.gmra.mrb[0].mxu0 %v973
      %v1031 = vpop.f32.mrb[0].mxu0
      %v1032 = vadd.f32 0.0, %v1031
      %v1033 = vpop.f32.mrb[0].mxu0
      %v1034 = vpop.f32.mrb[0].mxu0
      %v1035 = vadd.f32 0.0, %v1034
      %v1036 = vpop.f32.mrb[0].mxu0
      %1037 = vmatprep.mubr.bf16.mxu0 0
      %1038 = vmatmul.mubr.bf16.gmra.mrb[0].mxu0 %v976
      %v1039 = vpop.f32.mrb[0].mxu0
      %v1040 = vadd.f32 0.0, %v1039
      %v1041 = vpop.f32.mrb[0].mxu0
      %v1042 = vpop.f32.mrb[0].mxu0
      %v1043 = vadd.f32 0.0, %v1042
      %v1044 = vpop.f32.mrb[0].mxu0
      %1045 = vdwg.mxu0
      %v1046 = vadd.f32 %v816, %v1016
      %v1047 = vadd.f32 %v817, %v1019
      %v1048 = vadd.f32 %v818, %v1024
      %v1049 = vadd.f32 %v819, %v1027
      %v1050 = vadd.f32 %v820, %v1032
      %v1051 = vadd.f32 %v821, %v1035
      %v1052 = vadd.f32 %v822, %v1040
      %v1053 = vadd.f32 %v823, %v1043
      %v1054 = vld [vmem:[%s705] sm:$0xe]
      %v1055 = vld [vmem:[%s705 + $0x8] sm:$0xe]
      %v1056 = vld [vmem:[%s705 + $0x10] sm:$0xe]
      %v1057 = vld [vmem:[%s705 + $0x18] sm:$0xe]
      %v1058 = vld [vmem:[%s705 + $0x20] sm:$0xe]
      %v1059 = vld [vmem:[%s705 + $0x28] sm:$0xe]
      %v1060 = vld [vmem:[%s705 + $0x30] sm:$0xe]
      %v1061 = vld [vmem:[%s705 + $0x38] sm:$0xe]
      %v1078 = vrot.slane %v1054, 5
      %v1079 = vrot.slane %v1078, 4
      %v1080 = vrot.slane %v825, 5
      %v1081 = vsel %vm570, %v1079, %v1080
      %v1082 = vrot.slane %v1055, 5
      %v1083 = vrot.slane %v1082, 4
      %v1084 = vrot.slane %v827, 5
      %v1085 = vsel %vm570, %v1083, %v1084
      %v1086 = vrot.slane %v1056, 5
      %v1087 = vrot.slane %v1086, 4
      %v1088 = vrot.slane %v829, 5
      %v1089 = vsel %vm570, %v1087, %v1088
      %v1090 = vrot.slane %v1057, 5
      %v1091 = vrot.slane %v1090, 4
      %v1092 = vrot.slane %v831, 5
      %v1093 = vsel %vm570, %v1091, %v1092
      %v1094 = vrot.slane %v1058, 5
      %v1095 = vrot.slane %v1094, 4
      %v1096 = vrot.slane %v833, 5
      %v1097 = vsel %vm570, %v1095, %v1096
      %v1098 = vrot.slane %v1059, 5
      %v1099 = vrot.slane %v1098, 4
      %v1100 = vrot.slane %v835, 5
      %v1101 = vsel %vm570, %v1099, %v1100
      %v1102 = vrot.slane %v1060, 5
      %v1103 = vrot.slane %v1102, 4
      %v1104 = vrot.slane %v837, 5
      %v1105 = vsel %vm570, %v1103, %v1104
      %v1106 = vrot.slane %v1061, 5
      %v1107 = vrot.slane %v1106, 4
      %v1108 = vrot.slane %v839, 5
      %v1109 = vsel %vm570, %v1107, %v1108
      %s1110 = scalar_lea.vmem %s1, 20
      %v1111 = vld [vmem:[%s1110] sm:$0xf]
      %v1112 = vunpack.c.l.b16 %v1081
      %v1113 = vunpack.c.l.b16 %v1085
      %v1114 = vunpack.c.l.b16 %v1089
      %v1115 = vunpack.c.l.b16 %v1093
      %v1116 = vunpack.c.l.b16 %v1097
      %v1117 = vunpack.c.l.b16 %v1101
      %v1118 = vunpack.c.l.b16 %v1105
      %v1119 = vunpack.c.l.b16 %v1109
      %v1120 = vpack.c.b16 %v1113, %v1112
      %v1121 = vpack.c.b16 %v1115, %v1114
      %v1122 = vpack.c.b16 %v1117, %v1116
      %v1123 = vpack.c.b16 %v1119, %v1118
      %v1125 = vsel %vm362, %v1120, 0
      %v1128 = vsel %vm362, %v1121, 0
      %v1131 = vsel %vm362, %v1122, 0
      %v1134 = vsel %vm362, %v1123, 0
      %v1137 = vsel %vm375, %v1111, 0
      %1139 = vmatprep.subr.bf16.mxu0 0
      %1140 = vmatpush1.bf16.msra.mxu0 %v1137
      %1141 = vmatprep.subr.bf16.mxu0 0
      %1142 = vmatpush1.bf16.msra.mxu0 0
      %1143 = vmatprep.subr.bf16.mxu0 0
      %1144 = vmatpush1.bf16.msra.mxu0 0
      %1145 = vmatprep.subr.bf16.mxu0 0
      %1146 = vmatpush1.bf16.msra.mxu0 0
      %1147 = vmatprep.subr.bf16.mxu0 0
      %1148 = vmatpush1.bf16.msra.mxu0 0
      %1149 = vmatprep.subr.bf16.mxu0 0
      %1150 = vmatpush1.bf16.msra.mxu0 0
      %1151 = vmatprep.subr.bf16.mxu0 0
      %1152 = vmatpush1.bf16.msra.mxu0 0
      %1153 = vmatprep.subr.bf16.mxu0 0
      %1154 = vmatpush1.bf16.msra.mxu0 0
      %1155 = vmatprep.subr.bf16.mxu0 0
      %1156 = vmatpush1.bf16.msra.mxu0 0
      %1157 = vmatprep.subr.bf16.mxu0 0
      %1158 = vmatpush1.bf16.msra.mxu0 0
      %1159 = vmatprep.subr.bf16.mxu0 0
      %1160 = vmatpush1.bf16.msra.mxu0 0
      %1161 = vmatprep.subr.bf16.mxu0 0
      %1162 = vmatpush1.bf16.msra.mxu0 0
      %1163 = vmatprep.subr.bf16.mxu0 0
      %1164 = vmatpush1.bf16.msra.mxu0 0
      %1165 = vmatprep.subr.bf16.mxu0 0
      %1166 = vmatpush1.bf16.msra.mxu0 0
      %1167 = vmatprep.subr.bf16.mxu0 0
      %1168 = vmatpush1.bf16.msra.mxu0 0
      %1169 = vmatprep.subr.bf16.mxu0 0
      %1170 = vmatpush1.bf16.msra.mxu0 0
      %1171 = vmatprep.mubr.bf16.mxu0 0
      %1172 = vmatmul.mubr.bf16.gmra.mrb[0].mxu0 %v1125
      %v1173 = vpop.f32.mrb[0].mxu0
      %v1174 = vadd.f32 0.0, %v1173
      %v1175 = vpop.f32.mrb[0].mxu0
      %v1176 = vpop.f32.mrb[0].mxu0
      %v1177 = vadd.f32 0.0, %v1176
      %v1178 = vpop.f32.mrb[0].mxu0
      %1179 = vmatprep.mubr.bf16.mxu0 0
      %1180 = vmatmul.mubr.bf16.gmra.mrb[0].mxu0 %v1128
      %v1181 = vpop.f32.mrb[0].mxu0
      %v1182 = vadd.f32 0.0, %v1181
      %v1183 = vpop.f32.mrb[0].mxu0
      %v1184 = vpop.f32.mrb[0].mxu0
      %v1185 = vadd.f32 0.0, %v1184
      %v1186 = vpop.f32.mrb[0].mxu0
      %1187 = vmatprep.mubr.bf16.mxu0 0
      %1188 = vmatmul.mubr.bf16.gmra.mrb[0].mxu0 %v1131
      %v1189 = vpop.f32.mrb[0].mxu0
      %v1190 = vadd.f32 0.0, %v1189
      %v1191 = vpop.f32.mrb[0].mxu0
      %v1192 = vpop.f32.mrb[0].mxu0
      %v1193 = vadd.f32 0.0, %v1192
      %v1194 = vpop.f32.mrb[0].mxu0
      %1195 = vmatprep.mubr.bf16.mxu0 0
      %1196 = vmatmul.mubr.bf16.gmra.mrb[0].mxu0 %v1134
      %v1197 = vpop.f32.mrb[0].mxu0
      %v1198 = vadd.f32 0.0, %v1197
      %v1199 = vpop.f32.mrb[0].mxu0
      %v1200 = vpop.f32.mrb[0].mxu0
      %v1201 = vadd.f32 0.0, %v1200
      %v1202 = vpop.f32.mrb[0].mxu0
      %1203 = vdwg.mxu0
      %v1204 = vadd.f32 %v1046, %v1174
      %v1205 = vadd.f32 %v1047, %v1177
      %v1206 = vadd.f32 %v1048, %v1182
      %v1207 = vadd.f32 %v1049, %v1185
      %v1208 = vadd.f32 %v1050, %v1190
      %v1209 = vadd.f32 %v1051, %v1193
      %v1210 = vadd.f32 %v1052, %v1198
      %v1211 = vadd.f32 %v1053, %v1201
      %s1212 = scalar_lea.vmem %s203, 16
      %v1213 = vld [vmem:[%s1212] sm:$0xf]
      %v1214 = vld [vmem:[%s1212 + $0x8] sm:$0xf]
      %v1215 = vld [vmem:[%s1212 + $0x10] sm:$0xf]
      %v1216 = vld [vmem:[%s1212 + $0x18] sm:$0xf]
      %v1217 = vld [vmem:[%s1212 + $0x20] sm:$0xf]
      %v1218 = vld [vmem:[%s1212 + $0x28] sm:$0xf]
      %v1219 = vld [vmem:[%s1212 + $0x30] sm:$0xf]
      %v1220 = vld [vmem:[%s1212 + $0x38] sm:$0xf]
      %s1221 = scalar_lea.vmem %s1, 24
      %v1222 = vld [vmem:[%s1221] sm:$0xf]
      %v1231 = vunpack.c.l.b16 %v1213
      %v1232 = vunpack.c.l.b16 %v1214
      %v1233 = vunpack.c.l.b16 %v1215
      %v1234 = vunpack.c.l.b16 %v1216
      %v1235 = vunpack.c.l.b16 %v1217
      %v1236 = vunpack.c.l.b16 %v1218
      %v1237 = vunpack.c.l.b16 %v1219
      %v1238 = vunpack.c.l.b16 %v1220
      %v1239 = vpack.c.b16 %v1232, %v1231
      %v1240 = vpack.c.b16 %v1234, %v1233
      %v1241 = vpack.c.b16 %v1236, %v1235
      %v1242 = vpack.c.b16 %v1238, %v1237
      %v1244 = vsel %vm362, %v1239, 0
      %v1247 = vsel %vm362, %v1240, 0
      %v1250 = vsel %vm362, %v1241, 0
      %v1253 = vsel %vm362, %v1242, 0
      %v1256 = vsel %vm375, %v1222, 0
      %1258 = vmatprep.subr.bf16.mxu0 0
      %1259 = vmatpush1.bf16.msra.mxu0 %v1256
      %1260 = vmatprep.subr.bf16.mxu0 0
      %1261 = vmatpush1.bf16.msra.mxu0 0
      %1262 = vmatprep.subr.bf16.mxu0 0
      %1263 = vmatpush1.bf16.msra.mxu0 0
      %1264 = vmatprep.subr.bf16.mxu0 0
      %1265 = vmatpush1.bf16.msra.mxu0 0
      %1266 = vmatprep.subr.bf16.mxu0 0
      %1267 = vmatpush1.bf16.msra.mxu0 0
      %1268 = vmatprep.subr.bf16.mxu0 0
      %1269 = vmatpush1.bf16.msra.mxu0 0
      %1270 = vmatprep.subr.bf16.mxu0 0
      %1271 = vmatpush1.bf16.msra.mxu0 0
      %1272 = vmatprep.subr.bf16.mxu0 0
      %1273 = vmatpush1.bf16.msra.mxu0 0
      %1274 = vmatprep.subr.bf16.mxu0 0
      %1275 = vmatpush1.bf16.msra.mxu0 0
      %1276 = vmatprep.subr.bf16.mxu0 0
      %1277 = vmatpush1.bf16.msra.mxu0 0
      %1278 = vmatprep.subr.bf16.mxu0 0
      %1279 = vmatpush1.bf16.msra.mxu0 0
      %1280 = vmatprep.subr.bf16.mxu0 0
      %1281 = vmatpush1.bf16.msra.mxu0 0
      %1282 = vmatprep.subr.bf16.mxu0 0
      %1283 = vmatpush1.bf16.msra.mxu0 0
      %1284 = vmatprep.subr.bf16.mxu0 0
      %1285 = vmatpush1.bf16.msra.mxu0 0
      %1286 = vmatprep.subr.bf16.mxu0 0
      %1287 = vmatpush1.bf16.msra.mxu0 0
      %1288 = vmatprep.subr.bf16.mxu0 0
      %1289 = vmatpush1.bf16.msra.mxu0 0
      %1290 = vmatprep.mubr.bf16.mxu0 0
      %1291 = vmatmul.mubr.bf16.gmra.mrb[0].mxu0 %v1244
      %v1292 = vpop.f32.mrb[0].mxu0
      %v1293 = vadd.f32 0.0, %v1292
      %v1294 = vpop.f32.mrb[0].mxu0
      %v1295 = vpop.f32.mrb[0].mxu0
      %v1296 = vadd.f32 0.0, %v1295
      %v1297 = vpop.f32.mrb[0].mxu0
      %1298 = vmatprep.mubr.bf16.mxu0 0
      %1299 = vmatmul.mubr.bf16.gmra.mrb[0].mxu0 %v1247
      %v1300 = vpop.f32.mrb[0].mxu0
      %v1301 = vadd.f32 0.0, %v1300
      %v1302 = vpop.f32.mrb[0].mxu0
      %v1303 = vpop.f32.mrb[0].mxu0
      %v1304 = vadd.f32 0.0, %v1303
      %v1305 = vpop.f32.mrb[0].mxu0
      %1306 = vmatprep.mubr.bf16.mxu0 0
      %1307 = vmatmul.mubr.bf16.gmra.mrb[0].mxu0 %v1250
      %v1308 = vpop.f32.mrb[0].mxu0
      %v1309 = vadd.f32 0.0, %v1308
      %v1310 = vpop.f32.mrb[0].mxu0
      %v1311 = vpop.f32.mrb[0].mxu0
      %v1312 = vadd.f32 0.0, %v1311
      %v1313 = vpop.f32.mrb[0].mxu0
      %1314 = vmatprep.mubr.bf16.mxu0 0
      %1315 = vmatmul.mubr.bf16.gmra.mrb[0].mxu0 %v1253
      %v1316 = vpop.f32.mrb[0].mxu0
      %v1317 = vadd.f32 0.0, %v1316
      %v1318 = vpop.f32.mrb[0].mxu0
      %v1319 = vpop.f32.mrb[0].mxu0
      %v1320 = vadd.f32 0.0, %v1319
      %v1321 = vpop.f32.mrb[0].mxu0
      %1322 = vdwg.mxu0
      %v1323 = vadd.f32 %v1204, %v1293
      %v1324 = vadd.f32 %v1205, %v1296
      %v1325 = vadd.f32 %v1206, %v1301
      %v1326 = vadd.f32 %v1207, %v1304
      %v1327 = vadd.f32 %v1208, %v1309
      %v1328 = vadd.f32 %v1209, %v1312
      %v1329 = vadd.f32 %v1210, %v1317
      %v1330 = vadd.f32 %v1211, %v1320
      %v1331 = vld [vmem:[%s1212] sm:$0xf]
      %v1332 = vld [vmem:[%s1212 + $0x4] sm:$0x1]
      %v1333 = vld [vmem:[%s1212 + $0x8] sm:$0xf]
      %v1334 = vld [vmem:[%s1212 + $0xc] sm:$0x1]
      %v1335 = vld [vmem:[%s1212 + $0x10] sm:$0xf]
      %v1336 = vld [vmem:[%s1212 + $0x14] sm:$0x1]
      %v1337 = vld [vmem:[%s1212 + $0x18] sm:$0xf]
      %v1338 = vld [vmem:[%s1212 + $0x1c] sm:$0x1]
      %v1339 = vld [vmem:[%s1212 + $0x20] sm:$0xf]
      %v1340 = vld [vmem:[%s1212 + $0x24] sm:$0x1]
      %v1341 = vld [vmem:[%s1212 + $0x28] sm:$0xf]
      %v1342 = vld [vmem:[%s1212 + $0x2c] sm:$0x1]
      %v1343 = vld [vmem:[%s1212 + $0x30] sm:$0xf]
      %v1344 = vld [vmem:[%s1212 + $0x34] sm:$0x1]
      %v1345 = vld [vmem:[%s1212 + $0x38] sm:$0xf]
      %v1346 = vld [vmem:[%s1212 + $0x3c] sm:$0x1]
      %v1348 = vshrl.u32 %v1331, 16
      %v1350 = vrot.slane %v1348, 4
      %v1351 = vshll.u32 %v1331, 16
      %v1353 = vrot.slane %v1351, 5
      %v1354 = vor.u32 %v1350, %v1353
      %v1355 = vrot.slane %v1354, 4
      %v1357 = vshll.u32 %v1332, 16
      %v1359 = vrot.slane %v1357, 5
      %v1360 = vsel %vm235, %v1355, %v1359
      %v1362 = vshrl.u32 %v1333, 16
      %v1364 = vrot.slane %v1362, 4
      %v1365 = vshll.u32 %v1333, 16
      %v1367 = vrot.slane %v1365, 5
      %v1368 = vor.u32 %v1364, %v1367
      %v1369 = vrot.slane %v1368, 4
      %v1371 = vshll.u32 %v1334, 16
      %v1373 = vrot.slane %v1371, 5
      %v1374 = vsel %vm235, %v1369, %v1373
      %v1376 = vshrl.u32 %v1335, 16
      %v1378 = vrot.slane %v1376, 4
      %v1379 = vshll.u32 %v1335, 16
      %v1381 = vrot.slane %v1379, 5
      %v1382 = vor.u32 %v1378, %v1381
      %v1383 = vrot.slane %v1382, 4
      %v1385 = vshll.u32 %v1336, 16
      %v1387 = vrot.slane %v1385, 5
      %v1388 = vsel %vm235, %v1383, %v1387
      %v1390 = vshrl.u32 %v1337, 16
      %v1392 = vrot.slane %v1390, 4
      %v1393 = vshll.u32 %v1337, 16
      %v1395 = vrot.slane %v1393, 5
      %v1396 = vor.u32 %v1392, %v1395
      %v1397 = vrot.slane %v1396, 4
      %v1399 = vshll.u32 %v1338, 16
      %v1401 = vrot.slane %v1399, 5
      %v1402 = vsel %vm235, %v1397, %v1401
      %v1404 = vshrl.u32 %v1339, 16
      %v1406 = vrot.slane %v1404, 4
      %v1407 = vshll.u32 %v1339, 16
      %v1409 = vrot.slane %v1407, 5
      %v1410 = vor.u32 %v1406, %v1409
      %v1411 = vrot.slane %v1410, 4
      %v1413 = vshll.u32 %v1340, 16
      %v1415 = vrot.slane %v1413, 5
      %v1416 = vsel %vm235, %v1411, %v1415
      %v1418 = vshrl.u32 %v1341, 16
      %v1420 = vrot.slane %v1418, 4
      %v1421 = vshll.u32 %v1341, 16
      %v1423 = vrot.slane %v1421, 5
      %v1424 = vor.u32 %v1420, %v1423
      %v1425 = vrot.slane %v1424, 4
      %v1427 = vshll.u32 %v1342, 16
      %v1429 = vrot.slane %v1427, 5
      %v1430 = vsel %vm235, %v1425, %v1429
      %v1432 = vshrl.u32 %v1343, 16
      %v1434 = vrot.slane %v1432, 4
      %v1435 = vshll.u32 %v1343, 16
      %v1437 = vrot.slane %v1435, 5
      %v1438 = vor.u32 %v1434, %v1437
      %v1439 = vrot.slane %v1438, 4
      %v1441 = vshll.u32 %v1344, 16
      %v1443 = vrot.slane %v1441, 5
      %v1444 = vsel %vm235, %v1439, %v1443
      %v1446 = vshrl.u32 %v1345, 16
      %v1448 = vrot.slane %v1446, 4
      %v1449 = vshll.u32 %v1345, 16
      %v1451 = vrot.slane %v1449, 5
      %v1452 = vor.u32 %v1448, %v1451
      %v1453 = vrot.slane %v1452, 4
      %v1455 = vshll.u32 %v1346, 16
      %v1457 = vrot.slane %v1455, 5
      %v1458 = vsel %vm235, %v1453, %v1457
      %s1459 = scalar_lea.vmem %s1, 28
      %v1460 = vld [vmem:[%s1459] sm:$0xf]
      %v1461 = vunpack.c.l.b16 %v1360
      %v1462 = vunpack.c.l.b16 %v1374
      %v1463 = vunpack.c.l.b16 %v1388
      %v1464 = vunpack.c.l.b16 %v1402
      %v1465 = vunpack.c.l.b16 %v1416
      %v1466 = vunpack.c.l.b16 %v1430
      %v1467 = vunpack.c.l.b16 %v1444
      %v1468 = vunpack.c.l.b16 %v1458
      %v1469 = vpack.c.b16 %v1462, %v1461
      %v1470 = vpack.c.b16 %v1464, %v1463
      %v1471 = vpack.c.b16 %v1466, %v1465
      %v1472 = vpack.c.b16 %v1468, %v1467
      %v1474 = vsel %vm362, %v1469, 0
      %v1477 = vsel %vm362, %v1470, 0
      %v1480 = vsel %vm362, %v1471, 0
      %v1483 = vsel %vm362, %v1472, 0
      %v1486 = vsel %vm375, %v1460, 0
      %1488 = vmatprep.subr.bf16.mxu0 0
      %1489 = vmatpush1.bf16.msra.mxu0 %v1486
      %1490 = vmatprep.subr.bf16.mxu0 0
      %1491 = vmatpush1.bf16.msra.mxu0 0
      %1492 = vmatprep.subr.bf16.mxu0 0
      %1493 = vmatpush1.bf16.msra.mxu0 0
      %1494 = vmatprep.subr.bf16.mxu0 0
      %1495 = vmatpush1.bf16.msra.mxu0 0
      %1496 = vmatprep.subr.bf16.mxu0 0
      %1497 = vmatpush1.bf16.msra.mxu0 0
      %1498 = vmatprep.subr.bf16.mxu0 0
      %1499 = vmatpush1.bf16.msra.mxu0 0
      %1500 = vmatprep.subr.bf16.mxu0 0
      %1501 = vmatpush1.bf16.msra.mxu0 0
      %1502 = vmatprep.subr.bf16.mxu0 0
      %1503 = vmatpush1.bf16.msra.mxu0 0
      %1504 = vmatprep.subr.bf16.mxu0 0
      %1505 = vmatpush1.bf16.msra.mxu0 0
      %1506 = vmatprep.subr.bf16.mxu0 0
      %1507 = vmatpush1.bf16.msra.mxu0 0
      %1508 = vmatprep.subr.bf16.mxu0 0
      %1509 = vmatpush1.bf16.msra.mxu0 0
      %1510 = vmatprep.subr.bf16.mxu0 0
      %1511 = vmatpush1.bf16.msra.mxu0 0
      %1512 = vmatprep.subr.bf16.mxu0 0
      %1513 = vmatpush1.bf16.msra.mxu0 0
      %1514 = vmatprep.subr.bf16.mxu0 0
      %1515 = vmatpush1.bf16.msra.mxu0 0
      %1516 = vmatprep.subr.bf16.mxu0 0
      %1517 = vmatpush1.bf16.msra.mxu0 0
      %1518 = vmatprep.subr.bf16.mxu0 0
      %1519 = vmatpush1.bf16.msra.mxu0 0
      %1520 = vmatprep.mubr.bf16.mxu0 0
      %1521 = vmatmul.mubr.bf16.gmra.mrb[0].mxu0 %v1474
      %v1522 = vpop.f32.mrb[0].mxu0
      %v1523 = vadd.f32 0.0, %v1522
      %v1524 = vpop.f32.mrb[0].mxu0
      %v1525 = vpop.f32.mrb[0].mxu0
      %v1526 = vadd.f32 0.0, %v1525
      %v1527 = vpop.f32.mrb[0].mxu0
      %1528 = vmatprep.mubr.bf16.mxu0 0
      %1529 = vmatmul.mubr.bf16.gmra.mrb[0].mxu0 %v1477
      %v1530 = vpop.f32.mrb[0].mxu0
      %v1531 = vadd.f32 0.0, %v1530
      %v1532 = vpop.f32.mrb[0].mxu0
      %v1533 = vpop.f32.mrb[0].mxu0
      %v1534 = vadd.f32 0.0, %v1533
      %v1535 = vpop.f32.mrb[0].mxu0
      %1536 = vmatprep.mubr.bf16.mxu0 0
      %1537 = vmatmul.mubr.bf16.gmra.mrb[0].mxu0 %v1480
      %v1538 = vpop.f32.mrb[0].mxu0
      %v1539 = vadd.f32 0.0, %v1538
      %v1540 = vpop.f32.mrb[0].mxu0
      %v1541 = vpop.f32.mrb[0].mxu0
      %v1542 = vadd.f32 0.0, %v1541
      %v1543 = vpop.f32.mrb[0].mxu0
      %1544 = vmatprep.mubr.bf16.mxu0 0
      %1545 = vmatmul.mubr.bf16.gmra.mrb[0].mxu0 %v1483
      %v1546 = vpop.f32.mrb[0].mxu0
      %v1547 = vadd.f32 0.0, %v1546
      %v1548 = vpop.f32.mrb[0].mxu0
      %v1549 = vpop.f32.mrb[0].mxu0
      %v1550 = vadd.f32 0.0, %v1549
      %v1551 = vpop.f32.mrb[0].mxu0
      %1552 = vdwg.mxu0
      %v1553 = vadd.f32 %v1323, %v1523
      %v1554 = vadd.f32 %v1324, %v1526
      %v1555 = vadd.f32 %v1325, %v1531
      %v1556 = vadd.f32 %v1326, %v1534
      %v1557 = vadd.f32 %v1327, %v1539
      %v1558 = vadd.f32 %v1328, %v1542
      %v1559 = vadd.f32 %v1329, %v1547
      %v1560 = vadd.f32 %v1330, %v1550
      %v1561 = vld [vmem:[%s1212] sm:$0xe]
      %v1562 = vld [vmem:[%s1212 + $0x8] sm:$0xe]
      %v1563 = vld [vmem:[%s1212 + $0x10] sm:$0xe]
      %v1564 = vld [vmem:[%s1212 + $0x18] sm:$0xe]
      %v1565 = vld [vmem:[%s1212 + $0x20] sm:$0xe]
      %v1566 = vld [vmem:[%s1212 + $0x28] sm:$0xe]
      %v1567 = vld [vmem:[%s1212 + $0x30] sm:$0xe]
      %v1568 = vld [vmem:[%s1212 + $0x38] sm:$0xe]
      %v1585 = vrot.slane %v1561, 5
      %v1586 = vrot.slane %v1585, 4
      %v1587 = vrot.slane %v1332, 5
      %v1588 = vsel %vm570, %v1586, %v1587
      %v1589 = vrot.slane %v1562, 5
      %v1590 = vrot.slane %v1589, 4
      %v1591 = vrot.slane %v1334, 5
      %v1592 = vsel %vm570, %v1590, %v1591
      %v1593 = vrot.slane %v1563, 5
      %v1594 = vrot.slane %v1593, 4
      %v1595 = vrot.slane %v1336, 5
      %v1596 = vsel %vm570, %v1594, %v1595
      %v1597 = vrot.slane %v1564, 5
      %v1598 = vrot.slane %v1597, 4
      %v1599 = vrot.slane %v1338, 5
      %v1600 = vsel %vm570, %v1598, %v1599
      %v1601 = vrot.slane %v1565, 5
      %v1602 = vrot.slane %v1601, 4
      %v1603 = vrot.slane %v1340, 5
      %v1604 = vsel %vm570, %v1602, %v1603
      %v1605 = vrot.slane %v1566, 5
      %v1606 = vrot.slane %v1605, 4
      %v1607 = vrot.slane %v1342, 5
      %v1608 = vsel %vm570, %v1606, %v1607
      %v1609 = vrot.slane %v1567, 5
      %v1610 = vrot.slane %v1609, 4
      %v1611 = vrot.slane %v1344, 5
      %v1612 = vsel %vm570, %v1610, %v1611
      %v1613 = vrot.slane %v1568, 5
      %v1614 = vrot.slane %v1613, 4
      %v1615 = vrot.slane %v1346, 5
      %v1616 = vsel %vm570, %v1614, %v1615
      %s1617 = scalar_lea.vmem %s1, 32
      %v1618 = vld [vmem:[%s1617] sm:$0xf]
      %v1619 = vunpack.c.l.b16 %v1588
      %v1620 = vunpack.c.l.b16 %v1592
      %v1621 = vunpack.c.l.b16 %v1596
      %v1622 = vunpack.c.l.b16 %v1600
      %v1623 = vunpack.c.l.b16 %v1604
      %v1624 = vunpack.c.l.b16 %v1608
      %v1625 = vunpack.c.l.b16 %v1612
      %v1626 = vunpack.c.l.b16 %v1616
      %v1627 = vpack.c.b16 %v1620, %v1619
      %v1628 = vpack.c.b16 %v1622, %v1621
      %v1629 = vpack.c.b16 %v1624, %v1623
      %v1630 = vpack.c.b16 %v1626, %v1625
      %v1632 = vsel %vm362, %v1627, 0
      %v1635 = vsel %vm362, %v1628, 0
      %v1638 = vsel %vm362, %v1629, 0
      %v1641 = vsel %vm362, %v1630, 0
      %v1644 = vsel %vm375, %v1618, 0
      %1646 = vmatprep.subr.bf16.mxu0 0
      %1647 = vmatpush1.bf16.msra.mxu0 %v1644
      %1648 = vmatprep.subr.bf16.mxu0 0
      %1649 = vmatpush1.bf16.msra.mxu0 0
      %1650 = vmatprep.subr.bf16.mxu0 0
      %1651 = vmatpush1.bf16.msra.mxu0 0
      %1652 = vmatprep.subr.bf16.mxu0 0
      %1653 = vmatpush1.bf16.msra.mxu0 0
      %1654 = vmatprep.subr.bf16.mxu0 0
      %1655 = vmatpush1.bf16.msra.mxu0 0
      %1656 = vmatprep.subr.bf16.mxu0 0
      %1657 = vmatpush1.bf16.msra.mxu0 0
      %1658 = vmatprep.subr.bf16.mxu0 0
      %1659 = vmatpush1.bf16.msra.mxu0 0
      %1660 = vmatprep.subr.bf16.mxu0 0
      %1661 = vmatpush1.bf16.msra.mxu0 0
      %1662 = vmatprep.subr.bf16.mxu0 0
      %1663 = vmatpush1.bf16.msra.mxu0 0
      %1664 = vmatprep.subr.bf16.mxu0 0
      %1665 = vmatpush1.bf16.msra.mxu0 0
      %1666 = vmatprep.subr.bf16.mxu0 0
      %1667 = vmatpush1.bf16.msra.mxu0 0
      %1668 = vmatprep.subr.bf16.mxu0 0
      %1669 = vmatpush1.bf16.msra.mxu0 0
      %1670 = vmatprep.subr.bf16.mxu0 0
      %1671 = vmatpush1.bf16.msra.mxu0 0
      %1672 = vmatprep.subr.bf16.mxu0 0
      %1673 = vmatpush1.bf16.msra.mxu0 0
      %1674 = vmatprep.subr.bf16.mxu0 0
      %1675 = vmatpush1.bf16.msra.mxu0 0
      %1676 = vmatprep.subr.bf16.mxu0 0
      %1677 = vmatpush1.bf16.msra.mxu0 0
      %1678 = vmatprep.mubr.bf16.mxu0 0
      %1679 = vmatmul.mubr.bf16.gmra.mrb[0].mxu0 %v1632
      %v1680 = vpop.f32.mrb[0].mxu0
      %v1681 = vadd.f32 0.0, %v1680
      %v1682 = vpop.f32.mrb[0].mxu0
      %v1683 = vpop.f32.mrb[0].mxu0
      %v1684 = vadd.f32 0.0, %v1683
      %v1685 = vpop.f32.mrb[0].mxu0
      %1686 = vmatprep.mubr.bf16.mxu0 0
      %1687 = vmatmul.mubr.bf16.gmra.mrb[0].mxu0 %v1635
      %v1688 = vpop.f32.mrb[0].mxu0
      %v1689 = vadd.f32 0.0, %v1688
      %v1690 = vpop.f32.mrb[0].mxu0
      %v1691 = vpop.f32.mrb[0].mxu0
      %v1692 = vadd.f32 0.0, %v1691
      %v1693 = vpop.f32.mrb[0].mxu0
      %1694 = vmatprep.mubr.bf16.mxu0 0
      %1695 = vmatmul.mubr.bf16.gmra.mrb[0].mxu0 %v1638
      %v1696 = vpop.f32.mrb[0].mxu0
      %v1697 = vadd.f32 0.0, %v1696
      %v1698 = vpop.f32.mrb[0].mxu0
      %v1699 = vpop.f32.mrb[0].mxu0
      %v1700 = vadd.f32 0.0, %v1699
      %v1701 = vpop.f32.mrb[0].mxu0
      %1702 = vmatprep.mubr.bf16.mxu0 0
      %1703 = vmatmul.mubr.bf16.gmra.mrb[0].mxu0 %v1641
      %v1704 = vpop.f32.mrb[0].mxu0
      %v1705 = vadd.f32 0.0, %v1704
      %v1706 = vpop.f32.mrb[0].mxu0
      %v1707 = vpop.f32.mrb[0].mxu0
      %v1708 = vadd.f32 0.0, %v1707
      %v1709 = vpop.f32.mrb[0].mxu0
      %1710 = vdwg.mxu0
      %v1711 = vadd.f32 %v1553, %v1681
      %v1712 = vadd.f32 %v1554, %v1684
      %v1713 = vadd.f32 %v1555, %v1689
      %v1714 = vadd.f32 %v1556, %v1692
      %v1715 = vadd.f32 %v1557, %v1697
      %v1716 = vadd.f32 %v1558, %v1700
      %v1717 = vadd.f32 %v1559, %v1705
      %v1718 = vadd.f32 %v1560, %v1708
      %v1719 = vpack.c.bf16 %v1711, %v1711
      %v1720 = vpack.c.bf16 %v1712, %v1712
      %v1721 = vpack.c.bf16 %v1713, %v1713
      %v1722 = vpack.c.bf16 %v1714, %v1714
      %v1723 = vpack.c.bf16 %v1715, %v1715
      %v1724 = vpack.c.bf16 %v1716, %v1716
      %v1725 = vpack.c.bf16 %v1717, %v1717
      %v1726 = vpack.c.bf16 %v1718, %v1718
      %vm1727 = vcmask 60416
      %1728 = vst.msk [vmem:[%s208] sm:$0xf] %vm1727, %v1719
      %1729 = vst.msk [vmem:[%s208 + $0x4] sm:$0xf] %vm1727, %v1720
      %1730 = vst.msk [vmem:[%s208 + $0x8] sm:$0xf] %vm1727, %v1721
      %1731 = vst.msk [vmem:[%s208 + $0xc] sm:$0xf] %vm1727, %v1722
      %1732 = vst.msk [vmem:[%s208 + $0x10] sm:$0xf] %vm1727, %v1723
      %1733 = vst.msk [vmem:[%s208 + $0x14] sm:$0xf] %vm1727, %v1724
      %1734 = vst.msk [vmem:[%s208 + $0x18] sm:$0xf] %vm1727, %v1725
      %1735 = vst.msk [vmem:[%s208 + $0x1c] sm:$0xf] %vm1727, %v1726
      %v1736 = vsel %vm362, %v1711, 0.0
      %v1737 = vsel %vm362, %v1712, 0.0
      %v1738 = vadd.f32 %v1736, %v1737
      %v1739 = vsel %vm362, %v1713, 0.0
      %v1740 = vadd.f32 %v1738, %v1739
      %v1741 = vsel %vm362, %v1714, 0.0
      %v1742 = vadd.f32 %v1740, %v1741
      %v1743 = vsel %vm362, %v1715, 0.0
      %v1744 = vadd.f32 %v1742, %v1743
      %v1745 = vsel %vm362, %v1716, 0.0
      %v1746 = vadd.f32 %v1744, %v1745
      %v1747 = vsel %vm362, %v1717, 0.0
      %v1748 = vadd.f32 %v1746, %v1747
      %v1749 = vsel %vm362, %v1718, 0.0
      %v1750 = vadd.f32 %v1748, %v1749
      %v1751 = vrot.slane %v1750, 4
      %v1752 = vadd.f32 %v1750, %v1751
      %v1753 = vrot.slane %v1752, 2
      %v1754 = vadd.f32 %v1752, %v1753
      %v1755 = vrot.slane %v1754, 1
      %v1756 = vadd.f32 %v1754, %v1755
      %vm1757 = vcmask 57344
      %1758 = vst.msk [vmem:[%s211] sm:$0x1] %vm1757, %v1756
      %v1759 = vmul.f32 %v1711, %v1711
      %v1760 = vmul.f32 %v1712, %v1712
      %v1761 = vmul.f32 %v1713, %v1713
      %v1762 = vmul.f32 %v1714, %v1714
      %v1763 = vmul.f32 %v1715, %v1715
      %v1764 = vmul.f32 %v1716, %v1716
      %v1765 = vmul.f32 %v1717, %v1717
      %v1766 = vmul.f32 %v1718, %v1718
      %v1767 = vsel %vm362, %v1759, 0.0
      %v1768 = vsel %vm362, %v1760, 0.0
      %v1769 = vadd.f32 %v1767, %v1768
      %v1770 = vsel %vm362, %v1761, 0.0
      %v1771 = vadd.f32 %v1769, %v1770
      %v1772 = vsel %vm362, %v1762, 0.0
      %v1773 = vadd.f32 %v1771, %v1772
      %v1774 = vsel %vm362, %v1763, 0.0
      %v1775 = vadd.f32 %v1773, %v1774
      %v1776 = vsel %vm362, %v1764, 0.0
      %v1777 = vadd.f32 %v1775, %v1776
      %v1778 = vsel %vm362, %v1765, 0.0
      %v1779 = vadd.f32 %v1777, %v1778
      %v1780 = vsel %vm362, %v1766, 0.0
      %v1781 = vadd.f32 %v1779, %v1780
      %v1782 = vrot.slane %v1781, 4
      %v1783 = vadd.f32 %v1781, %v1782
      %v1784 = vrot.slane %v1783, 2
      %v1785 = vadd.f32 %v1783, %v1784
      %v1786 = vrot.slane %v1785, 1
      %v1787 = vadd.f32 %v1785, %v1786
      %1788 = vst.msk [vmem:[%s214] sm:$0x1] %vm1757, %v1787
      %p1789 = scmp.lt.s32.totalorder %s16, 1
      %s1790 = scalar_select %p1789, %s16, 1
      %s1791 = smul.addr %s1790, 8
      %s1792 = smul.addr %s1791, 4
      %s1793 = scalar_lea.vmem %s2, %s1792
      %p1794 = scmp.lt.s32.totalorder %s16, 1
      %s1795 = scalar_select %p1794, %s16, 1
      %s1796 = scalar_lea.vmem %s3, %s1795
      %p1797 = scmp.lt.s32.totalorder %s16, 1
      %s1798 = scalar_select %p1797, %s16, 1
      %s1799 = scalar_lea.vmem %s4, %s1798
      // Predicated region
      $region29: #{basic_block_forward.7} parent=27 // pred_check
        %p1800 = pneg %p81
      $region30: #{basic_block_forward.7} parent=27 // pred_check_branch
        %1802 = sbr.rel (%p1800) target = $region32
      $region31: #{basic_block_forward.7} parent=27 // pred_region
        _
      $region32: #{basic_block_forward.7} parent=27 // pred_fallthru
        _
      // Predicated region
      $region33: #{basic_block_forward.7} parent=27 // pred_check
        %p1803 = pneg %p107
      $region34: #{basic_block_forward.7} parent=27 // pred_check_branch
        %1805 = sbr.rel (%p1803) target = $region36
      $region35: #{basic_block_forward.7} parent=27 // pred_region
        _
      $region36: #{basic_block_forward.7} parent=27 // pred_fallthru
        _
      // Predicated region
      $region37: #{basic_block_forward.7} parent=27 // pred_check
        %p1806 = pneg %p133
      $region38: #{basic_block_forward.7} parent=27 // pred_check_branch
        %1808 = sbr.rel (%p1806) target = $region40
      $region39: #{basic_block_forward.7} parent=27 // pred_region
        _
      $region40: #{basic_block_forward.7} parent=27 // pred_fallthru
        _
    $region28: #{basic_block_forward.7} parent=5 // pred_fallthru
      _
    %p1809 = scmp.le.s32.totalorder 2, %s11
    // Predicated region
    $region41: #{basic_block_forward.7} parent=5 // pred_check
      %p1810 = pneg %p1809
    $region42: #{basic_block_forward.7} parent=5 // pred_check_branch
      %1812 = sbr.rel (%p1810) target = $region44
    $region43: #{basic_block_forward.7} parent=5 // pred_region
      %s1813 = ssub.s32 %s11, 2
      // Predicated region
      $region45: #{basic_block_forward.7} parent=43 // pred_check
        %p1814 = pneg %p87
      $region46: #{basic_block_forward.7} parent=43 // pred_check_branch
        %1816 = sbr.rel (%p1814) target = $region48
      $region47: #{basic_block_forward.7} parent=43 // pred_region
        %p1817 = scmp.lt.s32.totalorder %s17, 1
        %s1818 = scalar_select %p1817, %s17, 1
        %s1819 = smul.addr %s1818, 8
        %s1820 = smul.addr %s1819, 4
        %s1821 = scalar_lea.vmem %s2, %s1820
      $region48: #{basic_block_forward.7} parent=43 // pred_fallthru
        _
      // Predicated region
      $region49: #{basic_block_forward.7} parent=43 // pred_check
        %p1822 = pneg %p113
      $region50: #{basic_block_forward.7} parent=43 // pred_check_branch
        %1824 = sbr.rel (%p1822) target = $region52
      $region51: #{basic_block_forward.7} parent=43 // pred_region
        %p1825 = scmp.lt.s32.totalorder %s17, 1
        %s1826 = scalar_select %p1825, %s17, 1
        %s1827 = scalar_lea.vmem %s3, %s1826
      $region52: #{basic_block_forward.7} parent=43 // pred_fallthru
        _
      // Predicated region
      $region53: #{basic_block_forward.7} parent=43 // pred_check
        %p1828 = pneg %p139
      $region54: #{basic_block_forward.7} parent=43 // pred_check_branch
        %1830 = sbr.rel (%p1828) target = $region56
      $region55: #{basic_block_forward.7} parent=43 // pred_region
        %p1831 = scmp.lt.s32.totalorder %s17, 1
        %s1832 = scalar_select %p1831, %s17, 1
        %s1833 = scalar_lea.vmem %s4, %s1832
      $region56: #{basic_block_forward.7} parent=43 // pred_fallthru
        _
    $region44: #{basic_block_forward.7} parent=5 // pred_fallthru
      _
  $region6: #{basic_block_forward.7} parent=0 // loop_footer
    %s15 = sadd.s32 1, %s11
  $region7: #{basic_block_forward.7} parent=0 // loop_footer_branch
    %10 = sbr.rel target = $region3
  $region8: #{basic_block_forward.7} parent=0 // loop_exit
    _

</llo_original>
